<compile_context>
chip_gen: v7x
topology: tpu7x:2x2x1
jax: 0.10.0
libtpu: 0.0.40
codegen_flags: <defaults>
</compile_context>

<pallas_src>
import functools

import jax
import jax.numpy as jnp
from jax.experimental import pallas as pl
from jax.experimental.pallas import tpu as pltpu

# Module hyper-parameters (from the PyTorch script).
INPUT_DIM = 28 * 28   # 784
HIDDEN_DIM = 500
LATENT_DIM = 2


def _round_up(x, m):
    return (x + m - 1) // m * m


def _pad2d(a, rows, cols):
    r, c = a.shape
    return jnp.pad(a, ((0, rows - r), (0, cols - c)))


# ----------------------------------------------------------------------------
# Kernel
# ----------------------------------------------------------------------------
def vae_kernel(
    x_ref, eps_ref,
    w1e_ref, b1e_ref, w2e_ref, b2e_ref,
    wml_ref, bml_ref,
    w1d_ref, b1d_ref, w2d_ref, b2d_ref,
    wout_ref, bout_ref,
    xrec_ref, ml_ref,
    *, latent_dim,
):
    bf16 = jnp.bfloat16

    def dense(a, w_ref, b_ref):
        # bf16 x bf16 MXU matmul, f32 accumulation, f32 bias add.
        return (
            jnp.dot(a.astype(bf16), w_ref[...], preferred_element_type=jnp.float32)
            + b_ref[...]
        )

    # ---- Encoder ----
    x = x_ref[...]                                   # bf16, padded lanes are 0
    h = jnp.maximum(dense(x, w1e_ref, b1e_ref), 0.0)
    h = jnp.maximum(dense(h, w2e_ref, b2e_ref), 0.0)

    # Fused mu/logvar projection: lanes [0:L) = mu, lanes [L:2L) = logvar.
    ml = dense(h, wml_ref, bml_ref)                  # (TB, Lp) f32
    ml_ref[...] = ml.astype(ml_ref.dtype)

    # ---- Reparameterization in the packed lane layout ----
    # eps is pre-shifted (wrapper) into lanes [L:2L), zero elsewhere.  The exp
    # is masked to the logvar lanes only (avoids 0*inf NaN and halves EUP work);
    # eps*exp(0.5*logvar) is exactly eps*std in lanes [L:2L) and 0 elsewhere.
    # The decoder fc1 weight has its latent rows duplicated into both lane
    # groups, so z_packed @ W1_dup == (mu + eps*std) @ W1.
    lane = jax.lax.broadcasted_iota(jnp.int32, ml.shape, 1)
    is_mu = lane < latent_dim
    mu_only = jnp.where(is_mu, ml, 0.0)
    logvar_only = jnp.where(is_mu, 0.0, ml)
    z_packed = mu_only + eps_ref[...] * jnp.exp(0.5 * logvar_only)

    # ---- Decoder ----
    d = jnp.maximum(dense(z_packed, w1d_ref, b1d_ref), 0.0)
    d = jnp.maximum(dense(d, w2d_ref, b2d_ref), 0.0)
    logits = dense(d, wout_ref, bout_ref)
    xrec_ref[...] = jax.nn.sigmoid(logits).astype(xrec_ref.dtype)   # bf16 out


# ----------------------------------------------------------------------------
# One-time parameter padding / packing (call once, reuse across forward calls)
# ----------------------------------------------------------------------------
def pad_params(params, *, input_dim, hidden_dim, latent_dim):
    Dp = _round_up(input_dim, 128)
    Hp = _round_up(hidden_dim, 128)
    Lp = _round_up(max(2 * latent_dim, 1), 128)
    L = latent_dim
    bf16 = jnp.bfloat16

    def pw(w, rows, cols):                      # weights -> bf16, zero-padded
        return _pad2d(jnp.asarray(w, jnp.float32), rows, cols).astype(bf16)

    def pb(b, cols):                            # biases stay f32, (1, cols)
        return _pad2d(jnp.asarray(b, jnp.float32).reshape(1, -1), 1, cols)

    # Fused mu/logvar weight: mu in lanes [0:L), logvar in lanes [L:2L).
    wml = jnp.zeros((Hp, Lp), jnp.float32)
    wml = wml.at[:hidden_dim, :L].set(params["enc_wmu"])
    wml = wml.at[:hidden_dim, L:2 * L].set(params["enc_wlv"])
    bml = jnp.zeros((1, Lp), jnp.float32)
    bml = bml.at[0, :L].set(params["enc_bmu"])
    bml = bml.at[0, L:2 * L].set(params["enc_blv"])

    # Decoder fc1 with latent rows duplicated into both lane groups.
    w1d = jnp.zeros((Lp, Hp), jnp.float32)
    w1d = w1d.at[:L, :hidden_dim].set(params["dec_w1"])
    w1d = w1d.at[L:2 * L, :hidden_dim].set(params["dec_w1"])

    return dict(
        w1e=pw(params["enc_w1"], Dp, Hp), b1e=pb(params["enc_b1"], Hp),
        w2e=pw(params["enc_w2"], Hp, Hp), b2e=pb(params["enc_b2"], Hp),
        wml=wml.astype(bf16), bml=bml,
        w1d=w1d.astype(bf16), b1d=pb(params["dec_b1"], Hp),
        w2d=pw(params["dec_w2"], Hp, Hp), b2d=pb(params["dec_b2"], Hp),
        wout=pw(params["dec_wout"], Hp, Dp), bout=pb(params["dec_bout"], Dp),
    )


# ----------------------------------------------------------------------------
# Forward
# ----------------------------------------------------------------------------
@functools.partial(jax.jit, static_argnames=("input_dim", "hidden_dim", "latent_dim"))
def vae_forward(x, eps, padded, *, input_dim, hidden_dim, latent_dim):
    B = x.shape[0]
    Dp = _round_up(input_dim, 128)
    Hp = _round_up(hidden_dim, 128)
    Lp = _round_up(max(2 * latent_dim, 1), 128)
    L = latent_dim

    # Batch-tile policy:
    #  * tiny batch (<=128 rows): single tile of the whole (8-aligned) batch,
    #  * otherwise: guarantee >= 2 tiles (v7x megacore + DMA pipelining),
    #    capped at 512 rows/tile (full-height MXU tiles, ~16 MiB working set).
    Bp_min = _round_up(B, 8)
    if Bp_min <= 128:
        TB = Bp_min
    else:
        TB = min(512, _round_up((Bp_min + 1) // 2, 8))
    Bp = _round_up(B, TB)

    # Inputs: x padded directly in bf16 (one pass), eps shifted into lanes [L:2L).
    x_p = _pad2d(x.astype(jnp.bfloat16), Bp, Dp)
    eps_p = jnp.pad(eps.astype(jnp.float32), ((0, Bp - B), (L, Lp - 2 * L)))

    # Weights/biases never change across grid steps -> single-buffered.
    const = lambda shape: pl.BlockSpec(
        shape, lambda i: (0, 0), pipeline_mode=pl.Buffered(1))
    batched = lambda cols: pl.BlockSpec((TB, cols), lambda i: (i, 0))

    out_shapes = (
        jax.ShapeDtypeStruct((Bp, Dp), jnp.bfloat16),  # x_recon (padded, bf16)
        jax.ShapeDtypeStruct((Bp, Lp), jnp.float32),   # packed [mu | logvar]
    )

    kernel = functools.partial(vae_kernel, latent_dim=latent_dim)

    xrec_p, ml_p = pl.pallas_call(
        kernel,
        out_shape=out_shapes,
        grid_spec=pltpu.PrefetchScalarGridSpec(
            num_scalar_prefetch=0,
            grid=(Bp // TB,),
            in_specs=[
                batched(Dp),                      # x
                batched(Lp),                      # eps (lane-shifted)
                const((Dp, Hp)), const((1, Hp)),  # enc fc1
                const((Hp, Hp)), const((1, Hp)),  # enc fc2
                const((Hp, Lp)), const((1, Lp)),  # enc fc_mu || fc_logvar (fused)
                const((Lp, Hp)), const((1, Hp)),  # dec fc1 (rows duplicated)
                const((Hp, Hp)), const((1, Hp)),  # dec fc2
                const((Hp, Dp)), const((1, Dp)),  # dec fc_out
            ],
            out_specs=[batched(Dp), batched(Lp)],
        ),
        compiler_params=pltpu.CompilerParams(
            dimension_semantics=("parallel",),    # batch tiles -> megacore on v7x
            vmem_limit_bytes=32 << 20,            # working set ~10-16 MiB
        ),
    )(
        x_p, eps_p,
        padded["w1e"], padded["b1e"], padded["w2e"], padded["b2e"],
        padded["wml"], padded["bml"],
        padded["w1d"], padded["b1d"], padded["w2d"], padded["b2d"],
        padded["wout"], padded["bout"],
    )

    x_recon = xrec_p[:B, :input_dim]          # bf16
    mu = ml_p[:B, :L]                         # f32
    logvar = ml_p[:B, L:2 * L]                # f32
    return x_recon, mu, logvar


# ----------------------------------------------------------------------------
# Init + reference
# ----------------------------------------------------------------------------
def init_params(key, input_dim, hidden_dim, latent_dim):
    """Deterministic init mimicking torch.nn.Linear default (uniform ±1/sqrt(fan_in))."""
    def linear(k, fan_in, fan_out):
        kw, kb = jax.random.split(k)
        bound = 1.0 / jnp.sqrt(fan_in)
        w = jax.random.uniform(kw, (fan_in, fan_out), jnp.float32, -bound, bound)
        b = jax.random.uniform(kb, (fan_out,), jnp.float32, -bound, bound)
        return w, b

    keys = jax.random.split(key, 7)
    p = {}
    p["enc_w1"], p["enc_b1"] = linear(keys[0], input_dim, hidden_dim)
    p["enc_w2"], p["enc_b2"] = linear(keys[1], hidden_dim, hidden_dim)
    p["enc_wmu"], p["enc_bmu"] = linear(keys[2], hidden_dim, latent_dim)
    p["enc_wlv"], p["enc_blv"] = linear(keys[3], hidden_dim, latent_dim)
    p["dec_w1"], p["dec_b1"] = linear(keys[4], latent_dim, hidden_dim)
    p["dec_w2"], p["dec_b2"] = linear(keys[5], hidden_dim, hidden_dim)
    p["dec_wout"], p["dec_bout"] = linear(keys[6], hidden_dim, input_dim)
    return p


def vae_reference(x, eps, params, *, bf16_weights=True):
    """Pure-JAX reference of the PyTorch forward (optionally mimicking the
    kernel's bf16 weight/activation storage with f32 accumulation)."""
    def maybe_bf16(a):
        return a.astype(jnp.bfloat16).astype(jnp.float32) if bf16_weights else a

    def dense(a, w, b):
        return maybe_bf16(a) @ maybe_bf16(w) + b

    relu = lambda v: jnp.maximum(v, 0.0)
    h = relu(dense(x, params["enc_w1"], params["enc_b1"]))
    h = relu(dense(h, params["enc_w2"], params["enc_b2"]))
    mu = dense(h, params["enc_wmu"], params["enc_bmu"])
    logvar = dense(h, params["enc_wlv"], params["enc_blv"])
    z = mu + eps * jnp.exp(0.5 * logvar)
    d = relu(dense(z, params["dec_w1"], params["dec_b1"]))
    d = relu(dense(d, params["dec_w2"], params["dec_b2"]))
    x_recon = jax.nn.sigmoid(dense(d, params["dec_wout"], params["dec_bout"]))
    return x_recon, mu, logvar


if __name__ == "__main__":
    key = jax.random.PRNGKey(0)
    k_params, k_x, k_eps = jax.random.split(key, 3)

    B = 4
    params = init_params(k_params, INPUT_DIM, HIDDEN_DIM, LATENT_DIM)
    padded = pad_params(
        params, input_dim=INPUT_DIM, hidden_dim=HIDDEN_DIM, latent_dim=LATENT_DIM
    )
    padded = jax.tree_util.tree_map(jax.block_until_ready, padded)  # pad once, up front

    x = jax.random.normal(k_x, (B, INPUT_DIM), jnp.float32)
    # torch.randn_like(std) equivalent — drawn deterministically outside the kernel.
    eps = jax.random.normal(k_eps, (B, LATENT_DIM), jnp.float32)

    x_recon, mu, logvar = vae_forward(
        x, eps, padded,
        input_dim=INPUT_DIM, hidden_dim=HIDDEN_DIM, latent_dim=LATENT_DIM,
    )
    jax.block_until_ready((x_recon, mu, logvar))

    # Sanity check vs pure-JAX reference (bf16-weight mimic; tolerance reflects
    # the intentional bf16 weight/output storage, not a kernel bug).
    xr_ref, mu_ref, lv_ref = vae_reference(x, eps, params, bf16_weights=True)
    assert x_recon.shape == (B, INPUT_DIM) and mu.shape == (B, LATENT_DIM)
    assert logvar.shape == (B, LATENT_DIM)
    assert x_recon.dtype == jnp.bfloat16
    assert jnp.allclose(x_recon.astype(jnp.float32), xr_ref, atol=2e-2, rtol=2e-2)
    assert jnp.allclose(mu, mu_ref, atol=2e-2, rtol=2e-2)
    assert jnp.allclose(logvar, lv_ref, atol=2e-2, rtol=2e-2)

    print("KERNEL_OK")
</pallas_src>

<mosaic_0001>
module attributes {stable_mosaic.version = 11 : i64} {
  func.func @vae_kernel(%arg0: i32, %arg1: memref<8x896xbf16, #tpu.memory_space<vmem>>, %arg2: memref<8x128xf32, #tpu.memory_space<vmem>>, %arg3: memref<896x512xbf16, #tpu.memory_space<vmem>>, %arg4: memref<1x512xf32, #tpu.memory_space<vmem>>, %arg5: memref<512x512xbf16, #tpu.memory_space<vmem>>, %arg6: memref<1x512xf32, #tpu.memory_space<vmem>>, %arg7: memref<512x128xbf16, #tpu.memory_space<vmem>>, %arg8: memref<1x128xf32, #tpu.memory_space<vmem>>, %arg9: memref<128x512xbf16, #tpu.memory_space<vmem>>, %arg10: memref<1x512xf32, #tpu.memory_space<vmem>>, %arg11: memref<512x512xbf16, #tpu.memory_space<vmem>>, %arg12: memref<1x512xf32, #tpu.memory_space<vmem>>, %arg13: memref<512x896xbf16, #tpu.memory_space<vmem>>, %arg14: memref<1x896xf32, #tpu.memory_space<vmem>>, %arg15: memref<8x896xbf16, #tpu.memory_space<vmem>>, %arg16: memref<8x128xf32, #tpu.memory_space<vmem>>) attributes {dimension_semantics = [#tpu.dimension_semantics<parallel>], iteration_bounds = array<i64: 1>, scalar_prefetch = 0 : i64, scratch_operands = 0 : i64, tpu.core_type = #tpu.core_type<tc>, window_params = [{transform_indices = @transform_0, window_bounds = array<i64: 8, 896>}, {transform_indices = @transform_1, window_bounds = array<i64: 8, 128>}, {pipeline_mode = #tpu.pipeline_mode<synchronous>, transform_indices = @transform_2, window_bounds = array<i64: 896, 512>}, {pipeline_mode = #tpu.pipeline_mode<synchronous>, transform_indices = @transform_3, window_bounds = array<i64: 1, 512>}, {pipeline_mode = #tpu.pipeline_mode<synchronous>, transform_indices = @transform_4, window_bounds = array<i64: 512, 512>}, {pipeline_mode = #tpu.pipeline_mode<synchronous>, transform_indices = @transform_5, window_bounds = array<i64: 1, 512>}, {pipeline_mode = #tpu.pipeline_mode<synchronous>, transform_indices = @transform_6, window_bounds = array<i64: 512, 128>}, {pipeline_mode = #tpu.pipeline_mode<synchronous>, transform_indices = @transform_7, window_bounds = array<i64: 1, 128>}, {pipeline_mode = #tpu.pipeline_mode<synchronous>, transform_indices = @transform_8, window_bounds = array<i64: 128, 512>}, {pipeline_mode = #tpu.pipeline_mode<synchronous>, transform_indices = @transform_9, window_bounds = array<i64: 1, 512>}, {pipeline_mode = #tpu.pipeline_mode<synchronous>, transform_indices = @transform_10, window_bounds = array<i64: 512, 512>}, {pipeline_mode = #tpu.pipeline_mode<synchronous>, transform_indices = @transform_11, window_bounds = array<i64: 1, 512>}, {pipeline_mode = #tpu.pipeline_mode<synchronous>, transform_indices = @transform_12, window_bounds = array<i64: 512, 896>}, {pipeline_mode = #tpu.pipeline_mode<synchronous>, transform_indices = @transform_13, window_bounds = array<i64: 1, 896>}, {transform_indices = @transform_14, window_bounds = array<i64: 8, 896>}, {transform_indices = @transform_15, window_bounds = array<i64: 8, 128>}]} {
    %c0 = arith.constant 0 : index
    %c0_0 = arith.constant 0 : index
    %0 = vector.load %arg1[%c0, %c0_0] : memref<8x896xbf16, #tpu.memory_space<vmem>>, vector<8x896xbf16>
    %c0_1 = arith.constant 0 : index
    %c0_2 = arith.constant 0 : index
    %1 = vector.load %arg3[%c0_1, %c0_2] : memref<896x512xbf16, #tpu.memory_space<vmem>>, vector<896x512xbf16>
    %cst = arith.constant dense<0.000000e+00> : vector<8x512xf32>
    %2 = tpu.matmul %0, %1, %cst {dimension_numbers = #tpu.dot_dimension_numbers<[1], [0], [0], [1], [0, 0, 1, 1], [], []>} : vector<8x896xbf16>, vector<896x512xbf16>, vector<8x512xf32> -> vector<8x512xf32>
    %c0_3 = arith.constant 0 : index
    %c0_4 = arith.constant 0 : index
    %3 = vector.load %arg4[%c0_3, %c0_4] : memref<1x512xf32, #tpu.memory_space<vmem>>, vector<1x512xf32>
    %4 = vector.broadcast %3 : vector<1x512xf32> to vector<8x512xf32>
    %5 = arith.addf %2, %4 : vector<8x512xf32>
    %cst_5 = arith.constant 0.000000e+00 : f32
    %6 = vector.broadcast %cst_5 : f32 to vector<8x512xf32>
    %7 = arith.maximumf %5, %6 : vector<8x512xf32>
    %8 = arith.truncf %7 : vector<8x512xf32> to vector<8x512xbf16>
    %c0_6 = arith.constant 0 : index
    %c0_7 = arith.constant 0 : index
    %9 = vector.load %arg5[%c0_6, %c0_7] : memref<512x512xbf16, #tpu.memory_space<vmem>>, vector<512x512xbf16>
    %cst_8 = arith.constant dense<0.000000e+00> : vector<8x512xf32>
    %10 = tpu.matmul %8, %9, %cst_8 {dimension_numbers = #tpu.dot_dimension_numbers<[1], [0], [0], [1], [0, 0, 1, 1], [], []>} : vector<8x512xbf16>, vector<512x512xbf16>, vector<8x512xf32> -> vector<8x512xf32>
    %c0_9 = arith.constant 0 : index
    %c0_10 = arith.constant 0 : index
    %11 = vector.load %arg6[%c0_9, %c0_10] : memref<1x512xf32, #tpu.memory_space<vmem>>, vector<1x512xf32>
    %12 = vector.broadcast %11 : vector<1x512xf32> to vector<8x512xf32>
    %13 = arith.addf %10, %12 : vector<8x512xf32>
    %cst_11 = arith.constant 0.000000e+00 : f32
    %14 = vector.broadcast %cst_11 : f32 to vector<8x512xf32>
    %15 = arith.maximumf %13, %14 : vector<8x512xf32>
    %16 = arith.truncf %15 : vector<8x512xf32> to vector<8x512xbf16>
    %c0_12 = arith.constant 0 : index
    %c0_13 = arith.constant 0 : index
    %17 = vector.load %arg7[%c0_12, %c0_13] : memref<512x128xbf16, #tpu.memory_space<vmem>>, vector<512x128xbf16>
    %cst_14 = arith.constant dense<0.000000e+00> : vector<8x128xf32>
    %18 = tpu.matmul %16, %17, %cst_14 {dimension_numbers = #tpu.dot_dimension_numbers<[1], [0], [0], [1], [0, 0, 1, 1], [], []>} : vector<8x512xbf16>, vector<512x128xbf16>, vector<8x128xf32> -> vector<8x128xf32>
    %c0_15 = arith.constant 0 : index
    %c0_16 = arith.constant 0 : index
    %19 = vector.load %arg8[%c0_15, %c0_16] : memref<1x128xf32, #tpu.memory_space<vmem>>, vector<1x128xf32>
    %20 = vector.broadcast %19 : vector<1x128xf32> to vector<8x128xf32>
    %21 = arith.addf %18, %20 : vector<8x128xf32>
    %c0_17 = arith.constant 0 : index
    %c0_18 = arith.constant 0 : index
    %22 = vector.load %arg16[%c0_17, %c0_18] : memref<8x128xf32, #tpu.memory_space<vmem>>, vector<8x128xf32>
    tpu.vector_store %arg16[%c0_17, %c0_18], %21 {strides = array<i32>} : memref<8x128xf32, #tpu.memory_space<vmem>>, vector<8x128xf32>,
    %23 = tpu.iota {dimensions = array<i32: 1>} : vector<8x128xi32>
    %c2_i32 = arith.constant 2 : i32
    %24 = vector.broadcast %c2_i32 : i32 to vector<8x128xi32>
    %25 = arith.cmpi slt, %23, %24 : vector<8x128xi32>
    %cst_19 = arith.constant 0.000000e+00 : f32
    %26 = vector.broadcast %cst_19 : f32 to vector<8x128xf32>
    %27 = arith.select %25, %21, %26 : vector<8x128xi1>, vector<8x128xf32>
    %cst_20 = arith.constant 0.000000e+00 : f32
    %28 = vector.broadcast %cst_20 : f32 to vector<8x128xf32>
    %29 = arith.select %25, %28, %21 : vector<8x128xi1>, vector<8x128xf32>
    %c0_21 = arith.constant 0 : index
    %c0_22 = arith.constant 0 : index
    %30 = vector.load %arg2[%c0_21, %c0_22] : memref<8x128xf32, #tpu.memory_space<vmem>>, vector<8x128xf32>
    %cst_23 = arith.constant 5.000000e-01 : f32
    %31 = vector.broadcast %cst_23 : f32 to vector<8x128xf32>
    %32 = arith.mulf %31, %29 : vector<8x128xf32>
    %33 = math.exp %32 : vector<8x128xf32>
    %34 = arith.mulf %30, %33 : vector<8x128xf32>
    %35 = arith.addf %27, %34 : vector<8x128xf32>
    %36 = arith.truncf %35 : vector<8x128xf32> to vector<8x128xbf16>
    %c0_24 = arith.constant 0 : index
    %c0_25 = arith.constant 0 : index
    %37 = vector.load %arg9[%c0_24, %c0_25] : memref<128x512xbf16, #tpu.memory_space<vmem>>, vector<128x512xbf16>
    %cst_26 = arith.constant dense<0.000000e+00> : vector<8x512xf32>
    %38 = tpu.matmul %36, %37, %cst_26 {dimension_numbers = #tpu.dot_dimension_numbers<[1], [0], [0], [1], [0, 0, 1, 1], [], []>} : vector<8x128xbf16>, vector<128x512xbf16>, vector<8x512xf32> -> vector<8x512xf32>
    %c0_27 = arith.constant 0 : index
    %c0_28 = arith.constant 0 : index
    %39 = vector.load %arg10[%c0_27, %c0_28] : memref<1x512xf32, #tpu.memory_space<vmem>>, vector<1x512xf32>
    %40 = vector.broadcast %39 : vector<1x512xf32> to vector<8x512xf32>
    %41 = arith.addf %38, %40 : vector<8x512xf32>
    %cst_29 = arith.constant 0.000000e+00 : f32
    %42 = vector.broadcast %cst_29 : f32 to vector<8x512xf32>
    %43 = arith.maximumf %41, %42 : vector<8x512xf32>
    %44 = arith.truncf %43 : vector<8x512xf32> to vector<8x512xbf16>
    %c0_30 = arith.constant 0 : index
    %c0_31 = arith.constant 0 : index
    %45 = vector.load %arg11[%c0_30, %c0_31] : memref<512x512xbf16, #tpu.memory_space<vmem>>, vector<512x512xbf16>
    %cst_32 = arith.constant dense<0.000000e+00> : vector<8x512xf32>
    %46 = tpu.matmul %44, %45, %cst_32 {dimension_numbers = #tpu.dot_dimension_numbers<[1], [0], [0], [1], [0, 0, 1, 1], [], []>} : vector<8x512xbf16>, vector<512x512xbf16>, vector<8x512xf32> -> vector<8x512xf32>
    %c0_33 = arith.constant 0 : index
    %c0_34 = arith.constant 0 : index
    %47 = vector.load %arg12[%c0_33, %c0_34] : memref<1x512xf32, #tpu.memory_space<vmem>>, vector<1x512xf32>
    %48 = vector.broadcast %47 : vector<1x512xf32> to vector<8x512xf32>
    %49 = arith.addf %46, %48 : vector<8x512xf32>
    %cst_35 = arith.constant 0.000000e+00 : f32
    %50 = vector.broadcast %cst_35 : f32 to vector<8x512xf32>
    %51 = arith.maximumf %49, %50 : vector<8x512xf32>
    %52 = arith.truncf %51 : vector<8x512xf32> to vector<8x512xbf16>
    %c0_36 = arith.constant 0 : index
    %c0_37 = arith.constant 0 : index
    %53 = vector.load %arg13[%c0_36, %c0_37] : memref<512x896xbf16, #tpu.memory_space<vmem>>, vector<512x896xbf16>
    %cst_38 = arith.constant dense<0.000000e+00> : vector<8x896xf32>
    %54 = tpu.matmul %52, %53, %cst_38 {dimension_numbers = #tpu.dot_dimension_numbers<[1], [0], [0], [1], [0, 0, 1, 1], [], []>} : vector<8x512xbf16>, vector<512x896xbf16>, vector<8x896xf32> -> vector<8x896xf32>
    %c0_39 = arith.constant 0 : index
    %c0_40 = arith.constant 0 : index
    %55 = vector.load %arg14[%c0_39, %c0_40] : memref<1x896xf32, #tpu.memory_space<vmem>>, vector<1x896xf32>
    %56 = vector.broadcast %55 : vector<1x896xf32> to vector<8x896xf32>
    %57 = arith.addf %54, %56 : vector<8x896xf32>
    %58 = arith.negf %57 : vector<8x896xf32>
    %59 = math.exp %58 : vector<8x896xf32>
    %cst_41 = arith.constant 1.000000e+00 : f32
    %60 = vector.broadcast %cst_41 : f32 to vector<8x896xf32>
    %61 = arith.addf %60, %59 : vector<8x896xf32>
    %62 = arith.divf %60, %61 : vector<8x896xf32>
    %63 = arith.truncf %62 : vector<8x896xf32> to vector<8x896xbf16>
    %c0_42 = arith.constant 0 : index
    %c0_43 = arith.constant 0 : index
    %64 = vector.load %arg15[%c0_42, %c0_43] : memref<8x896xbf16, #tpu.memory_space<vmem>>, vector<8x896xbf16>
    tpu.vector_store %arg15[%c0_42, %c0_43], %63 {strides = array<i32>} : memref<8x896xbf16, #tpu.memory_space<vmem>>, vector<8x896xbf16>,
    return
  }
  func.func @transform_0(%arg0: i32) -> (i32, i32) {
    %c0_i32 = arith.constant 0 : i32
    %c0_i32_0 = arith.constant 0 : i32
    return %arg0, %c0_i32 : i32, i32
  }
  func.func @transform_1(%arg0: i32) -> (i32, i32) {
    %c0_i32 = arith.constant 0 : i32
    %c0_i32_0 = arith.constant 0 : i32
    return %arg0, %c0_i32 : i32, i32
  }
  func.func @transform_2(%arg0: i32) -> (i32, i32) {
    %c0_i32 = arith.constant 0 : i32
    %c0_i32_0 = arith.constant 0 : i32
    %c0_i32_1 = arith.constant 0 : i32
    return %c0_i32, %c0_i32_0 : i32, i32
  }
  func.func @transform_3(%arg0: i32) -> (i32, i32) {
    %c0_i32 = arith.constant 0 : i32
    %c0_i32_0 = arith.constant 0 : i32
    %c0_i32_1 = arith.constant 0 : i32
    return %c0_i32, %c0_i32_0 : i32, i32
  }
  func.func @transform_4(%arg0: i32) -> (i32, i32) {
    %c0_i32 = arith.constant 0 : i32
    %c0_i32_0 = arith.constant 0 : i32
    %c0_i32_1 = arith.constant 0 : i32
    return %c0_i32, %c0_i32_0 : i32, i32
  }
  func.func @transform_5(%arg0: i32) -> (i32, i32) {
    %c0_i32 = arith.constant 0 : i32
    %c0_i32_0 = arith.constant 0 : i32
    %c0_i32_1 = arith.constant 0 : i32
    return %c0_i32, %c0_i32_0 : i32, i32
  }
  func.func @transform_6(%arg0: i32) -> (i32, i32) {
    %c0_i32 = arith.constant 0 : i32
    %c0_i32_0 = arith.constant 0 : i32
    %c0_i32_1 = arith.constant 0 : i32
    return %c0_i32, %c0_i32_0 : i32, i32
  }
  func.func @transform_7(%arg0: i32) -> (i32, i32) {
    %c0_i32 = arith.constant 0 : i32
    %c0_i32_0 = arith.constant 0 : i32
    %c0_i32_1 = arith.constant 0 : i32
    return %c0_i32, %c0_i32_0 : i32, i32
  }
  func.func @transform_8(%arg0: i32) -> (i32, i32) {
    %c0_i32 = arith.constant 0 : i32
    %c0_i32_0 = arith.constant 0 : i32
    %c0_i32_1 = arith.constant 0 : i32
    return %c0_i32, %c0_i32_0 : i32, i32
  }
  func.func @transform_9(%arg0: i32) -> (i32, i32) {
    %c0_i32 = arith.constant 0 : i32
    %c0_i32_0 = arith.constant 0 : i32
    %c0_i32_1 = arith.constant 0 : i32
    return %c0_i32, %c0_i32_0 : i32, i32
  }
  func.func @transform_10(%arg0: i32) -> (i32, i32) {
    %c0_i32 = arith.constant 0 : i32
    %c0_i32_0 = arith.constant 0 : i32
    %c0_i32_1 = arith.constant 0 : i32
    return %c0_i32, %c0_i32_0 : i32, i32
  }
  func.func @transform_11(%arg0: i32) -> (i32, i32) {
    %c0_i32 = arith.constant 0 : i32
    %c0_i32_0 = arith.constant 0 : i32
    %c0_i32_1 = arith.constant 0 : i32
    return %c0_i32, %c0_i32_0 : i32, i32
  }
  func.func @transform_12(%arg0: i32) -> (i32, i32) {
    %c0_i32 = arith.constant 0 : i32
    %c0_i32_0 = arith.constant 0 : i32
    %c0_i32_1 = arith.constant 0 : i32
    return %c0_i32, %c0_i32_0 : i32, i32
  }
  func.func @transform_13(%arg0: i32) -> (i32, i32) {
    %c0_i32 = arith.constant 0 : i32
    %c0_i32_0 = arith.constant 0 : i32
    %c0_i32_1 = arith.constant 0 : i32
    return %c0_i32, %c0_i32_0 : i32, i32
  }
  func.func @transform_14(%arg0: i32) -> (i32, i32) {
    %c0_i32 = arith.constant 0 : i32
    %c0_i32_0 = arith.constant 0 : i32
    return %arg0, %c0_i32 : i32, i32
  }
  func.func @transform_15(%arg0: i32) -> (i32, i32) {
    %c0_i32 = arith.constant 0 : i32
    %c0_i32_0 = arith.constant 0 : i32
    return %arg0, %c0_i32 : i32, i32
  }
}

</mosaic_0001>

<llo_original>
// kernel: vae_forward.1
$region0: #{vae_forward.1}
  #allocation0 [shape = 'u32[]', space=smem, size = 0x4, offset = 0x4, fixed_abs, tag = 'smem constant byte address 0x4 - core index']
  #allocation1 [shape = 'u32[144,128]{1,0:T(1,128)}', space=vmem, size = 0x12000, scoped, tag = 'internal scratch']
  %s0 = inlined_call_operand.vmem [shape: bf16[8,896], index: 0, kind: input, shape index: {}]
  %s1 = inlined_call_operand.vmem [shape: f32[8,128], index: 1, kind: input, shape index: {}]
  %s2 = inlined_call_operand.hbm [shape: bf16[896,512], index: 2, kind: input, shape index: {}]
  %s3 = inlined_call_operand.vmem [shape: f32[1,512], index: 3, kind: input, shape index: {}]
  %s4 = inlined_call_operand.hbm [shape: bf16[512,512], index: 4, kind: input, shape index: {}]
  %s5 = inlined_call_operand.vmem [shape: f32[1,512], index: 5, kind: input, shape index: {}]
  %s6 = inlined_call_operand.hbm [shape: bf16[512,128], index: 6, kind: input, shape index: {}]
  %s7 = inlined_call_operand.vmem [shape: f32[1,128], index: 7, kind: input, shape index: {}]
  %s8 = inlined_call_operand.hbm [shape: bf16[128,512], index: 8, kind: input, shape index: {}]
  %s9 = inlined_call_operand.vmem [shape: f32[1,512], index: 9, kind: input, shape index: {}]
  %s10 = inlined_call_operand.hbm [shape: bf16[512,512], index: 10, kind: input, shape index: {}]
  %s11 = inlined_call_operand.vmem [shape: f32[1,512], index: 11, kind: input, shape index: {}]
  %s12 = inlined_call_operand.hbm [shape: bf16[512,896], index: 12, kind: input, shape index: {}]
  %s13 = inlined_call_operand.vmem [shape: f32[1,896], index: 13, kind: input, shape index: {}]
  %s14 = inlined_call_operand.vmem [shape: bf16[8,896], index: 14, kind: output, shape index: {0}]
  %s15 = inlined_call_operand.vmem [shape: f32[8,128], index: 15, kind: output, shape index: {1}]
  %16 = xla_tuple %s14, %s15
  %s17 = sld [smem:[#allocation0]]
  $region98: #{vae_forward.1} parent=0
    _
  %s19 = ssub.s32 1, %s17
  %s20 = scalar_select 0, %s19, %s17
  $region1: #{vae_forward.1} parent=0
    #allocation2 [shape = 'u8[917504]{0}', space=vmem, size = 0xe0000, scoped, tag = 'input window, operand 2, single buffered']
    #allocation3 [shape = 's32[1]{0}', space=sflag, size = 0x4, scoped, tag = 'scoped memory for vae_forward.1']
    #allocation4 [shape = 'u8[524288]{0}', space=vmem, size = 0x80000, scoped, tag = 'input window, operand 4, single buffered']
    #allocation5 [shape = 's32[1]{0}', space=sflag, size = 0x4, scoped, tag = 'scoped memory for vae_forward.1']
    #allocation6 [shape = 'u8[131072]{0}', space=vmem, size = 0x20000, scoped, tag = 'input window, operand 6, single buffered']
    #allocation7 [shape = 'u8[131072]{0}', space=vmem, size = 0x20000, scoped, tag = 'input window, operand 8, single buffered']
    #allocation8 [shape = 's32[1]{0}', space=sflag, size = 0x4, scoped, tag = 'scoped memory for vae_forward.1']
    #allocation9 [shape = 'u8[524288]{0}', space=vmem, size = 0x80000, scoped, tag = 'input window, operand 10, single buffered']
    #allocation10 [shape = 'u8[917504]{0}', space=vmem, size = 0xe0000, scoped, tag = 'input window, operand 12, single buffered']
    #allocation11 [shape = 's32[1]{0}', space=sflag, size = 0x4, scoped, tag = 'scoped memory for vae_forward.1']
    %21 = vsyncpa [#allocation3], 0
    %22 = vsyncpa [#allocation5], 0
    %23 = vsyncpa [#allocation8], 0
    %24 = vsyncpa [#allocation11], 0
    // Predicated region
    $region2: #{vae_forward.1} parent=1 // pred_check
      _
    $region3: #{vae_forward.1} parent=1 // pred_check_branch
      %26 = sbr.rel (0) target = $region5
    $region4: #{vae_forward.1} parent=1 // pred_region
      _
    $region5: #{vae_forward.1} parent=1 // pred_fallthru
      _
    // Predicated region
    $region6: #{vae_forward.1} parent=1 // pred_check
      _
    $region7: #{vae_forward.1} parent=1 // pred_check_branch
      %28 = sbr.rel (0) target = $region9
    $region8: #{vae_forward.1} parent=1 // pred_region
      _
    $region9: #{vae_forward.1} parent=1 // pred_fallthru
      _
    // Predicated region
    $region10: #{vae_forward.1} parent=1 // pred_check
      _
    $region11: #{vae_forward.1} parent=1 // pred_check_branch
      %30 = sbr.rel (0) target = $region13
    $region12: #{vae_forward.1} parent=1 // pred_region
      %s32 = ssub.s32 28672, 28672
      %33 = vsyncadd [#allocation3], %s32
      %s34 = sshll.u32 [#allocation2], 4
      %s35 = int_to_ptr.vmem [resolvable:$true] %s34
      %40 = dma.hbm_to_vmem [thread:$0]  %s2, 28672, %s35, [#allocation3], 256, 256, 16
    $region13: #{vae_forward.1} parent=1 // pred_fallthru
      _
    // Predicated region
    $region14: #{vae_forward.1} parent=1 // pred_check
      _
    $region15: #{vae_forward.1} parent=1 // pred_check_branch
      %42 = sbr.rel (0) target = $region17
    $region16: #{vae_forward.1} parent=1 // pred_region
      _
    $region17: #{vae_forward.1} parent=1 // pred_fallthru
      _
    // Predicated region
    $region18: #{vae_forward.1} parent=1 // pred_check
      _
    $region19: #{vae_forward.1} parent=1 // pred_check_branch
      %44 = sbr.rel (0) target = $region21
    $region20: #{vae_forward.1} parent=1 // pred_region
      %s46 = ssub.s32 16384, 16384
      %47 = vsyncadd [#allocation5], %s46
      %s48 = sshll.u32 [#allocation4], 4
      %s49 = int_to_ptr.vmem [resolvable:$true] %s48
      %54 = dma.hbm_to_vmem [thread:$0]  %s4, 16384, %s49, [#allocation5], 256, 256, 16
    $region21: #{vae_forward.1} parent=1 // pred_fallthru
      _
    // Predicated region
    $region22: #{vae_forward.1} parent=1 // pred_check
      _
    $region23: #{vae_forward.1} parent=1 // pred_check_branch
      %56 = sbr.rel (0) target = $region25
    $region24: #{vae_forward.1} parent=1 // pred_region
      _
    $region25: #{vae_forward.1} parent=1 // pred_fallthru
      _
    // Predicated region
    $region26: #{vae_forward.1} parent=1 // pred_check
      _
    $region27: #{vae_forward.1} parent=1 // pred_check_branch
      %58 = sbr.rel (0) target = $region29
    $region28: #{vae_forward.1} parent=1 // pred_region
      %s60 = ssub.s32 4096, 4096
      %61 = vsyncadd [#allocation5], %s60
      %s62 = sshll.u32 [#allocation6], 4
      %s63 = int_to_ptr.vmem [resolvable:$true] %s62
      %68 = dma.hbm_to_vmem [thread:$0]  %s6, 4096, %s63, [#allocation5], 64, 64, 4
    $region29: #{vae_forward.1} parent=1 // pred_fallthru
      _
    // Predicated region
    $region30: #{vae_forward.1} parent=1 // pred_check
      _
    $region31: #{vae_forward.1} parent=1 // pred_check_branch
      %70 = sbr.rel (0) target = $region33
    $region32: #{vae_forward.1} parent=1 // pred_region
      _
    $region33: #{vae_forward.1} parent=1 // pred_fallthru
      _
    // Predicated region
    $region34: #{vae_forward.1} parent=1 // pred_check
      _
    $region35: #{vae_forward.1} parent=1 // pred_check_branch
      %72 = sbr.rel (0) target = $region37
    $region36: #{vae_forward.1} parent=1 // pred_region
      %s74 = ssub.s32 4096, 4096
      %75 = vsyncadd [#allocation8], %s74
      %s76 = sshll.u32 [#allocation7], 4
      %s77 = int_to_ptr.vmem [resolvable:$true] %s76
      %82 = dma.hbm_to_vmem [thread:$0]  %s8, 4096, %s77, [#allocation8], 256, 256, 16
    $region37: #{vae_forward.1} parent=1 // pred_fallthru
      _
    // Predicated region
    $region38: #{vae_forward.1} parent=1 // pred_check
      _
    $region39: #{vae_forward.1} parent=1 // pred_check_branch
      %84 = sbr.rel (0) target = $region41
    $region40: #{vae_forward.1} parent=1 // pred_region
      _
    $region41: #{vae_forward.1} parent=1 // pred_fallthru
      _
    // Predicated region
    $region42: #{vae_forward.1} parent=1 // pred_check
      _
    $region43: #{vae_forward.1} parent=1 // pred_check_branch
      %86 = sbr.rel (0) target = $region45
    $region44: #{vae_forward.1} parent=1 // pred_region
      %s88 = ssub.s32 16384, 16384
      %89 = vsyncadd [#allocation8], %s88
      %s90 = sshll.u32 [#allocation9], 4
      %s91 = int_to_ptr.vmem [resolvable:$true] %s90
      %96 = dma.hbm_to_vmem [thread:$0]  %s10, 16384, %s91, [#allocation8], 256, 256, 16
    $region45: #{vae_forward.1} parent=1 // pred_fallthru
      _
    // Predicated region
    $region46: #{vae_forward.1} parent=1 // pred_check
      _
    $region47: #{vae_forward.1} parent=1 // pred_check_branch
      %98 = sbr.rel (0) target = $region49
    $region48: #{vae_forward.1} parent=1 // pred_region
      _
    $region49: #{vae_forward.1} parent=1 // pred_fallthru
      _
    // Predicated region
    $region50: #{vae_forward.1} parent=1 // pred_check
      _
    $region51: #{vae_forward.1} parent=1 // pred_check_branch
      %100 = sbr.rel (0) target = $region53
    $region52: #{vae_forward.1} parent=1 // pred_region
      %s102 = ssub.s32 28672, 28672
      %103 = vsyncadd [#allocation11], %s102
      %s104 = sshll.u32 [#allocation10], 4
      %s105 = int_to_ptr.vmem [resolvable:$true] %s104
      %110 = dma.hbm_to_vmem [thread:$0]  %s12, 28672, %s105, [#allocation11], 448, 448, 28
    $region53: #{vae_forward.1} parent=1 // pred_fallthru
      _
    // Predicated region
    $region54: #{vae_forward.1} parent=1 // pred_check
      _
    $region55: #{vae_forward.1} parent=1 // pred_check_branch
      %112 = sbr.rel (0) target = $region57
    $region56: #{vae_forward.1} parent=1 // pred_region
      _
    $region57: #{vae_forward.1} parent=1 // pred_fallthru
      _
    // Predicated region
    $region58: #{vae_forward.1} parent=1 // pred_check
      _
    $region59: #{vae_forward.1} parent=1 // pred_check_branch
      %114 = sbr.rel (0) target = $region61
    $region60: #{vae_forward.1} parent=1 // pred_region
      %115 = dma.done [#allocation3], 28672
    $region61: #{vae_forward.1} parent=1 // pred_fallthru
      _
    // Predicated region
    $region62: #{vae_forward.1} parent=1 // pred_check
      _
    $region63: #{vae_forward.1} parent=1 // pred_check_branch
      %117 = sbr.rel (0) target = $region65
    $region64: #{vae_forward.1} parent=1 // pred_region
      %118 = dma.done [#allocation5], 16384
    $region65: #{vae_forward.1} parent=1 // pred_fallthru
      _
    // Predicated region
    $region66: #{vae_forward.1} parent=1 // pred_check
      _
    $region67: #{vae_forward.1} parent=1 // pred_check_branch
      %120 = sbr.rel (0) target = $region69
    $region68: #{vae_forward.1} parent=1 // pred_region
      %121 = dma.done [#allocation5], 4096
    $region69: #{vae_forward.1} parent=1 // pred_fallthru
      _
    // Predicated region
    $region70: #{vae_forward.1} parent=1 // pred_check
      _
    $region71: #{vae_forward.1} parent=1 // pred_check_branch
      %123 = sbr.rel (0) target = $region73
    $region72: #{vae_forward.1} parent=1 // pred_region
      %124 = dma.done [#allocation8], 4096
    $region73: #{vae_forward.1} parent=1 // pred_fallthru
      _
    // Predicated region
    $region74: #{vae_forward.1} parent=1 // pred_check
      _
    $region75: #{vae_forward.1} parent=1 // pred_check_branch
      %126 = sbr.rel (0) target = $region77
    $region76: #{vae_forward.1} parent=1 // pred_region
      %127 = dma.done [#allocation8], 16384
    $region77: #{vae_forward.1} parent=1 // pred_fallthru
      _
    // Predicated region
    $region78: #{vae_forward.1} parent=1 // pred_check
      _
    $region79: #{vae_forward.1} parent=1 // pred_check_branch
      %129 = sbr.rel (0) target = $region81
    $region80: #{vae_forward.1} parent=1 // pred_region
      %130 = dma.done [#allocation11], 28672
    $region81: #{vae_forward.1} parent=1 // pred_fallthru
      _
    %v132 = vld [vmem:[%s0] sm:$0xff]
    %v133 = vld [vmem:[%s0 + $0x8] sm:$0xff]
    %v134 = vld [vmem:[%s0 + $0x10] sm:$0xff]
    %v135 = vld [vmem:[%s0 + $0x18] sm:$0xf]
    %v136 = vld [vmem:[#allocation2] sm:$0xff]
    %v137 = vld [vmem:[#allocation2 + $0x8] sm:$0xff]
    %v138 = vld [vmem:[#allocation2 + $0x10] sm:$0xff]
    %v139 = vld [vmem:[#allocation2 + $0x18] sm:$0xff]
    %v140 = vld [vmem:[#allocation2 + $0x20] sm:$0xff]
    %v141 = vld [vmem:[#allocation2 + $0x28] sm:$0xff]
    %v142 = vld [vmem:[#allocation2 + $0x30] sm:$0xff]
    %v143 = vld [vmem:[#allocation2 + $0x38] sm:$0xff]
    %v144 = vld [vmem:[#allocation2 + $0x40] sm:$0xff]
    %v145 = vld [vmem:[#allocation2 + $0x48] sm:$0xff]
    %v146 = vld [vmem:[#allocation2 + $0x50] sm:$0xff]
    %v147 = vld [vmem:[#allocation2 + $0x58] sm:$0xff]
    %v148 = vld [vmem:[#allocation2 + $0x60] sm:$0xff]
    %v149 = vld [vmem:[#allocation2 + $0x68] sm:$0xff]
    %v150 = vld [vmem:[#allocation2 + $0x70] sm:$0xff]
    %v151 = vld [vmem:[#allocation2 + $0x78] sm:$0xff]
    %v152 = vld [vmem:[#allocation2 + $0x80] sm:$0xff]
    %v153 = vld [vmem:[#allocation2 + $0x88] sm:$0xff]
    %v154 = vld [vmem:[#allocation2 + $0x90] sm:$0xff]
    %v155 = vld [vmem:[#allocation2 + $0x98] sm:$0xff]
    %v156 = vld [vmem:[#allocation2 + $0xa0] sm:$0xff]
    %v157 = vld [vmem:[#allocation2 + $0xa8] sm:$0xff]
    %v158 = vld [vmem:[#allocation2 + $0xb0] sm:$0xff]
    %v159 = vld [vmem:[#allocation2 + $0xb8] sm:$0xff]
    %v160 = vld [vmem:[#allocation2 + $0xc0] sm:$0xff]
    %v161 = vld [vmem:[#allocation2 + $0xc8] sm:$0xff]
    %v162 = vld [vmem:[#allocation2 + $0xd0] sm:$0xff]
    %v163 = vld [vmem:[#allocation2 + $0xd8] sm:$0xff]
    %v164 = vld [vmem:[#allocation2 + $0xe0] sm:$0xff]
    %v165 = vld [vmem:[#allocation2 + $0xe8] sm:$0xff]
    %v166 = vld [vmem:[#allocation2 + $0xf0] sm:$0xff]
    %v167 = vld [vmem:[#allocation2 + $0xf8] sm:$0xff]
    %v168 = vld [vmem:[#allocation2 + $0x100] sm:$0xff]
    %v169 = vld [vmem:[#allocation2 + $0x108] sm:$0xff]
    %v170 = vld [vmem:[#allocation2 + $0x110] sm:$0xff]
    %v171 = vld [vmem:[#allocation2 + $0x118] sm:$0xff]
    %v172 = vld [vmem:[#allocation2 + $0x120] sm:$0xff]
    %v173 = vld [vmem:[#allocation2 + $0x128] sm:$0xff]
    %v174 = vld [vmem:[#allocation2 + $0x130] sm:$0xff]
    %v175 = vld [vmem:[#allocation2 + $0x138] sm:$0xff]
    %v176 = vld [vmem:[#allocation2 + $0x140] sm:$0xff]
    %v177 = vld [vmem:[#allocation2 + $0x148] sm:$0xff]
    %v178 = vld [vmem:[#allocation2 + $0x150] sm:$0xff]
    %v179 = vld [vmem:[#allocation2 + $0x158] sm:$0xff]
    %v180 = vld [vmem:[#allocation2 + $0x160] sm:$0xff]
    %v181 = vld [vmem:[#allocation2 + $0x168] sm:$0xff]
    %v182 = vld [vmem:[#allocation2 + $0x170] sm:$0xff]
    %v183 = vld [vmem:[#allocation2 + $0x178] sm:$0xff]
    %v184 = vld [vmem:[#allocation2 + $0x180] sm:$0xff]
    %v185 = vld [vmem:[#allocation2 + $0x188] sm:$0xff]
    %v186 = vld [vmem:[#allocation2 + $0x190] sm:$0xff]
    %v187 = vld [vmem:[#allocation2 + $0x198] sm:$0xff]
    %v188 = vld [vmem:[#allocation2 + $0x1a0] sm:$0xff]
    %v189 = vld [vmem:[#allocation2 + $0x1a8] sm:$0xff]
    %v190 = vld [vmem:[#allocation2 + $0x1b0] sm:$0xff]
    %v191 = vld [vmem:[#allocation2 + $0x1b8] sm:$0xff]
    %v192 = vld [vmem:[#allocation2 + $0x1c0] sm:$0xff]
    %v193 = vld [vmem:[#allocation2 + $0x1c8] sm:$0xff]
    %v194 = vld [vmem:[#allocation2 + $0x1d0] sm:$0xff]
    %v195 = vld [vmem:[#allocation2 + $0x1d8] sm:$0xff]
    %v196 = vld [vmem:[#allocation2 + $0x1e0] sm:$0xff]
    %v197 = vld [vmem:[#allocation2 + $0x1e8] sm:$0xff]
    %v198 = vld [vmem:[#allocation2 + $0x1f0] sm:$0xff]
    %v199 = vld [vmem:[#allocation2 + $0x1f8] sm:$0xff]
    %v200 = vld [vmem:[#allocation2 + $0x200] sm:$0xff]
    %v201 = vld [vmem:[#allocation2 + $0x208] sm:$0xff]
    %v202 = vld [vmem:[#allocation2 + $0x210] sm:$0xff]
    %v203 = vld [vmem:[#allocation2 + $0x218] sm:$0xff]
    %v204 = vld [vmem:[#allocation2 + $0x220] sm:$0xff]
    %v205 = vld [vmem:[#allocation2 + $0x228] sm:$0xff]
    %v206 = vld [vmem:[#allocation2 + $0x230] sm:$0xff]
    %v207 = vld [vmem:[#allocation2 + $0x238] sm:$0xff]
    %v208 = vld [vmem:[#allocation2 + $0x240] sm:$0xff]
    %v209 = vld [vmem:[#allocation2 + $0x248] sm:$0xff]
    %v210 = vld [vmem:[#allocation2 + $0x250] sm:$0xff]
    %v211 = vld [vmem:[#allocation2 + $0x258] sm:$0xff]
    %v212 = vld [vmem:[#allocation2 + $0x260] sm:$0xff]
    %v213 = vld [vmem:[#allocation2 + $0x268] sm:$0xff]
    %v214 = vld [vmem:[#allocation2 + $0x270] sm:$0xff]
    %v215 = vld [vmem:[#allocation2 + $0x278] sm:$0xff]
    %v216 = vld [vmem:[#allocation2 + $0x280] sm:$0xff]
    %v217 = vld [vmem:[#allocation2 + $0x288] sm:$0xff]
    %v218 = vld [vmem:[#allocation2 + $0x290] sm:$0xff]
    %v219 = vld [vmem:[#allocation2 + $0x298] sm:$0xff]
    %v220 = vld [vmem:[#allocation2 + $0x2a0] sm:$0xff]
    %v221 = vld [vmem:[#allocation2 + $0x2a8] sm:$0xff]
    %v222 = vld [vmem:[#allocation2 + $0x2b0] sm:$0xff]
    %v223 = vld [vmem:[#allocation2 + $0x2b8] sm:$0xff]
    %v224 = vld [vmem:[#allocation2 + $0x2c0] sm:$0xff]
    %v225 = vld [vmem:[#allocation2 + $0x2c8] sm:$0xff]
    %v226 = vld [vmem:[#allocation2 + $0x2d0] sm:$0xff]
    %v227 = vld [vmem:[#allocation2 + $0x2d8] sm:$0xff]
    %v228 = vld [vmem:[#allocation2 + $0x2e0] sm:$0xff]
    %v229 = vld [vmem:[#allocation2 + $0x2e8] sm:$0xff]
    %v230 = vld [vmem:[#allocation2 + $0x2f0] sm:$0xff]
    %v231 = vld [vmem:[#allocation2 + $0x2f8] sm:$0xff]
    %v232 = vld [vmem:[#allocation2 + $0x300] sm:$0xff]
    %v233 = vld [vmem:[#allocation2 + $0x308] sm:$0xff]
    %v234 = vld [vmem:[#allocation2 + $0x310] sm:$0xff]
    %v235 = vld [vmem:[#allocation2 + $0x318] sm:$0xff]
    %v236 = vld [vmem:[#allocation2 + $0x320] sm:$0xff]
    %v237 = vld [vmem:[#allocation2 + $0x328] sm:$0xff]
    %v238 = vld [vmem:[#allocation2 + $0x330] sm:$0xff]
    %v239 = vld [vmem:[#allocation2 + $0x338] sm:$0xff]
    %v240 = vld [vmem:[#allocation2 + $0x340] sm:$0xff]
    %v241 = vld [vmem:[#allocation2 + $0x348] sm:$0xff]
    %v242 = vld [vmem:[#allocation2 + $0x350] sm:$0xff]
    %v243 = vld [vmem:[#allocation2 + $0x358] sm:$0xff]
    %v244 = vld [vmem:[#allocation2 + $0x360] sm:$0xff]
    %v245 = vld [vmem:[#allocation2 + $0x368] sm:$0xff]
    %v246 = vld [vmem:[#allocation2 + $0x370] sm:$0xff]
    %v247 = vld [vmem:[#allocation2 + $0x378] sm:$0xff]
    %v248 = vld [vmem:[#allocation2 + $0x380] sm:$0xff]
    %v249 = vld [vmem:[#allocation2 + $0x388] sm:$0xff]
    %v250 = vld [vmem:[#allocation2 + $0x390] sm:$0xff]
    %v251 = vld [vmem:[#allocation2 + $0x398] sm:$0xff]
    %v252 = vld [vmem:[#allocation2 + $0x3a0] sm:$0xff]
    %v253 = vld [vmem:[#allocation2 + $0x3a8] sm:$0xff]
    %v254 = vld [vmem:[#allocation2 + $0x3b0] sm:$0xff]
    %v255 = vld [vmem:[#allocation2 + $0x3b8] sm:$0xff]
    %v256 = vld [vmem:[#allocation2 + $0x3c0] sm:$0xff]
    %v257 = vld [vmem:[#allocation2 + $0x3c8] sm:$0xff]
    %v258 = vld [vmem:[#allocation2 + $0x3d0] sm:$0xff]
    %v259 = vld [vmem:[#allocation2 + $0x3d8] sm:$0xff]
    %v260 = vld [vmem:[#allocation2 + $0x3e0] sm:$0xff]
    %v261 = vld [vmem:[#allocation2 + $0x3e8] sm:$0xff]
    %v262 = vld [vmem:[#allocation2 + $0x3f0] sm:$0xff]
    %v263 = vld [vmem:[#allocation2 + $0x3f8] sm:$0xff]
    %v264 = vld [vmem:[#allocation2 + $0x400] sm:$0xff]
    %v265 = vld [vmem:[#allocation2 + $0x408] sm:$0xff]
    %v266 = vld [vmem:[#allocation2 + $0x410] sm:$0xff]
    %v267 = vld [vmem:[#allocation2 + $0x418] sm:$0xff]
    %v268 = vld [vmem:[#allocation2 + $0x420] sm:$0xff]
    %v269 = vld [vmem:[#allocation2 + $0x428] sm:$0xff]
    %v270 = vld [vmem:[#allocation2 + $0x430] sm:$0xff]
    %v271 = vld [vmem:[#allocation2 + $0x438] sm:$0xff]
    %v272 = vld [vmem:[#allocation2 + $0x440] sm:$0xff]
    %v273 = vld [vmem:[#allocation2 + $0x448] sm:$0xff]
    %v274 = vld [vmem:[#allocation2 + $0x450] sm:$0xff]
    %v275 = vld [vmem:[#allocation2 + $0x458] sm:$0xff]
    %v276 = vld [vmem:[#allocation2 + $0x460] sm:$0xff]
    %v277 = vld [vmem:[#allocation2 + $0x468] sm:$0xff]
    %v278 = vld [vmem:[#allocation2 + $0x470] sm:$0xff]
    %v279 = vld [vmem:[#allocation2 + $0x478] sm:$0xff]
    %v280 = vld [vmem:[#allocation2 + $0x480] sm:$0xff]
    %v281 = vld [vmem:[#allocation2 + $0x488] sm:$0xff]
    %v282 = vld [vmem:[#allocation2 + $0x490] sm:$0xff]
    %v283 = vld [vmem:[#allocation2 + $0x498] sm:$0xff]
    %v284 = vld [vmem:[#allocation2 + $0x4a0] sm:$0xff]
    %v285 = vld [vmem:[#allocation2 + $0x4a8] sm:$0xff]
    %v286 = vld [vmem:[#allocation2 + $0x4b0] sm:$0xff]
    %v287 = vld [vmem:[#allocation2 + $0x4b8] sm:$0xff]
    %v288 = vld [vmem:[#allocation2 + $0x4c0] sm:$0xff]
    %v289 = vld [vmem:[#allocation2 + $0x4c8] sm:$0xff]
    %v290 = vld [vmem:[#allocation2 + $0x4d0] sm:$0xff]
    %v291 = vld [vmem:[#allocation2 + $0x4d8] sm:$0xff]
    %v292 = vld [vmem:[#allocation2 + $0x4e0] sm:$0xff]
    %v293 = vld [vmem:[#allocation2 + $0x4e8] sm:$0xff]
    %v294 = vld [vmem:[#allocation2 + $0x4f0] sm:$0xff]
    %v295 = vld [vmem:[#allocation2 + $0x4f8] sm:$0xff]
    %v296 = vld [vmem:[#allocation2 + $0x500] sm:$0xff]
    %v297 = vld [vmem:[#allocation2 + $0x508] sm:$0xff]
    %v298 = vld [vmem:[#allocation2 + $0x510] sm:$0xff]
    %v299 = vld [vmem:[#allocation2 + $0x518] sm:$0xff]
    %v300 = vld [vmem:[#allocation2 + $0x520] sm:$0xff]
    %v301 = vld [vmem:[#allocation2 + $0x528] sm:$0xff]
    %v302 = vld [vmem:[#allocation2 + $0x530] sm:$0xff]
    %v303 = vld [vmem:[#allocation2 + $0x538] sm:$0xff]
    %v304 = vld [vmem:[#allocation2 + $0x540] sm:$0xff]
    %v305 = vld [vmem:[#allocation2 + $0x548] sm:$0xff]
    %v306 = vld [vmem:[#allocation2 + $0x550] sm:$0xff]
    %v307 = vld [vmem:[#allocation2 + $0x558] sm:$0xff]
    %v308 = vld [vmem:[#allocation2 + $0x560] sm:$0xff]
    %v309 = vld [vmem:[#allocation2 + $0x568] sm:$0xff]
    %v310 = vld [vmem:[#allocation2 + $0x570] sm:$0xff]
    %v311 = vld [vmem:[#allocation2 + $0x578] sm:$0xff]
    %v312 = vld [vmem:[#allocation2 + $0x580] sm:$0xff]
    %v313 = vld [vmem:[#allocation2 + $0x588] sm:$0xff]
    %v314 = vld [vmem:[#allocation2 + $0x590] sm:$0xff]
    %v315 = vld [vmem:[#allocation2 + $0x598] sm:$0xff]
    %v316 = vld [vmem:[#allocation2 + $0x5a0] sm:$0xff]
    %v317 = vld [vmem:[#allocation2 + $0x5a8] sm:$0xff]
    %v318 = vld [vmem:[#allocation2 + $0x5b0] sm:$0xff]
    %v319 = vld [vmem:[#allocation2 + $0x5b8] sm:$0xff]
    %v320 = vld [vmem:[#allocation2 + $0x5c0] sm:$0xff]
    %v321 = vld [vmem:[#allocation2 + $0x5c8] sm:$0xff]
    %v322 = vld [vmem:[#allocation2 + $0x5d0] sm:$0xff]
    %v323 = vld [vmem:[#allocation2 + $0x5d8] sm:$0xff]
    %v324 = vld [vmem:[#allocation2 + $0x5e0] sm:$0xff]
    %v325 = vld [vmem:[#allocation2 + $0x5e8] sm:$0xff]
    %v326 = vld [vmem:[#allocation2 + $0x5f0] sm:$0xff]
    %v327 = vld [vmem:[#allocation2 + $0x5f8] sm:$0xff]
    %v328 = vld [vmem:[#allocation2 + $0x600] sm:$0xff]
    %v329 = vld [vmem:[#allocation2 + $0x608] sm:$0xff]
    %v330 = vld [vmem:[#allocation2 + $0x610] sm:$0xff]
    %v331 = vld [vmem:[#allocation2 + $0x618] sm:$0xff]
    %v332 = vld [vmem:[#allocation2 + $0x620] sm:$0xff]
    %v333 = vld [vmem:[#allocation2 + $0x628] sm:$0xff]
    %v334 = vld [vmem:[#allocation2 + $0x630] sm:$0xff]
    %v335 = vld [vmem:[#allocation2 + $0x638] sm:$0xff]
    %v336 = vld [vmem:[#allocation2 + $0x640] sm:$0xff]
    %v337 = vld [vmem:[#allocation2 + $0x648] sm:$0xff]
    %v338 = vld [vmem:[#allocation2 + $0x650] sm:$0xff]
    %v339 = vld [vmem:[#allocation2 + $0x658] sm:$0xff]
    %v340 = vld [vmem:[#allocation2 + $0x660] sm:$0xff]
    %v341 = vld [vmem:[#allocation2 + $0x668] sm:$0xff]
    %v342 = vld [vmem:[#allocation2 + $0x670] sm:$0xff]
    %v343 = vld [vmem:[#allocation2 + $0x678] sm:$0xff]
    %v344 = vld [vmem:[#allocation2 + $0x680] sm:$0xff]
    %v345 = vld [vmem:[#allocation2 + $0x688] sm:$0xff]
    %v346 = vld [vmem:[#allocation2 + $0x690] sm:$0xff]
    %v347 = vld [vmem:[#allocation2 + $0x698] sm:$0xff]
    %v348 = vld [vmem:[#allocation2 + $0x6a0] sm:$0xff]
    %v349 = vld [vmem:[#allocation2 + $0x6a8] sm:$0xff]
    %v350 = vld [vmem:[#allocation2 + $0x6b0] sm:$0xff]
    %v351 = vld [vmem:[#allocation2 + $0x6b8] sm:$0xff]
    %v352 = vld [vmem:[#allocation2 + $0x6c0] sm:$0xff]
    %v353 = vld [vmem:[#allocation2 + $0x6c8] sm:$0xff]
    %v354 = vld [vmem:[#allocation2 + $0x6d0] sm:$0xff]
    %v355 = vld [vmem:[#allocation2 + $0x6d8] sm:$0xff]
    %v356 = vld [vmem:[#allocation2 + $0x6e0] sm:$0xff]
    %v357 = vld [vmem:[#allocation2 + $0x6e8] sm:$0xff]
    %v358 = vld [vmem:[#allocation2 + $0x6f0] sm:$0xff]
    %v359 = vld [vmem:[#allocation2 + $0x6f8] sm:$0xff]
    %v360 = vld [vmem:[%s3] sm:$0xf]
    %v362 = vlaneseq
    %v363 = vshrl.u32 %v362, 7
    %v364 = vsub.s32 0, %v363
    %v365 = vrot.slane %v360, %v364
    %v366 = vlaneseq
    %v367 = vshrl.u32 %v366, 7
    %v368 = vsub.s32 1, %v367
    %v369 = vrot.slane %v360, %v368
    %v370 = vlaneseq
    %v371 = vshrl.u32 %v370, 7
    %v372 = vsub.s32 2, %v371
    %v373 = vrot.slane %v360, %v372
    %v374 = vlaneseq
    %v375 = vshrl.u32 %v374, 7
    %v376 = vsub.s32 3, %v375
    %v377 = vrot.slane %v360, %v376
    %v386 = vunpack.c.l.b16 %v132
    %v387 = vunpack.c.h.b16 %v132
    %v388 = vunpack.c.l.b16 %v133
    %v389 = vunpack.c.h.b16 %v133
    %v390 = vunpack.c.l.b16 %v134
    %v391 = vunpack.c.h.b16 %v134
    %v392 = vunpack.c.l.b16 %v135
    %v393 = vpack.c.b16 %v386, %v386
    %v394 = vpack.c.b16 %v387, %v387
    %v395 = vpack.c.b16 %v388, %v388
    %v396 = vpack.c.b16 %v389, %v389
    %v397 = vpack.c.b16 %v390, %v390
    %v398 = vpack.c.b16 %v391, %v391
    %v399 = vpack.c.b16 %v392, %v392
    %v631 = vunpack.c.l.b16 %v136
    %v632 = vunpack.c.h.b16 %v136
    %v633 = vunpack.c.l.b16 %v137
    %v634 = vunpack.c.h.b16 %v137
    %v635 = vunpack.c.l.b16 %v138
    %v636 = vunpack.c.h.b16 %v138
    %v637 = vunpack.c.l.b16 %v139
    %v638 = vunpack.c.h.b16 %v139
    %v639 = vunpack.c.l.b16 %v140
    %v640 = vunpack.c.h.b16 %v140
    %v641 = vunpack.c.l.b16 %v141
    %v642 = vunpack.c.h.b16 %v141
    %v643 = vunpack.c.l.b16 %v142
    %v644 = vunpack.c.h.b16 %v142
    %v645 = vunpack.c.l.b16 %v143
    %v646 = vunpack.c.h.b16 %v143
    %v647 = vunpack.c.l.b16 %v144
    %v648 = vunpack.c.h.b16 %v144
    %v649 = vunpack.c.l.b16 %v145
    %v650 = vunpack.c.h.b16 %v145
    %v651 = vunpack.c.l.b16 %v146
    %v652 = vunpack.c.h.b16 %v146
    %v653 = vunpack.c.l.b16 %v147
    %v654 = vunpack.c.h.b16 %v147
    %v655 = vunpack.c.l.b16 %v148
    %v656 = vunpack.c.h.b16 %v148
    %v657 = vunpack.c.l.b16 %v149
    %v658 = vunpack.c.h.b16 %v149
    %v659 = vunpack.c.l.b16 %v150
    %v660 = vunpack.c.h.b16 %v150
    %v661 = vunpack.c.l.b16 %v151
    %v662 = vunpack.c.h.b16 %v151
    %v663 = vunpack.c.l.b16 %v152
    %v664 = vunpack.c.h.b16 %v152
    %v665 = vunpack.c.l.b16 %v153
    %v666 = vunpack.c.h.b16 %v153
    %v667 = vunpack.c.l.b16 %v154
    %v668 = vunpack.c.h.b16 %v154
    %v669 = vunpack.c.l.b16 %v155
    %v670 = vunpack.c.h.b16 %v155
    %v671 = vunpack.c.l.b16 %v156
    %v672 = vunpack.c.h.b16 %v156
    %v673 = vunpack.c.l.b16 %v157
    %v674 = vunpack.c.h.b16 %v157
    %v675 = vunpack.c.l.b16 %v158
    %v676 = vunpack.c.h.b16 %v158
    %v677 = vunpack.c.l.b16 %v159
    %v678 = vunpack.c.h.b16 %v159
    %v679 = vunpack.c.l.b16 %v160
    %v680 = vunpack.c.h.b16 %v160
    %v681 = vunpack.c.l.b16 %v161
    %v682 = vunpack.c.h.b16 %v161
    %v683 = vunpack.c.l.b16 %v162
    %v684 = vunpack.c.h.b16 %v162
    %v685 = vunpack.c.l.b16 %v163
    %v686 = vunpack.c.h.b16 %v163
    %v687 = vunpack.c.l.b16 %v164
    %v688 = vunpack.c.h.b16 %v164
    %v689 = vunpack.c.l.b16 %v165
    %v690 = vunpack.c.h.b16 %v165
    %v691 = vunpack.c.l.b16 %v166
    %v692 = vunpack.c.h.b16 %v166
    %v693 = vunpack.c.l.b16 %v167
    %v694 = vunpack.c.h.b16 %v167
    %v695 = vunpack.c.l.b16 %v168
    %v696 = vunpack.c.h.b16 %v168
    %v697 = vunpack.c.l.b16 %v169
    %v698 = vunpack.c.h.b16 %v169
    %v699 = vunpack.c.l.b16 %v170
    %v700 = vunpack.c.h.b16 %v170
    %v701 = vunpack.c.l.b16 %v171
    %v702 = vunpack.c.h.b16 %v171
    %v703 = vunpack.c.l.b16 %v172
    %v704 = vunpack.c.h.b16 %v172
    %v705 = vunpack.c.l.b16 %v173
    %v706 = vunpack.c.h.b16 %v173
    %v707 = vunpack.c.l.b16 %v174
    %v708 = vunpack.c.h.b16 %v174
    %v709 = vunpack.c.l.b16 %v175
    %v710 = vunpack.c.h.b16 %v175
    %v711 = vunpack.c.l.b16 %v176
    %v712 = vunpack.c.h.b16 %v176
    %v713 = vunpack.c.l.b16 %v177
    %v714 = vunpack.c.h.b16 %v177
    %v715 = vunpack.c.l.b16 %v178
    %v716 = vunpack.c.h.b16 %v178
    %v717 = vunpack.c.l.b16 %v179
    %v718 = vunpack.c.h.b16 %v179
    %v719 = vunpack.c.l.b16 %v180
    %v720 = vunpack.c.h.b16 %v180
    %v721 = vunpack.c.l.b16 %v181
    %v722 = vunpack.c.h.b16 %v181
    %v723 = vunpack.c.l.b16 %v182
    %v724 = vunpack.c.h.b16 %v182
    %v725 = vunpack.c.l.b16 %v183
    %v726 = vunpack.c.h.b16 %v183
    %v727 = vunpack.c.l.b16 %v184
    %v728 = vunpack.c.h.b16 %v184
    %v729 = vunpack.c.l.b16 %v185
    %v730 = vunpack.c.h.b16 %v185
    %v731 = vunpack.c.l.b16 %v186
    %v732 = vunpack.c.h.b16 %v186
    %v733 = vunpack.c.l.b16 %v187
    %v734 = vunpack.c.h.b16 %v187
    %v735 = vunpack.c.l.b16 %v188
    %v736 = vunpack.c.h.b16 %v188
    %v737 = vunpack.c.l.b16 %v189
    %v738 = vunpack.c.h.b16 %v189
    %v739 = vunpack.c.l.b16 %v190
    %v740 = vunpack.c.h.b16 %v190
    %v741 = vunpack.c.l.b16 %v191
    %v742 = vunpack.c.h.b16 %v191
    %v743 = vunpack.c.l.b16 %v192
    %v744 = vunpack.c.h.b16 %v192
    %v745 = vunpack.c.l.b16 %v193
    %v746 = vunpack.c.h.b16 %v193
    %v747 = vunpack.c.l.b16 %v194
    %v748 = vunpack.c.h.b16 %v194
    %v749 = vunpack.c.l.b16 %v195
    %v750 = vunpack.c.h.b16 %v195
    %v751 = vunpack.c.l.b16 %v196
    %v752 = vunpack.c.h.b16 %v196
    %v753 = vunpack.c.l.b16 %v197
    %v754 = vunpack.c.h.b16 %v197
    %v755 = vunpack.c.l.b16 %v198
    %v756 = vunpack.c.h.b16 %v198
    %v757 = vunpack.c.l.b16 %v199
    %v758 = vunpack.c.h.b16 %v199
    %v759 = vunpack.c.l.b16 %v200
    %v760 = vunpack.c.h.b16 %v200
    %v761 = vunpack.c.l.b16 %v201
    %v762 = vunpack.c.h.b16 %v201
    %v763 = vunpack.c.l.b16 %v202
    %v764 = vunpack.c.h.b16 %v202
    %v765 = vunpack.c.l.b16 %v203
    %v766 = vunpack.c.h.b16 %v203
    %v767 = vunpack.c.l.b16 %v204
    %v768 = vunpack.c.h.b16 %v204
    %v769 = vunpack.c.l.b16 %v205
    %v770 = vunpack.c.h.b16 %v205
    %v771 = vunpack.c.l.b16 %v206
    %v772 = vunpack.c.h.b16 %v206
    %v773 = vunpack.c.l.b16 %v207
    %v774 = vunpack.c.h.b16 %v207
    %v775 = vunpack.c.l.b16 %v208
    %v776 = vunpack.c.h.b16 %v208
    %v777 = vunpack.c.l.b16 %v209
    %v778 = vunpack.c.h.b16 %v209
    %v779 = vunpack.c.l.b16 %v210
    %v780 = vunpack.c.h.b16 %v210
    %v781 = vunpack.c.l.b16 %v211
    %v782 = vunpack.c.h.b16 %v211
    %v783 = vunpack.c.l.b16 %v212
    %v784 = vunpack.c.h.b16 %v212
    %v785 = vunpack.c.l.b16 %v213
    %v786 = vunpack.c.h.b16 %v213
    %v787 = vunpack.c.l.b16 %v214
    %v788 = vunpack.c.h.b16 %v214
    %v789 = vunpack.c.l.b16 %v215
    %v790 = vunpack.c.h.b16 %v215
    %v791 = vunpack.c.l.b16 %v216
    %v792 = vunpack.c.h.b16 %v216
    %v793 = vunpack.c.l.b16 %v217
    %v794 = vunpack.c.h.b16 %v217
    %v795 = vunpack.c.l.b16 %v218
    %v796 = vunpack.c.h.b16 %v218
    %v797 = vunpack.c.l.b16 %v219
    %v798 = vunpack.c.h.b16 %v219
    %v799 = vunpack.c.l.b16 %v220
    %v800 = vunpack.c.h.b16 %v220
    %v801 = vunpack.c.l.b16 %v221
    %v802 = vunpack.c.h.b16 %v221
    %v803 = vunpack.c.l.b16 %v222
    %v804 = vunpack.c.h.b16 %v222
    %v805 = vunpack.c.l.b16 %v223
    %v806 = vunpack.c.h.b16 %v223
    %v807 = vunpack.c.l.b16 %v224
    %v808 = vunpack.c.h.b16 %v224
    %v809 = vunpack.c.l.b16 %v225
    %v810 = vunpack.c.h.b16 %v225
    %v811 = vunpack.c.l.b16 %v226
    %v812 = vunpack.c.h.b16 %v226
    %v813 = vunpack.c.l.b16 %v227
    %v814 = vunpack.c.h.b16 %v227
    %v815 = vunpack.c.l.b16 %v228
    %v816 = vunpack.c.h.b16 %v228
    %v817 = vunpack.c.l.b16 %v229
    %v818 = vunpack.c.h.b16 %v229
    %v819 = vunpack.c.l.b16 %v230
    %v820 = vunpack.c.h.b16 %v230
    %v821 = vunpack.c.l.b16 %v231
    %v822 = vunpack.c.h.b16 %v231
    %v823 = vunpack.c.l.b16 %v232
    %v824 = vunpack.c.h.b16 %v232
    %v825 = vunpack.c.l.b16 %v233
    %v826 = vunpack.c.h.b16 %v233
    %v827 = vunpack.c.l.b16 %v234
    %v828 = vunpack.c.h.b16 %v234
    %v829 = vunpack.c.l.b16 %v235
    %v830 = vunpack.c.h.b16 %v235
    %v831 = vunpack.c.l.b16 %v236
    %v832 = vunpack.c.h.b16 %v236
    %v833 = vunpack.c.l.b16 %v237
    %v834 = vunpack.c.h.b16 %v237
    %v835 = vunpack.c.l.b16 %v238
    %v836 = vunpack.c.h.b16 %v238
    %v837 = vunpack.c.l.b16 %v239
    %v838 = vunpack.c.h.b16 %v239
    %v839 = vunpack.c.l.b16 %v240
    %v840 = vunpack.c.h.b16 %v240
    %v841 = vunpack.c.l.b16 %v241
    %v842 = vunpack.c.h.b16 %v241
    %v843 = vunpack.c.l.b16 %v242
    %v844 = vunpack.c.h.b16 %v242
    %v845 = vunpack.c.l.b16 %v243
    %v846 = vunpack.c.h.b16 %v243
    %v847 = vunpack.c.l.b16 %v244
    %v848 = vunpack.c.h.b16 %v244
    %v849 = vunpack.c.l.b16 %v245
    %v850 = vunpack.c.h.b16 %v245
    %v851 = vunpack.c.l.b16 %v246
    %v852 = vunpack.c.h.b16 %v246
    %v853 = vunpack.c.l.b16 %v247
    %v854 = vunpack.c.h.b16 %v247
    %v855 = vunpack.c.l.b16 %v248
    %v856 = vunpack.c.h.b16 %v248
    %v857 = vunpack.c.l.b16 %v249
    %v858 = vunpack.c.h.b16 %v249
    %v859 = vunpack.c.l.b16 %v250
    %v860 = vunpack.c.h.b16 %v250
    %v861 = vunpack.c.l.b16 %v251
    %v862 = vunpack.c.h.b16 %v251
    %v863 = vunpack.c.l.b16 %v252
    %v864 = vunpack.c.h.b16 %v252
    %v865 = vunpack.c.l.b16 %v253
    %v866 = vunpack.c.h.b16 %v253
    %v867 = vunpack.c.l.b16 %v254
    %v868 = vunpack.c.h.b16 %v254
    %v869 = vunpack.c.l.b16 %v255
    %v870 = vunpack.c.h.b16 %v255
    %v871 = vunpack.c.l.b16 %v256
    %v872 = vunpack.c.h.b16 %v256
    %v873 = vunpack.c.l.b16 %v257
    %v874 = vunpack.c.h.b16 %v257
    %v875 = vunpack.c.l.b16 %v258
    %v876 = vunpack.c.h.b16 %v258
    %v877 = vunpack.c.l.b16 %v259
    %v878 = vunpack.c.h.b16 %v259
    %v879 = vunpack.c.l.b16 %v260
    %v880 = vunpack.c.h.b16 %v260
    %v881 = vunpack.c.l.b16 %v261
    %v882 = vunpack.c.h.b16 %v261
    %v883 = vunpack.c.l.b16 %v262
    %v884 = vunpack.c.h.b16 %v262
    %v885 = vunpack.c.l.b16 %v263
    %v886 = vunpack.c.h.b16 %v263
    %v887 = vunpack.c.l.b16 %v264
    %v888 = vunpack.c.h.b16 %v264
    %v889 = vunpack.c.l.b16 %v265
    %v890 = vunpack.c.h.b16 %v265
    %v891 = vunpack.c.l.b16 %v266
    %v892 = vunpack.c.h.b16 %v266
    %v893 = vunpack.c.l.b16 %v267
    %v894 = vunpack.c.h.b16 %v267
    %v895 = vunpack.c.l.b16 %v268
    %v896 = vunpack.c.h.b16 %v268
    %v897 = vunpack.c.l.b16 %v269
    %v898 = vunpack.c.h.b16 %v269
    %v899 = vunpack.c.l.b16 %v270
    %v900 = vunpack.c.h.b16 %v270
    %v901 = vunpack.c.l.b16 %v271
    %v902 = vunpack.c.h.b16 %v271
    %v903 = vunpack.c.l.b16 %v272
    %v904 = vunpack.c.h.b16 %v272
    %v905 = vunpack.c.l.b16 %v273
    %v906 = vunpack.c.h.b16 %v273
    %v907 = vunpack.c.l.b16 %v274
    %v908 = vunpack.c.h.b16 %v274
    %v909 = vunpack.c.l.b16 %v275
    %v910 = vunpack.c.h.b16 %v275
    %v911 = vunpack.c.l.b16 %v276
    %v912 = vunpack.c.h.b16 %v276
    %v913 = vunpack.c.l.b16 %v277
    %v914 = vunpack.c.h.b16 %v277
    %v915 = vunpack.c.l.b16 %v278
    %v916 = vunpack.c.h.b16 %v278
    %v917 = vunpack.c.l.b16 %v279
    %v918 = vunpack.c.h.b16 %v279
    %v919 = vunpack.c.l.b16 %v280
    %v920 = vunpack.c.h.b16 %v280
    %v921 = vunpack.c.l.b16 %v281
    %v922 = vunpack.c.h.b16 %v281
    %v923 = vunpack.c.l.b16 %v282
    %v924 = vunpack.c.h.b16 %v282
    %v925 = vunpack.c.l.b16 %v283
    %v926 = vunpack.c.h.b16 %v283
    %v927 = vunpack.c.l.b16 %v284
    %v928 = vunpack.c.h.b16 %v284
    %v929 = vunpack.c.l.b16 %v285
    %v930 = vunpack.c.h.b16 %v285
    %v931 = vunpack.c.l.b16 %v286
    %v932 = vunpack.c.h.b16 %v286
    %v933 = vunpack.c.l.b16 %v287
    %v934 = vunpack.c.h.b16 %v287
    %v935 = vunpack.c.l.b16 %v288
    %v936 = vunpack.c.h.b16 %v288
    %v937 = vunpack.c.l.b16 %v289
    %v938 = vunpack.c.h.b16 %v289
    %v939 = vunpack.c.l.b16 %v290
    %v940 = vunpack.c.h.b16 %v290
    %v941 = vunpack.c.l.b16 %v291
    %v942 = vunpack.c.h.b16 %v291
    %v943 = vunpack.c.l.b16 %v292
    %v944 = vunpack.c.h.b16 %v292
    %v945 = vunpack.c.l.b16 %v293
    %v946 = vunpack.c.h.b16 %v293
    %v947 = vunpack.c.l.b16 %v294
    %v948 = vunpack.c.h.b16 %v294
    %v949 = vunpack.c.l.b16 %v295
    %v950 = vunpack.c.h.b16 %v295
    %v951 = vunpack.c.l.b16 %v296
    %v952 = vunpack.c.h.b16 %v296
    %v953 = vunpack.c.l.b16 %v297
    %v954 = vunpack.c.h.b16 %v297
    %v955 = vunpack.c.l.b16 %v298
    %v956 = vunpack.c.h.b16 %v298
    %v957 = vunpack.c.l.b16 %v299
    %v958 = vunpack.c.h.b16 %v299
    %v959 = vunpack.c.l.b16 %v300
    %v960 = vunpack.c.h.b16 %v300
    %v961 = vunpack.c.l.b16 %v301
    %v962 = vunpack.c.h.b16 %v301
    %v963 = vunpack.c.l.b16 %v302
    %v964 = vunpack.c.h.b16 %v302
    %v965 = vunpack.c.l.b16 %v303
    %v966 = vunpack.c.h.b16 %v303
    %v967 = vunpack.c.l.b16 %v304
    %v968 = vunpack.c.h.b16 %v304
    %v969 = vunpack.c.l.b16 %v305
    %v970 = vunpack.c.h.b16 %v305
    %v971 = vunpack.c.l.b16 %v306
    %v972 = vunpack.c.h.b16 %v306
    %v973 = vunpack.c.l.b16 %v307
    %v974 = vunpack.c.h.b16 %v307
    %v975 = vunpack.c.l.b16 %v308
    %v976 = vunpack.c.h.b16 %v308
    %v977 = vunpack.c.l.b16 %v309
    %v978 = vunpack.c.h.b16 %v309
    %v979 = vunpack.c.l.b16 %v310
    %v980 = vunpack.c.h.b16 %v310
    %v981 = vunpack.c.l.b16 %v311
    %v982 = vunpack.c.h.b16 %v311
    %v983 = vunpack.c.l.b16 %v312
    %v984 = vunpack.c.h.b16 %v312
    %v985 = vunpack.c.l.b16 %v313
    %v986 = vunpack.c.h.b16 %v313
    %v987 = vunpack.c.l.b16 %v314
    %v988 = vunpack.c.h.b16 %v314
    %v989 = vunpack.c.l.b16 %v315
    %v990 = vunpack.c.h.b16 %v315
    %v991 = vunpack.c.l.b16 %v316
    %v992 = vunpack.c.h.b16 %v316
    %v993 = vunpack.c.l.b16 %v317
    %v994 = vunpack.c.h.b16 %v317
    %v995 = vunpack.c.l.b16 %v318
    %v996 = vunpack.c.h.b16 %v318
    %v997 = vunpack.c.l.b16 %v319
    %v998 = vunpack.c.h.b16 %v319
    %v999 = vunpack.c.l.b16 %v320
    %v1000 = vunpack.c.h.b16 %v320
    %v1001 = vunpack.c.l.b16 %v321
    %v1002 = vunpack.c.h.b16 %v321
    %v1003 = vunpack.c.l.b16 %v322
    %v1004 = vunpack.c.h.b16 %v322
    %v1005 = vunpack.c.l.b16 %v323
    %v1006 = vunpack.c.h.b16 %v323
    %v1007 = vunpack.c.l.b16 %v324
    %v1008 = vunpack.c.h.b16 %v324
    %v1009 = vunpack.c.l.b16 %v325
    %v1010 = vunpack.c.h.b16 %v325
    %v1011 = vunpack.c.l.b16 %v326
    %v1012 = vunpack.c.h.b16 %v326
    %v1013 = vunpack.c.l.b16 %v327
    %v1014 = vunpack.c.h.b16 %v327
    %v1015 = vunpack.c.l.b16 %v328
    %v1016 = vunpack.c.h.b16 %v328
    %v1017 = vunpack.c.l.b16 %v329
    %v1018 = vunpack.c.h.b16 %v329
    %v1019 = vunpack.c.l.b16 %v330
    %v1020 = vunpack.c.h.b16 %v330
    %v1021 = vunpack.c.l.b16 %v331
    %v1022 = vunpack.c.h.b16 %v331
    %v1023 = vunpack.c.l.b16 %v332
    %v1024 = vunpack.c.h.b16 %v332
    %v1025 = vunpack.c.l.b16 %v333
    %v1026 = vunpack.c.h.b16 %v333
    %v1027 = vunpack.c.l.b16 %v334
    %v1028 = vunpack.c.h.b16 %v334
    %v1029 = vunpack.c.l.b16 %v335
    %v1030 = vunpack.c.h.b16 %v335
    %v1031 = vunpack.c.l.b16 %v336
    %v1032 = vunpack.c.h.b16 %v336
    %v1033 = vunpack.c.l.b16 %v337
    %v1034 = vunpack.c.h.b16 %v337
    %v1035 = vunpack.c.l.b16 %v338
    %v1036 = vunpack.c.h.b16 %v338
    %v1037 = vunpack.c.l.b16 %v339
    %v1038 = vunpack.c.h.b16 %v339
    %v1039 = vunpack.c.l.b16 %v340
    %v1040 = vunpack.c.h.b16 %v340
    %v1041 = vunpack.c.l.b16 %v341
    %v1042 = vunpack.c.h.b16 %v341
    %v1043 = vunpack.c.l.b16 %v342
    %v1044 = vunpack.c.h.b16 %v342
    %v1045 = vunpack.c.l.b16 %v343
    %v1046 = vunpack.c.h.b16 %v343
    %v1047 = vunpack.c.l.b16 %v344
    %v1048 = vunpack.c.h.b16 %v344
    %v1049 = vunpack.c.l.b16 %v345
    %v1050 = vunpack.c.h.b16 %v345
    %v1051 = vunpack.c.l.b16 %v346
    %v1052 = vunpack.c.h.b16 %v346
    %v1053 = vunpack.c.l.b16 %v347
    %v1054 = vunpack.c.h.b16 %v347
    %v1055 = vunpack.c.l.b16 %v348
    %v1056 = vunpack.c.h.b16 %v348
    %v1057 = vunpack.c.l.b16 %v349
    %v1058 = vunpack.c.h.b16 %v349
    %v1059 = vunpack.c.l.b16 %v350
    %v1060 = vunpack.c.h.b16 %v350
    %v1061 = vunpack.c.l.b16 %v351
    %v1062 = vunpack.c.h.b16 %v351
    %v1063 = vunpack.c.l.b16 %v352
    %v1064 = vunpack.c.h.b16 %v352
    %v1065 = vunpack.c.l.b16 %v353
    %v1066 = vunpack.c.h.b16 %v353
    %v1067 = vunpack.c.l.b16 %v354
    %v1068 = vunpack.c.h.b16 %v354
    %v1069 = vunpack.c.l.b16 %v355
    %v1070 = vunpack.c.h.b16 %v355
    %v1071 = vunpack.c.l.b16 %v356
    %v1072 = vunpack.c.h.b16 %v356
    %v1073 = vunpack.c.l.b16 %v357
    %v1074 = vunpack.c.h.b16 %v357
    %v1075 = vunpack.c.l.b16 %v358
    %v1076 = vunpack.c.h.b16 %v358
    %v1077 = vunpack.c.l.b16 %v359
    %v1078 = vunpack.c.h.b16 %v359
    %v1079 = vpack.c.b16 %v635, %v631
    %v1080 = vpack.c.b16 %v636, %v632
    %v1081 = vpack.c.b16 %v637, %v633
    %v1082 = vpack.c.b16 %v638, %v634
    %v1083 = vpack.c.b16 %v643, %v639
    %v1084 = vpack.c.b16 %v644, %v640
    %v1085 = vpack.c.b16 %v645, %v641
    %v1086 = vpack.c.b16 %v646, %v642
    %v1087 = vpack.c.b16 %v651, %v647
    %v1088 = vpack.c.b16 %v652, %v648
    %v1089 = vpack.c.b16 %v653, %v649
    %v1090 = vpack.c.b16 %v654, %v650
    %v1091 = vpack.c.b16 %v659, %v655
    %v1092 = vpack.c.b16 %v660, %v656
    %v1093 = vpack.c.b16 %v661, %v657
    %v1094 = vpack.c.b16 %v662, %v658
    %v1095 = vpack.c.b16 %v667, %v663
    %v1096 = vpack.c.b16 %v668, %v664
    %v1097 = vpack.c.b16 %v669, %v665
    %v1098 = vpack.c.b16 %v670, %v666
    %v1099 = vpack.c.b16 %v675, %v671
    %v1100 = vpack.c.b16 %v676, %v672
    %v1101 = vpack.c.b16 %v677, %v673
    %v1102 = vpack.c.b16 %v678, %v674
    %v1103 = vpack.c.b16 %v683, %v679
    %v1104 = vpack.c.b16 %v684, %v680
    %v1105 = vpack.c.b16 %v685, %v681
    %v1106 = vpack.c.b16 %v686, %v682
    %v1107 = vpack.c.b16 %v691, %v687
    %v1108 = vpack.c.b16 %v692, %v688
    %v1109 = vpack.c.b16 %v693, %v689
    %v1110 = vpack.c.b16 %v694, %v690
    %v1111 = vpack.c.b16 %v699, %v695
    %v1112 = vpack.c.b16 %v700, %v696
    %v1113 = vpack.c.b16 %v701, %v697
    %v1114 = vpack.c.b16 %v702, %v698
    %v1115 = vpack.c.b16 %v707, %v703
    %v1116 = vpack.c.b16 %v708, %v704
    %v1117 = vpack.c.b16 %v709, %v705
    %v1118 = vpack.c.b16 %v710, %v706
    %v1119 = vpack.c.b16 %v715, %v711
    %v1120 = vpack.c.b16 %v716, %v712
    %v1121 = vpack.c.b16 %v717, %v713
    %v1122 = vpack.c.b16 %v718, %v714
    %v1123 = vpack.c.b16 %v723, %v719
    %v1124 = vpack.c.b16 %v724, %v720
    %v1125 = vpack.c.b16 %v725, %v721
    %v1126 = vpack.c.b16 %v726, %v722
    %v1127 = vpack.c.b16 %v731, %v727
    %v1128 = vpack.c.b16 %v732, %v728
    %v1129 = vpack.c.b16 %v733, %v729
    %v1130 = vpack.c.b16 %v734, %v730
    %v1131 = vpack.c.b16 %v739, %v735
    %v1132 = vpack.c.b16 %v740, %v736
    %v1133 = vpack.c.b16 %v741, %v737
    %v1134 = vpack.c.b16 %v742, %v738
    %v1135 = vpack.c.b16 %v747, %v743
    %v1136 = vpack.c.b16 %v748, %v744
    %v1137 = vpack.c.b16 %v749, %v745
    %v1138 = vpack.c.b16 %v750, %v746
    %v1139 = vpack.c.b16 %v755, %v751
    %v1140 = vpack.c.b16 %v756, %v752
    %v1141 = vpack.c.b16 %v757, %v753
    %v1142 = vpack.c.b16 %v758, %v754
    %v1143 = vpack.c.b16 %v763, %v759
    %v1144 = vpack.c.b16 %v764, %v760
    %v1145 = vpack.c.b16 %v765, %v761
    %v1146 = vpack.c.b16 %v766, %v762
    %v1147 = vpack.c.b16 %v771, %v767
    %v1148 = vpack.c.b16 %v772, %v768
    %v1149 = vpack.c.b16 %v773, %v769
    %v1150 = vpack.c.b16 %v774, %v770
    %v1151 = vpack.c.b16 %v779, %v775
    %v1152 = vpack.c.b16 %v780, %v776
    %v1153 = vpack.c.b16 %v781, %v777
    %v1154 = vpack.c.b16 %v782, %v778
    %v1155 = vpack.c.b16 %v787, %v783
    %v1156 = vpack.c.b16 %v788, %v784
    %v1157 = vpack.c.b16 %v789, %v785
    %v1158 = vpack.c.b16 %v790, %v786
    %v1159 = vpack.c.b16 %v795, %v791
    %v1160 = vpack.c.b16 %v796, %v792
    %v1161 = vpack.c.b16 %v797, %v793
    %v1162 = vpack.c.b16 %v798, %v794
    %v1163 = vpack.c.b16 %v803, %v799
    %v1164 = vpack.c.b16 %v804, %v800
    %v1165 = vpack.c.b16 %v805, %v801
    %v1166 = vpack.c.b16 %v806, %v802
    %v1167 = vpack.c.b16 %v811, %v807
    %v1168 = vpack.c.b16 %v812, %v808
    %v1169 = vpack.c.b16 %v813, %v809
    %v1170 = vpack.c.b16 %v814, %v810
    %v1171 = vpack.c.b16 %v819, %v815
    %v1172 = vpack.c.b16 %v820, %v816
    %v1173 = vpack.c.b16 %v821, %v817
    %v1174 = vpack.c.b16 %v822, %v818
    %v1175 = vpack.c.b16 %v827, %v823
    %v1176 = vpack.c.b16 %v828, %v824
    %v1177 = vpack.c.b16 %v829, %v825
    %v1178 = vpack.c.b16 %v830, %v826
    %v1179 = vpack.c.b16 %v835, %v831
    %v1180 = vpack.c.b16 %v836, %v832
    %v1181 = vpack.c.b16 %v837, %v833
    %v1182 = vpack.c.b16 %v838, %v834
    %v1183 = vpack.c.b16 %v843, %v839
    %v1184 = vpack.c.b16 %v844, %v840
    %v1185 = vpack.c.b16 %v845, %v841
    %v1186 = vpack.c.b16 %v846, %v842
    %v1187 = vpack.c.b16 %v851, %v847
    %v1188 = vpack.c.b16 %v852, %v848
    %v1189 = vpack.c.b16 %v853, %v849
    %v1190 = vpack.c.b16 %v854, %v850
    %v1191 = vpack.c.b16 %v859, %v855
    %v1192 = vpack.c.b16 %v860, %v856
    %v1193 = vpack.c.b16 %v861, %v857
    %v1194 = vpack.c.b16 %v862, %v858
    %v1195 = vpack.c.b16 %v867, %v863
    %v1196 = vpack.c.b16 %v868, %v864
    %v1197 = vpack.c.b16 %v869, %v865
    %v1198 = vpack.c.b16 %v870, %v866
    %v1199 = vpack.c.b16 %v875, %v871
    %v1200 = vpack.c.b16 %v876, %v872
    %v1201 = vpack.c.b16 %v877, %v873
    %v1202 = vpack.c.b16 %v878, %v874
    %v1203 = vpack.c.b16 %v883, %v879
    %v1204 = vpack.c.b16 %v884, %v880
    %v1205 = vpack.c.b16 %v885, %v881
    %v1206 = vpack.c.b16 %v886, %v882
    %v1207 = vpack.c.b16 %v891, %v887
    %v1208 = vpack.c.b16 %v892, %v888
    %v1209 = vpack.c.b16 %v893, %v889
    %v1210 = vpack.c.b16 %v894, %v890
    %v1211 = vpack.c.b16 %v899, %v895
    %v1212 = vpack.c.b16 %v900, %v896
    %v1213 = vpack.c.b16 %v901, %v897
    %v1214 = vpack.c.b16 %v902, %v898
    %v1215 = vpack.c.b16 %v907, %v903
    %v1216 = vpack.c.b16 %v908, %v904
    %v1217 = vpack.c.b16 %v909, %v905
    %v1218 = vpack.c.b16 %v910, %v906
    %v1219 = vpack.c.b16 %v915, %v911
    %v1220 = vpack.c.b16 %v916, %v912
    %v1221 = vpack.c.b16 %v917, %v913
    %v1222 = vpack.c.b16 %v918, %v914
    %v1223 = vpack.c.b16 %v923, %v919
    %v1224 = vpack.c.b16 %v924, %v920
    %v1225 = vpack.c.b16 %v925, %v921
    %v1226 = vpack.c.b16 %v926, %v922
    %v1227 = vpack.c.b16 %v931, %v927
    %v1228 = vpack.c.b16 %v932, %v928
    %v1229 = vpack.c.b16 %v933, %v929
    %v1230 = vpack.c.b16 %v934, %v930
    %v1231 = vpack.c.b16 %v939, %v935
    %v1232 = vpack.c.b16 %v940, %v936
    %v1233 = vpack.c.b16 %v941, %v937
    %v1234 = vpack.c.b16 %v942, %v938
    %v1235 = vpack.c.b16 %v947, %v943
    %v1236 = vpack.c.b16 %v948, %v944
    %v1237 = vpack.c.b16 %v949, %v945
    %v1238 = vpack.c.b16 %v950, %v946
    %v1239 = vpack.c.b16 %v955, %v951
    %v1240 = vpack.c.b16 %v956, %v952
    %v1241 = vpack.c.b16 %v957, %v953
    %v1242 = vpack.c.b16 %v958, %v954
    %v1243 = vpack.c.b16 %v963, %v959
    %v1244 = vpack.c.b16 %v964, %v960
    %v1245 = vpack.c.b16 %v965, %v961
    %v1246 = vpack.c.b16 %v966, %v962
    %v1247 = vpack.c.b16 %v971, %v967
    %v1248 = vpack.c.b16 %v972, %v968
    %v1249 = vpack.c.b16 %v973, %v969
    %v1250 = vpack.c.b16 %v974, %v970
    %v1251 = vpack.c.b16 %v979, %v975
    %v1252 = vpack.c.b16 %v980, %v976
    %v1253 = vpack.c.b16 %v981, %v977
    %v1254 = vpack.c.b16 %v982, %v978
    %v1255 = vpack.c.b16 %v987, %v983
    %v1256 = vpack.c.b16 %v988, %v984
    %v1257 = vpack.c.b16 %v989, %v985
    %v1258 = vpack.c.b16 %v990, %v986
    %v1259 = vpack.c.b16 %v995, %v991
    %v1260 = vpack.c.b16 %v996, %v992
    %v1261 = vpack.c.b16 %v997, %v993
    %v1262 = vpack.c.b16 %v998, %v994
    %v1263 = vpack.c.b16 %v1003, %v999
    %v1264 = vpack.c.b16 %v1004, %v1000
    %v1265 = vpack.c.b16 %v1005, %v1001
    %v1266 = vpack.c.b16 %v1006, %v1002
    %v1267 = vpack.c.b16 %v1011, %v1007
    %v1268 = vpack.c.b16 %v1012, %v1008
    %v1269 = vpack.c.b16 %v1013, %v1009
    %v1270 = vpack.c.b16 %v1014, %v1010
    %v1271 = vpack.c.b16 %v1019, %v1015
    %v1272 = vpack.c.b16 %v1020, %v1016
    %v1273 = vpack.c.b16 %v1021, %v1017
    %v1274 = vpack.c.b16 %v1022, %v1018
    %v1275 = vpack.c.b16 %v1027, %v1023
    %v1276 = vpack.c.b16 %v1028, %v1024
    %v1277 = vpack.c.b16 %v1029, %v1025
    %v1278 = vpack.c.b16 %v1030, %v1026
    %v1279 = vpack.c.b16 %v1035, %v1031
    %v1280 = vpack.c.b16 %v1036, %v1032
    %v1281 = vpack.c.b16 %v1037, %v1033
    %v1282 = vpack.c.b16 %v1038, %v1034
    %v1283 = vpack.c.b16 %v1043, %v1039
    %v1284 = vpack.c.b16 %v1044, %v1040
    %v1285 = vpack.c.b16 %v1045, %v1041
    %v1286 = vpack.c.b16 %v1046, %v1042
    %v1287 = vpack.c.b16 %v1051, %v1047
    %v1288 = vpack.c.b16 %v1052, %v1048
    %v1289 = vpack.c.b16 %v1053, %v1049
    %v1290 = vpack.c.b16 %v1054, %v1050
    %v1291 = vpack.c.b16 %v1059, %v1055
    %v1292 = vpack.c.b16 %v1060, %v1056
    %v1293 = vpack.c.b16 %v1061, %v1057
    %v1294 = vpack.c.b16 %v1062, %v1058
    %v1295 = vpack.c.b16 %v1067, %v1063
    %v1296 = vpack.c.b16 %v1068, %v1064
    %v1297 = vpack.c.b16 %v1069, %v1065
    %v1298 = vpack.c.b16 %v1070, %v1066
    %v1299 = vpack.c.b16 %v1075, %v1071
    %v1300 = vpack.c.b16 %v1076, %v1072
    %v1301 = vpack.c.b16 %v1077, %v1073
    %v1302 = vpack.c.b16 %v1078, %v1074
    %1527 = vmatprep.subr.bf16.mxu0 %v1080
    %1528 = vmatpush1.bf16.msra.mxu0 %v1079
    %1529 = vmatprep.subr.bf16.mxu0 %v1084
    %1530 = vmatpush1.bf16.msra.mxu0 %v1083
    %1531 = vmatprep.subr.bf16.mxu0 %v1088
    %1532 = vmatpush1.bf16.msra.mxu0 %v1087
    %1533 = vmatprep.subr.bf16.mxu0 %v1092
    %1534 = vmatpush1.bf16.msra.mxu0 %v1091
    %1535 = vmatprep.subr.bf16.mxu0 %v1096
    %1536 = vmatpush1.bf16.msra.mxu0 %v1095
    %1537 = vmatprep.subr.bf16.mxu0 %v1100
    %1538 = vmatpush1.bf16.msra.mxu0 %v1099
    %1539 = vmatprep.subr.bf16.mxu0 %v1104
    %1540 = vmatpush1.bf16.msra.mxu0 %v1103
    %1541 = vmatprep.subr.bf16.mxu0 %v1108
    %1542 = vmatpush1.bf16.msra.mxu0 %v1107
    %1543 = vmatprep.subr.bf16.mxu0 %v1112
    %1544 = vmatpush1.bf16.msra.mxu0 %v1111
    %1545 = vmatprep.subr.bf16.mxu0 %v1116
    %1546 = vmatpush1.bf16.msra.mxu0 %v1115
    %1547 = vmatprep.subr.bf16.mxu0 %v1120
    %1548 = vmatpush1.bf16.msra.mxu0 %v1119
    %1549 = vmatprep.subr.bf16.mxu0 %v1124
    %1550 = vmatpush1.bf16.msra.mxu0 %v1123
    %1551 = vmatprep.subr.bf16.mxu0 %v1128
    %1552 = vmatpush1.bf16.msra.mxu0 %v1127
    %1553 = vmatprep.subr.bf16.mxu0 %v1132
    %1554 = vmatpush1.bf16.msra.mxu0 %v1131
    %1555 = vmatprep.subr.bf16.mxu0 %v1136
    %1556 = vmatpush1.bf16.msra.mxu0 %v1135
    %1557 = vmatprep.subr.bf16.mxu0 %v1140
    %1558 = vmatpush1.bf16.msra.mxu0 %v1139
    %1559 = vmatprep.mubr.bf16.mxu0 %v394
    %1560 = vmatmul.mubr.bf16.gmra.mrb[0].mxu0 %v393
    %v1561 = vpop.f32.mrb[0].mxu0
    %v1562 = vadd.f32 %v365, %v1561
    %v1563 = vpop.f32.mrb[0].mxu0
    %v1564 = vadd.f32 %v369, %v1563
    %v1565 = vpop.f32.mrb[0].mxu0
    %v1566 = vpop.f32.mrb[0].mxu0
    %1567 = vdwg.mxu0
    %1568 = vmatprep.subr.bf16.mxu0 %v1144
    %1569 = vmatpush1.bf16.msra.mxu0 %v1143
    %1570 = vmatprep.subr.bf16.mxu0 %v1148
    %1571 = vmatpush1.bf16.msra.mxu0 %v1147
    %1572 = vmatprep.subr.bf16.mxu0 %v1152
    %1573 = vmatpush1.bf16.msra.mxu0 %v1151
    %1574 = vmatprep.subr.bf16.mxu0 %v1156
    %1575 = vmatpush1.bf16.msra.mxu0 %v1155
    %1576 = vmatprep.subr.bf16.mxu0 %v1160
    %1577 = vmatpush1.bf16.msra.mxu0 %v1159
    %1578 = vmatprep.subr.bf16.mxu0 %v1164
    %1579 = vmatpush1.bf16.msra.mxu0 %v1163
    %1580 = vmatprep.subr.bf16.mxu0 %v1168
    %1581 = vmatpush1.bf16.msra.mxu0 %v1167
    %1582 = vmatprep.subr.bf16.mxu0 %v1172
    %1583 = vmatpush1.bf16.msra.mxu0 %v1171
    %1584 = vmatprep.subr.bf16.mxu0 %v1176
    %1585 = vmatpush1.bf16.msra.mxu0 %v1175
    %1586 = vmatprep.subr.bf16.mxu0 %v1180
    %1587 = vmatpush1.bf16.msra.mxu0 %v1179
    %1588 = vmatprep.subr.bf16.mxu0 %v1184
    %1589 = vmatpush1.bf16.msra.mxu0 %v1183
    %1590 = vmatprep.subr.bf16.mxu0 %v1188
    %1591 = vmatpush1.bf16.msra.mxu0 %v1187
    %1592 = vmatprep.subr.bf16.mxu0 %v1192
    %1593 = vmatpush1.bf16.msra.mxu0 %v1191
    %1594 = vmatprep.subr.bf16.mxu0 %v1196
    %1595 = vmatpush1.bf16.msra.mxu0 %v1195
    %1596 = vmatprep.subr.bf16.mxu0 %v1200
    %1597 = vmatpush1.bf16.msra.mxu0 %v1199
    %1598 = vmatprep.subr.bf16.mxu0 %v1204
    %1599 = vmatpush1.bf16.msra.mxu0 %v1203
    %1600 = vmatprep.mubr.bf16.mxu0 %v396
    %1601 = vmatmul.mubr.bf16.gmra.mrb[0].mxu0 %v395
    %v1602 = vpop.f32.mrb[0].mxu0
    %v1603 = vadd.f32 %v1562, %v1602
    %v1604 = vpop.f32.mrb[0].mxu0
    %v1605 = vadd.f32 %v1564, %v1604
    %v1606 = vpop.f32.mrb[0].mxu0
    %v1607 = vpop.f32.mrb[0].mxu0
    %1608 = vdwg.mxu0
    %1609 = vmatprep.subr.bf16.mxu0 %v1208
    %1610 = vmatpush1.bf16.msra.mxu0 %v1207
    %1611 = vmatprep.subr.bf16.mxu0 %v1212
    %1612 = vmatpush1.bf16.msra.mxu0 %v1211
    %1613 = vmatprep.subr.bf16.mxu0 %v1216
    %1614 = vmatpush1.bf16.msra.mxu0 %v1215
    %1615 = vmatprep.subr.bf16.mxu0 %v1220
    %1616 = vmatpush1.bf16.msra.mxu0 %v1219
    %1617 = vmatprep.subr.bf16.mxu0 %v1224
    %1618 = vmatpush1.bf16.msra.mxu0 %v1223
    %1619 = vmatprep.subr.bf16.mxu0 %v1228
    %1620 = vmatpush1.bf16.msra.mxu0 %v1227
    %1621 = vmatprep.subr.bf16.mxu0 %v1232
    %1622 = vmatpush1.bf16.msra.mxu0 %v1231
    %1623 = vmatprep.subr.bf16.mxu0 %v1236
    %1624 = vmatpush1.bf16.msra.mxu0 %v1235
    %1625 = vmatprep.subr.bf16.mxu0 %v1240
    %1626 = vmatpush1.bf16.msra.mxu0 %v1239
    %1627 = vmatprep.subr.bf16.mxu0 %v1244
    %1628 = vmatpush1.bf16.msra.mxu0 %v1243
    %1629 = vmatprep.subr.bf16.mxu0 %v1248
    %1630 = vmatpush1.bf16.msra.mxu0 %v1247
    %1631 = vmatprep.subr.bf16.mxu0 %v1252
    %1632 = vmatpush1.bf16.msra.mxu0 %v1251
    %1633 = vmatprep.subr.bf16.mxu0 %v1256
    %1634 = vmatpush1.bf16.msra.mxu0 %v1255
    %1635 = vmatprep.subr.bf16.mxu0 %v1260
    %1636 = vmatpush1.bf16.msra.mxu0 %v1259
    %1637 = vmatprep.subr.bf16.mxu0 %v1264
    %1638 = vmatpush1.bf16.msra.mxu0 %v1263
    %1639 = vmatprep.subr.bf16.mxu0 %v1268
    %1640 = vmatpush1.bf16.msra.mxu0 %v1267
    %1641 = vmatprep.mubr.bf16.mxu0 %v398
    %1642 = vmatmul.mubr.bf16.gmra.mrb[0].mxu0 %v397
    %v1643 = vpop.f32.mrb[0].mxu0
    %v1644 = vadd.f32 %v1603, %v1643
    %v1645 = vpop.f32.mrb[0].mxu0
    %v1646 = vadd.f32 %v1605, %v1645
    %v1647 = vpop.f32.mrb[0].mxu0
    %v1648 = vpop.f32.mrb[0].mxu0
    %1649 = vdwg.mxu0
    %1650 = vmatprep.subr.bf16.mxu0 %v1272
    %1651 = vmatpush1.bf16.msra.mxu0 %v1271
    %1652 = vmatprep.subr.bf16.mxu0 %v1276
    %1653 = vmatpush1.bf16.msra.mxu0 %v1275
    %1654 = vmatprep.subr.bf16.mxu0 %v1280
    %1655 = vmatpush1.bf16.msra.mxu0 %v1279
    %1656 = vmatprep.subr.bf16.mxu0 %v1284
    %1657 = vmatpush1.bf16.msra.mxu0 %v1283
    %1658 = vmatprep.subr.bf16.mxu0 %v1288
    %1659 = vmatpush1.bf16.msra.mxu0 %v1287
    %1660 = vmatprep.subr.bf16.mxu0 %v1292
    %1661 = vmatpush1.bf16.msra.mxu0 %v1291
    %1662 = vmatprep.subr.bf16.mxu0 %v1296
    %1663 = vmatpush1.bf16.msra.mxu0 %v1295
    %1664 = vmatprep.subr.bf16.mxu0 %v1300
    %1665 = vmatpush1.bf16.msra.mxu0 %v1299
    %1666 = vmatprep.subr.bf16.mxu0 0
    %1667 = vmatpush1.bf16.msra.mxu0 0
    %1668 = vmatprep.subr.bf16.mxu0 0
    %1669 = vmatpush1.bf16.msra.mxu0 0
    %1670 = vmatprep.subr.bf16.mxu0 0
    %1671 = vmatpush1.bf16.msra.mxu0 0
    %1672 = vmatprep.subr.bf16.mxu0 0
    %1673 = vmatpush1.bf16.msra.mxu0 0
    %1674 = vmatprep.subr.bf16.mxu0 0
    %1675 = vmatpush1.bf16.msra.mxu0 0
    %1676 = vmatprep.subr.bf16.mxu0 0
    %1677 = vmatpush1.bf16.msra.mxu0 0
    %1678 = vmatprep.subr.bf16.mxu0 0
    %1679 = vmatpush1.bf16.msra.mxu0 0
    %1680 = vmatprep.subr.bf16.mxu0 0
    %1681 = vmatpush1.bf16.msra.mxu0 0
    %1682 = vmatprep.mubr.bf16.mxu0 0
    %1683 = vmatmul.mubr.bf16.gmra.mrb[0].mxu0 %v399
    %v1684 = vpop.f32.mrb[0].mxu0
    %v1685 = vadd.f32 %v1644, %v1684
    %v1686 = vpop.f32.mrb[0].mxu0
    %v1687 = vadd.f32 %v1646, %v1686
    %v1688 = vpop.f32.mrb[0].mxu0
    %v1689 = vpop.f32.mrb[0].mxu0
    %1690 = vdwg.mxu0
    %1691 = vmatprep.subr.bf16.mxu0 %v1082
    %1692 = vmatpush1.bf16.msra.mxu0 %v1081
    %1693 = vmatprep.subr.bf16.mxu0 %v1086
    %1694 = vmatpush1.bf16.msra.mxu0 %v1085
    %1695 = vmatprep.subr.bf16.mxu0 %v1090
    %1696 = vmatpush1.bf16.msra.mxu0 %v1089
    %1697 = vmatprep.subr.bf16.mxu0 %v1094
    %1698 = vmatpush1.bf16.msra.mxu0 %v1093
    %1699 = vmatprep.subr.bf16.mxu0 %v1098
    %1700 = vmatpush1.bf16.msra.mxu0 %v1097
    %1701 = vmatprep.subr.bf16.mxu0 %v1102
    %1702 = vmatpush1.bf16.msra.mxu0 %v1101
    %1703 = vmatprep.subr.bf16.mxu0 %v1106
    %1704 = vmatpush1.bf16.msra.mxu0 %v1105
    %1705 = vmatprep.subr.bf16.mxu0 %v1110
    %1706 = vmatpush1.bf16.msra.mxu0 %v1109
    %1707 = vmatprep.subr.bf16.mxu0 %v1114
    %1708 = vmatpush1.bf16.msra.mxu0 %v1113
    %1709 = vmatprep.subr.bf16.mxu0 %v1118
    %1710 = vmatpush1.bf16.msra.mxu0 %v1117
    %1711 = vmatprep.subr.bf16.mxu0 %v1122
    %1712 = vmatpush1.bf16.msra.mxu0 %v1121
    %1713 = vmatprep.subr.bf16.mxu0 %v1126
    %1714 = vmatpush1.bf16.msra.mxu0 %v1125
    %1715 = vmatprep.subr.bf16.mxu0 %v1130
    %1716 = vmatpush1.bf16.msra.mxu0 %v1129
    %1717 = vmatprep.subr.bf16.mxu0 %v1134
    %1718 = vmatpush1.bf16.msra.mxu0 %v1133
    %1719 = vmatprep.subr.bf16.mxu0 %v1138
    %1720 = vmatpush1.bf16.msra.mxu0 %v1137
    %1721 = vmatprep.subr.bf16.mxu0 %v1142
    %1722 = vmatpush1.bf16.msra.mxu0 %v1141
    %1723 = vmatprep.mubr.bf16.mxu0 %v394
    %1724 = vmatmul.mubr.bf16.gmra.mrb[0].mxu0 %v393
    %v1725 = vpop.f32.mrb[0].mxu0
    %v1726 = vadd.f32 %v373, %v1725
    %v1727 = vpop.f32.mrb[0].mxu0
    %v1728 = vadd.f32 %v377, %v1727
    %v1729 = vpop.f32.mrb[0].mxu0
    %v1730 = vpop.f32.mrb[0].mxu0
    %1731 = vdwg.mxu0
    %1732 = vmatprep.subr.bf16.mxu0 %v1146
    %1733 = vmatpush1.bf16.msra.mxu0 %v1145
    %1734 = vmatprep.subr.bf16.mxu0 %v1150
    %1735 = vmatpush1.bf16.msra.mxu0 %v1149
    %1736 = vmatprep.subr.bf16.mxu0 %v1154
    %1737 = vmatpush1.bf16.msra.mxu0 %v1153
    %1738 = vmatprep.subr.bf16.mxu0 %v1158
    %1739 = vmatpush1.bf16.msra.mxu0 %v1157
    %1740 = vmatprep.subr.bf16.mxu0 %v1162
    %1741 = vmatpush1.bf16.msra.mxu0 %v1161
    %1742 = vmatprep.subr.bf16.mxu0 %v1166
    %1743 = vmatpush1.bf16.msra.mxu0 %v1165
    %1744 = vmatprep.subr.bf16.mxu0 %v1170
    %1745 = vmatpush1.bf16.msra.mxu0 %v1169
    %1746 = vmatprep.subr.bf16.mxu0 %v1174
    %1747 = vmatpush1.bf16.msra.mxu0 %v1173
    %1748 = vmatprep.subr.bf16.mxu0 %v1178
    %1749 = vmatpush1.bf16.msra.mxu0 %v1177
    %1750 = vmatprep.subr.bf16.mxu0 %v1182
    %1751 = vmatpush1.bf16.msra.mxu0 %v1181
    %1752 = vmatprep.subr.bf16.mxu0 %v1186
    %1753 = vmatpush1.bf16.msra.mxu0 %v1185
    %1754 = vmatprep.subr.bf16.mxu0 %v1190
    %1755 = vmatpush1.bf16.msra.mxu0 %v1189
    %1756 = vmatprep.subr.bf16.mxu0 %v1194
    %1757 = vmatpush1.bf16.msra.mxu0 %v1193
    %1758 = vmatprep.subr.bf16.mxu0 %v1198
    %1759 = vmatpush1.bf16.msra.mxu0 %v1197
    %1760 = vmatprep.subr.bf16.mxu0 %v1202
    %1761 = vmatpush1.bf16.msra.mxu0 %v1201
    %1762 = vmatprep.subr.bf16.mxu0 %v1206
    %1763 = vmatpush1.bf16.msra.mxu0 %v1205
    %1764 = vmatprep.mubr.bf16.mxu0 %v396
    %1765 = vmatmul.mubr.bf16.gmra.mrb[0].mxu0 %v395
    %v1766 = vpop.f32.mrb[0].mxu0
    %v1767 = vadd.f32 %v1726, %v1766
    %v1768 = vpop.f32.mrb[0].mxu0
    %v1769 = vadd.f32 %v1728, %v1768
    %v1770 = vpop.f32.mrb[0].mxu0
    %v1771 = vpop.f32.mrb[0].mxu0
    %1772 = vdwg.mxu0
    %1773 = vmatprep.subr.bf16.mxu0 %v1210
    %1774 = vmatpush1.bf16.msra.mxu0 %v1209
    %1775 = vmatprep.subr.bf16.mxu0 %v1214
    %1776 = vmatpush1.bf16.msra.mxu0 %v1213
    %1777 = vmatprep.subr.bf16.mxu0 %v1218
    %1778 = vmatpush1.bf16.msra.mxu0 %v1217
    %1779 = vmatprep.subr.bf16.mxu0 %v1222
    %1780 = vmatpush1.bf16.msra.mxu0 %v1221
    %1781 = vmatprep.subr.bf16.mxu0 %v1226
    %1782 = vmatpush1.bf16.msra.mxu0 %v1225
    %1783 = vmatprep.subr.bf16.mxu0 %v1230
    %1784 = vmatpush1.bf16.msra.mxu0 %v1229
    %1785 = vmatprep.subr.bf16.mxu0 %v1234
    %1786 = vmatpush1.bf16.msra.mxu0 %v1233
    %1787 = vmatprep.subr.bf16.mxu0 %v1238
    %1788 = vmatpush1.bf16.msra.mxu0 %v1237
    %1789 = vmatprep.subr.bf16.mxu0 %v1242
    %1790 = vmatpush1.bf16.msra.mxu0 %v1241
    %1791 = vmatprep.subr.bf16.mxu0 %v1246
    %1792 = vmatpush1.bf16.msra.mxu0 %v1245
    %1793 = vmatprep.subr.bf16.mxu0 %v1250
    %1794 = vmatpush1.bf16.msra.mxu0 %v1249
    %1795 = vmatprep.subr.bf16.mxu0 %v1254
    %1796 = vmatpush1.bf16.msra.mxu0 %v1253
    %1797 = vmatprep.subr.bf16.mxu0 %v1258
    %1798 = vmatpush1.bf16.msra.mxu0 %v1257
    %1799 = vmatprep.subr.bf16.mxu0 %v1262
    %1800 = vmatpush1.bf16.msra.mxu0 %v1261
    %1801 = vmatprep.subr.bf16.mxu0 %v1266
    %1802 = vmatpush1.bf16.msra.mxu0 %v1265
    %1803 = vmatprep.subr.bf16.mxu0 %v1270
    %1804 = vmatpush1.bf16.msra.mxu0 %v1269
    %1805 = vmatprep.mubr.bf16.mxu0 %v398
    %1806 = vmatmul.mubr.bf16.gmra.mrb[0].mxu0 %v397
    %v1807 = vpop.f32.mrb[0].mxu0
    %v1808 = vadd.f32 %v1767, %v1807
    %v1809 = vpop.f32.mrb[0].mxu0
    %v1810 = vadd.f32 %v1769, %v1809
    %v1811 = vpop.f32.mrb[0].mxu0
    %v1812 = vpop.f32.mrb[0].mxu0
    %1813 = vdwg.mxu0
    %1814 = vmatprep.subr.bf16.mxu0 %v1274
    %1815 = vmatpush1.bf16.msra.mxu0 %v1273
    %1816 = vmatprep.subr.bf16.mxu0 %v1278
    %1817 = vmatpush1.bf16.msra.mxu0 %v1277
    %1818 = vmatprep.subr.bf16.mxu0 %v1282
    %1819 = vmatpush1.bf16.msra.mxu0 %v1281
    %1820 = vmatprep.subr.bf16.mxu0 %v1286
    %1821 = vmatpush1.bf16.msra.mxu0 %v1285
    %1822 = vmatprep.subr.bf16.mxu0 %v1290
    %1823 = vmatpush1.bf16.msra.mxu0 %v1289
    %1824 = vmatprep.subr.bf16.mxu0 %v1294
    %1825 = vmatpush1.bf16.msra.mxu0 %v1293
    %1826 = vmatprep.subr.bf16.mxu0 %v1298
    %1827 = vmatpush1.bf16.msra.mxu0 %v1297
    %1828 = vmatprep.subr.bf16.mxu0 %v1302
    %1829 = vmatpush1.bf16.msra.mxu0 %v1301
    %1830 = vmatprep.subr.bf16.mxu0 0
    %1831 = vmatpush1.bf16.msra.mxu0 0
    %1832 = vmatprep.subr.bf16.mxu0 0
    %1833 = vmatpush1.bf16.msra.mxu0 0
    %1834 = vmatprep.subr.bf16.mxu0 0
    %1835 = vmatpush1.bf16.msra.mxu0 0
    %1836 = vmatprep.subr.bf16.mxu0 0
    %1837 = vmatpush1.bf16.msra.mxu0 0
    %1838 = vmatprep.subr.bf16.mxu0 0
    %1839 = vmatpush1.bf16.msra.mxu0 0
    %1840 = vmatprep.subr.bf16.mxu0 0
    %1841 = vmatpush1.bf16.msra.mxu0 0
    %1842 = vmatprep.subr.bf16.mxu0 0
    %1843 = vmatpush1.bf16.msra.mxu0 0
    %1844 = vmatprep.subr.bf16.mxu0 0
    %1845 = vmatpush1.bf16.msra.mxu0 0
    %1846 = vmatprep.mubr.bf16.mxu0 0
    %1847 = vmatmul.mubr.bf16.gmra.mrb[0].mxu0 %v399
    %v1848 = vpop.f32.mrb[0].mxu0
    %v1849 = vadd.f32 %v1808, %v1848
    %v1850 = vpop.f32.mrb[0].mxu0
    %v1851 = vadd.f32 %v1810, %v1850
    %v1852 = vpop.f32.mrb[0].mxu0
    %v1853 = vpop.f32.mrb[0].mxu0
    %1854 = vdwg.mxu0
    %v1855 = vmax.f32 %v1685, 0.0
    %v1856 = vmax.f32 %v1687, 0.0
    %v1857 = vmax.f32 %v1849, 0.0
    %v1858 = vmax.f32 %v1851, 0.0
    %v1859 = vpack.c.bf16 %v1855, %v1855
    %v1860 = vpack.c.bf16 %v1856, %v1856
    %v1861 = vpack.c.bf16 %v1857, %v1857
    %v1862 = vpack.c.bf16 %v1858, %v1858
    %v1863 = vld [vmem:[#allocation4] sm:$0xff]
    %v1864 = vld [vmem:[#allocation4 + $0x8] sm:$0xff]
    %v1865 = vld [vmem:[#allocation4 + $0x10] sm:$0xff]
    %v1866 = vld [vmem:[#allocation4 + $0x18] sm:$0xff]
    %v1867 = vld [vmem:[#allocation4 + $0x20] sm:$0xff]
    %v1868 = vld [vmem:[#allocation4 + $0x28] sm:$0xff]
    %v1869 = vld [vmem:[#allocation4 + $0x30] sm:$0xff]
    %v1870 = vld [vmem:[#allocation4 + $0x38] sm:$0xff]
    %v1871 = vld [vmem:[#allocation4 + $0x40] sm:$0xff]
    %v1872 = vld [vmem:[#allocation4 + $0x48] sm:$0xff]
    %v1873 = vld [vmem:[#allocation4 + $0x50] sm:$0xff]
    %v1874 = vld [vmem:[#allocation4 + $0x58] sm:$0xff]
    %v1875 = vld [vmem:[#allocation4 + $0x60] sm:$0xff]
    %v1876 = vld [vmem:[#allocation4 + $0x68] sm:$0xff]
    %v1877 = vld [vmem:[#allocation4 + $0x70] sm:$0xff]
    %v1878 = vld [vmem:[#allocation4 + $0x78] sm:$0xff]
    %v1879 = vld [vmem:[#allocation4 + $0x80] sm:$0xff]
    %v1880 = vld [vmem:[#allocation4 + $0x88] sm:$0xff]
    %v1881 = vld [vmem:[#allocation4 + $0x90] sm:$0xff]
    %v1882 = vld [vmem:[#allocation4 + $0x98] sm:$0xff]
    %v1883 = vld [vmem:[#allocation4 + $0xa0] sm:$0xff]
    %v1884 = vld [vmem:[#allocation4 + $0xa8] sm:$0xff]
    %v1885 = vld [vmem:[#allocation4 + $0xb0] sm:$0xff]
    %v1886 = vld [vmem:[#allocation4 + $0xb8] sm:$0xff]
    %v1887 = vld [vmem:[#allocation4 + $0xc0] sm:$0xff]
    %v1888 = vld [vmem:[#allocation4 + $0xc8] sm:$0xff]
    %v1889 = vld [vmem:[#allocation4 + $0xd0] sm:$0xff]
    %v1890 = vld [vmem:[#allocation4 + $0xd8] sm:$0xff]
    %v1891 = vld [vmem:[#allocation4 + $0xe0] sm:$0xff]
    %v1892 = vld [vmem:[#allocation4 + $0xe8] sm:$0xff]
    %v1893 = vld [vmem:[#allocation4 + $0xf0] sm:$0xff]
    %v1894 = vld [vmem:[#allocation4 + $0xf8] sm:$0xff]
    %v1895 = vld [vmem:[#allocation4 + $0x100] sm:$0xff]
    %v1896 = vld [vmem:[#allocation4 + $0x108] sm:$0xff]
    %v1897 = vld [vmem:[#allocation4 + $0x110] sm:$0xff]
    %v1898 = vld [vmem:[#allocation4 + $0x118] sm:$0xff]
    %v1899 = vld [vmem:[#allocation4 + $0x120] sm:$0xff]
    %v1900 = vld [vmem:[#allocation4 + $0x128] sm:$0xff]
    %v1901 = vld [vmem:[#allocation4 + $0x130] sm:$0xff]
    %v1902 = vld [vmem:[#allocation4 + $0x138] sm:$0xff]
    %v1903 = vld [vmem:[#allocation4 + $0x140] sm:$0xff]
    %v1904 = vld [vmem:[#allocation4 + $0x148] sm:$0xff]
    %v1905 = vld [vmem:[#allocation4 + $0x150] sm:$0xff]
    %v1906 = vld [vmem:[#allocation4 + $0x158] sm:$0xff]
    %v1907 = vld [vmem:[#allocation4 + $0x160] sm:$0xff]
    %v1908 = vld [vmem:[#allocation4 + $0x168] sm:$0xff]
    %v1909 = vld [vmem:[#allocation4 + $0x170] sm:$0xff]
    %v1910 = vld [vmem:[#allocation4 + $0x178] sm:$0xff]
    %v1911 = vld [vmem:[#allocation4 + $0x180] sm:$0xff]
    %v1912 = vld [vmem:[#allocation4 + $0x188] sm:$0xff]
    %v1913 = vld [vmem:[#allocation4 + $0x190] sm:$0xff]
    %v1914 = vld [vmem:[#allocation4 + $0x198] sm:$0xff]
    %v1915 = vld [vmem:[#allocation4 + $0x1a0] sm:$0xff]
    %v1916 = vld [vmem:[#allocation4 + $0x1a8] sm:$0xff]
    %v1917 = vld [vmem:[#allocation4 + $0x1b0] sm:$0xff]
    %v1918 = vld [vmem:[#allocation4 + $0x1b8] sm:$0xff]
    %v1919 = vld [vmem:[#allocation4 + $0x1c0] sm:$0xff]
    %v1920 = vld [vmem:[#allocation4 + $0x1c8] sm:$0xff]
    %v1921 = vld [vmem:[#allocation4 + $0x1d0] sm:$0xff]
    %v1922 = vld [vmem:[#allocation4 + $0x1d8] sm:$0xff]
    %v1923 = vld [vmem:[#allocation4 + $0x1e0] sm:$0xff]
    %v1924 = vld [vmem:[#allocation4 + $0x1e8] sm:$0xff]
    %v1925 = vld [vmem:[#allocation4 + $0x1f0] sm:$0xff]
    %v1926 = vld [vmem:[#allocation4 + $0x1f8] sm:$0xff]
    %v1927 = vld [vmem:[#allocation4 + $0x200] sm:$0xff]
    %v1928 = vld [vmem:[#allocation4 + $0x208] sm:$0xff]
    %v1929 = vld [vmem:[#allocation4 + $0x210] sm:$0xff]
    %v1930 = vld [vmem:[#allocation4 + $0x218] sm:$0xff]
    %v1931 = vld [vmem:[#allocation4 + $0x220] sm:$0xff]
    %v1932 = vld [vmem:[#allocation4 + $0x228] sm:$0xff]
    %v1933 = vld [vmem:[#allocation4 + $0x230] sm:$0xff]
    %v1934 = vld [vmem:[#allocation4 + $0x238] sm:$0xff]
    %v1935 = vld [vmem:[#allocation4 + $0x240] sm:$0xff]
    %v1936 = vld [vmem:[#allocation4 + $0x248] sm:$0xff]
    %v1937 = vld [vmem:[#allocation4 + $0x250] sm:$0xff]
    %v1938 = vld [vmem:[#allocation4 + $0x258] sm:$0xff]
    %v1939 = vld [vmem:[#allocation4 + $0x260] sm:$0xff]
    %v1940 = vld [vmem:[#allocation4 + $0x268] sm:$0xff]
    %v1941 = vld [vmem:[#allocation4 + $0x270] sm:$0xff]
    %v1942 = vld [vmem:[#allocation4 + $0x278] sm:$0xff]
    %v1943 = vld [vmem:[#allocation4 + $0x280] sm:$0xff]
    %v1944 = vld [vmem:[#allocation4 + $0x288] sm:$0xff]
    %v1945 = vld [vmem:[#allocation4 + $0x290] sm:$0xff]
    %v1946 = vld [vmem:[#allocation4 + $0x298] sm:$0xff]
    %v1947 = vld [vmem:[#allocation4 + $0x2a0] sm:$0xff]
    %v1948 = vld [vmem:[#allocation4 + $0x2a8] sm:$0xff]
    %v1949 = vld [vmem:[#allocation4 + $0x2b0] sm:$0xff]
    %v1950 = vld [vmem:[#allocation4 + $0x2b8] sm:$0xff]
    %v1951 = vld [vmem:[#allocation4 + $0x2c0] sm:$0xff]
    %v1952 = vld [vmem:[#allocation4 + $0x2c8] sm:$0xff]
    %v1953 = vld [vmem:[#allocation4 + $0x2d0] sm:$0xff]
    %v1954 = vld [vmem:[#allocation4 + $0x2d8] sm:$0xff]
    %v1955 = vld [vmem:[#allocation4 + $0x2e0] sm:$0xff]
    %v1956 = vld [vmem:[#allocation4 + $0x2e8] sm:$0xff]
    %v1957 = vld [vmem:[#allocation4 + $0x2f0] sm:$0xff]
    %v1958 = vld [vmem:[#allocation4 + $0x2f8] sm:$0xff]
    %v1959 = vld [vmem:[#allocation4 + $0x300] sm:$0xff]
    %v1960 = vld [vmem:[#allocation4 + $0x308] sm:$0xff]
    %v1961 = vld [vmem:[#allocation4 + $0x310] sm:$0xff]
    %v1962 = vld [vmem:[#allocation4 + $0x318] sm:$0xff]
    %v1963 = vld [vmem:[#allocation4 + $0x320] sm:$0xff]
    %v1964 = vld [vmem:[#allocation4 + $0x328] sm:$0xff]
    %v1965 = vld [vmem:[#allocation4 + $0x330] sm:$0xff]
    %v1966 = vld [vmem:[#allocation4 + $0x338] sm:$0xff]
    %v1967 = vld [vmem:[#allocation4 + $0x340] sm:$0xff]
    %v1968 = vld [vmem:[#allocation4 + $0x348] sm:$0xff]
    %v1969 = vld [vmem:[#allocation4 + $0x350] sm:$0xff]
    %v1970 = vld [vmem:[#allocation4 + $0x358] sm:$0xff]
    %v1971 = vld [vmem:[#allocation4 + $0x360] sm:$0xff]
    %v1972 = vld [vmem:[#allocation4 + $0x368] sm:$0xff]
    %v1973 = vld [vmem:[#allocation4 + $0x370] sm:$0xff]
    %v1974 = vld [vmem:[#allocation4 + $0x378] sm:$0xff]
    %v1975 = vld [vmem:[#allocation4 + $0x380] sm:$0xff]
    %v1976 = vld [vmem:[#allocation4 + $0x388] sm:$0xff]
    %v1977 = vld [vmem:[#allocation4 + $0x390] sm:$0xff]
    %v1978 = vld [vmem:[#allocation4 + $0x398] sm:$0xff]
    %v1979 = vld [vmem:[#allocation4 + $0x3a0] sm:$0xff]
    %v1980 = vld [vmem:[#allocation4 + $0x3a8] sm:$0xff]
    %v1981 = vld [vmem:[#allocation4 + $0x3b0] sm:$0xff]
    %v1982 = vld [vmem:[#allocation4 + $0x3b8] sm:$0xff]
    %v1983 = vld [vmem:[#allocation4 + $0x3c0] sm:$0xff]
    %v1984 = vld [vmem:[#allocation4 + $0x3c8] sm:$0xff]
    %v1985 = vld [vmem:[#allocation4 + $0x3d0] sm:$0xff]
    %v1986 = vld [vmem:[#allocation4 + $0x3d8] sm:$0xff]
    %v1987 = vld [vmem:[#allocation4 + $0x3e0] sm:$0xff]
    %v1988 = vld [vmem:[#allocation4 + $0x3e8] sm:$0xff]
    %v1989 = vld [vmem:[#allocation4 + $0x3f0] sm:$0xff]
    %v1990 = vld [vmem:[#allocation4 + $0x3f8] sm:$0xff]
    %v1991 = vld [vmem:[%s5] sm:$0xf]
    %v1993 = vlaneseq
    %v1994 = vshrl.u32 %v1993, 7
    %v1995 = vsub.s32 0, %v1994
    %v1996 = vrot.slane %v1991, %v1995
    %v1997 = vlaneseq
    %v1998 = vshrl.u32 %v1997, 7
    %v1999 = vsub.s32 1, %v1998
    %v2000 = vrot.slane %v1991, %v1999
    %v2001 = vlaneseq
    %v2002 = vshrl.u32 %v2001, 7
    %v2003 = vsub.s32 2, %v2002
    %v2004 = vrot.slane %v1991, %v2003
    %v2005 = vlaneseq
    %v2006 = vshrl.u32 %v2005, 7
    %v2007 = vsub.s32 3, %v2006
    %v2008 = vrot.slane %v1991, %v2007
    %v2141 = vunpack.c.l.b16 %v1863
    %v2142 = vunpack.c.h.b16 %v1863
    %v2143 = vunpack.c.l.b16 %v1864
    %v2144 = vunpack.c.h.b16 %v1864
    %v2145 = vunpack.c.l.b16 %v1865
    %v2146 = vunpack.c.h.b16 %v1865
    %v2147 = vunpack.c.l.b16 %v1866
    %v2148 = vunpack.c.h.b16 %v1866
    %v2149 = vunpack.c.l.b16 %v1867
    %v2150 = vunpack.c.h.b16 %v1867
    %v2151 = vunpack.c.l.b16 %v1868
    %v2152 = vunpack.c.h.b16 %v1868
    %v2153 = vunpack.c.l.b16 %v1869
    %v2154 = vunpack.c.h.b16 %v1869
    %v2155 = vunpack.c.l.b16 %v1870
    %v2156 = vunpack.c.h.b16 %v1870
    %v2157 = vunpack.c.l.b16 %v1871
    %v2158 = vunpack.c.h.b16 %v1871
    %v2159 = vunpack.c.l.b16 %v1872
    %v2160 = vunpack.c.h.b16 %v1872
    %v2161 = vunpack.c.l.b16 %v1873
    %v2162 = vunpack.c.h.b16 %v1873
    %v2163 = vunpack.c.l.b16 %v1874
    %v2164 = vunpack.c.h.b16 %v1874
    %v2165 = vunpack.c.l.b16 %v1875
    %v2166 = vunpack.c.h.b16 %v1875
    %v2167 = vunpack.c.l.b16 %v1876
    %v2168 = vunpack.c.h.b16 %v1876
    %v2169 = vunpack.c.l.b16 %v1877
    %v2170 = vunpack.c.h.b16 %v1877
    %v2171 = vunpack.c.l.b16 %v1878
    %v2172 = vunpack.c.h.b16 %v1878
    %v2173 = vunpack.c.l.b16 %v1879
    %v2174 = vunpack.c.h.b16 %v1879
    %v2175 = vunpack.c.l.b16 %v1880
    %v2176 = vunpack.c.h.b16 %v1880
    %v2177 = vunpack.c.l.b16 %v1881
    %v2178 = vunpack.c.h.b16 %v1881
    %v2179 = vunpack.c.l.b16 %v1882
    %v2180 = vunpack.c.h.b16 %v1882
    %v2181 = vunpack.c.l.b16 %v1883
    %v2182 = vunpack.c.h.b16 %v1883
    %v2183 = vunpack.c.l.b16 %v1884
    %v2184 = vunpack.c.h.b16 %v1884
    %v2185 = vunpack.c.l.b16 %v1885
    %v2186 = vunpack.c.h.b16 %v1885
    %v2187 = vunpack.c.l.b16 %v1886
    %v2188 = vunpack.c.h.b16 %v1886
    %v2189 = vunpack.c.l.b16 %v1887
    %v2190 = vunpack.c.h.b16 %v1887
    %v2191 = vunpack.c.l.b16 %v1888
    %v2192 = vunpack.c.h.b16 %v1888
    %v2193 = vunpack.c.l.b16 %v1889
    %v2194 = vunpack.c.h.b16 %v1889
    %v2195 = vunpack.c.l.b16 %v1890
    %v2196 = vunpack.c.h.b16 %v1890
    %v2197 = vunpack.c.l.b16 %v1891
    %v2198 = vunpack.c.h.b16 %v1891
    %v2199 = vunpack.c.l.b16 %v1892
    %v2200 = vunpack.c.h.b16 %v1892
    %v2201 = vunpack.c.l.b16 %v1893
    %v2202 = vunpack.c.h.b16 %v1893
    %v2203 = vunpack.c.l.b16 %v1894
    %v2204 = vunpack.c.h.b16 %v1894
    %v2205 = vunpack.c.l.b16 %v1895
    %v2206 = vunpack.c.h.b16 %v1895
    %v2207 = vunpack.c.l.b16 %v1896
    %v2208 = vunpack.c.h.b16 %v1896
    %v2209 = vunpack.c.l.b16 %v1897
    %v2210 = vunpack.c.h.b16 %v1897
    %v2211 = vunpack.c.l.b16 %v1898
    %v2212 = vunpack.c.h.b16 %v1898
    %v2213 = vunpack.c.l.b16 %v1899
    %v2214 = vunpack.c.h.b16 %v1899
    %v2215 = vunpack.c.l.b16 %v1900
    %v2216 = vunpack.c.h.b16 %v1900
    %v2217 = vunpack.c.l.b16 %v1901
    %v2218 = vunpack.c.h.b16 %v1901
    %v2219 = vunpack.c.l.b16 %v1902
    %v2220 = vunpack.c.h.b16 %v1902
    %v2221 = vunpack.c.l.b16 %v1903
    %v2222 = vunpack.c.h.b16 %v1903
    %v2223 = vunpack.c.l.b16 %v1904
    %v2224 = vunpack.c.h.b16 %v1904
    %v2225 = vunpack.c.l.b16 %v1905
    %v2226 = vunpack.c.h.b16 %v1905
    %v2227 = vunpack.c.l.b16 %v1906
    %v2228 = vunpack.c.h.b16 %v1906
    %v2229 = vunpack.c.l.b16 %v1907
    %v2230 = vunpack.c.h.b16 %v1907
    %v2231 = vunpack.c.l.b16 %v1908
    %v2232 = vunpack.c.h.b16 %v1908
    %v2233 = vunpack.c.l.b16 %v1909
    %v2234 = vunpack.c.h.b16 %v1909
    %v2235 = vunpack.c.l.b16 %v1910
    %v2236 = vunpack.c.h.b16 %v1910
    %v2237 = vunpack.c.l.b16 %v1911
    %v2238 = vunpack.c.h.b16 %v1911
    %v2239 = vunpack.c.l.b16 %v1912
    %v2240 = vunpack.c.h.b16 %v1912
    %v2241 = vunpack.c.l.b16 %v1913
    %v2242 = vunpack.c.h.b16 %v1913
    %v2243 = vunpack.c.l.b16 %v1914
    %v2244 = vunpack.c.h.b16 %v1914
    %v2245 = vunpack.c.l.b16 %v1915
    %v2246 = vunpack.c.h.b16 %v1915
    %v2247 = vunpack.c.l.b16 %v1916
    %v2248 = vunpack.c.h.b16 %v1916
    %v2249 = vunpack.c.l.b16 %v1917
    %v2250 = vunpack.c.h.b16 %v1917
    %v2251 = vunpack.c.l.b16 %v1918
    %v2252 = vunpack.c.h.b16 %v1918
    %v2253 = vunpack.c.l.b16 %v1919
    %v2254 = vunpack.c.h.b16 %v1919
    %v2255 = vunpack.c.l.b16 %v1920
    %v2256 = vunpack.c.h.b16 %v1920
    %v2257 = vunpack.c.l.b16 %v1921
    %v2258 = vunpack.c.h.b16 %v1921
    %v2259 = vunpack.c.l.b16 %v1922
    %v2260 = vunpack.c.h.b16 %v1922
    %v2261 = vunpack.c.l.b16 %v1923
    %v2262 = vunpack.c.h.b16 %v1923
    %v2263 = vunpack.c.l.b16 %v1924
    %v2264 = vunpack.c.h.b16 %v1924
    %v2265 = vunpack.c.l.b16 %v1925
    %v2266 = vunpack.c.h.b16 %v1925
    %v2267 = vunpack.c.l.b16 %v1926
    %v2268 = vunpack.c.h.b16 %v1926
    %v2269 = vunpack.c.l.b16 %v1927
    %v2270 = vunpack.c.h.b16 %v1927
    %v2271 = vunpack.c.l.b16 %v1928
    %v2272 = vunpack.c.h.b16 %v1928
    %v2273 = vunpack.c.l.b16 %v1929
    %v2274 = vunpack.c.h.b16 %v1929
    %v2275 = vunpack.c.l.b16 %v1930
    %v2276 = vunpack.c.h.b16 %v1930
    %v2277 = vunpack.c.l.b16 %v1931
    %v2278 = vunpack.c.h.b16 %v1931
    %v2279 = vunpack.c.l.b16 %v1932
    %v2280 = vunpack.c.h.b16 %v1932
    %v2281 = vunpack.c.l.b16 %v1933
    %v2282 = vunpack.c.h.b16 %v1933
    %v2283 = vunpack.c.l.b16 %v1934
    %v2284 = vunpack.c.h.b16 %v1934
    %v2285 = vunpack.c.l.b16 %v1935
    %v2286 = vunpack.c.h.b16 %v1935
    %v2287 = vunpack.c.l.b16 %v1936
    %v2288 = vunpack.c.h.b16 %v1936
    %v2289 = vunpack.c.l.b16 %v1937
    %v2290 = vunpack.c.h.b16 %v1937
    %v2291 = vunpack.c.l.b16 %v1938
    %v2292 = vunpack.c.h.b16 %v1938
    %v2293 = vunpack.c.l.b16 %v1939
    %v2294 = vunpack.c.h.b16 %v1939
    %v2295 = vunpack.c.l.b16 %v1940
    %v2296 = vunpack.c.h.b16 %v1940
    %v2297 = vunpack.c.l.b16 %v1941
    %v2298 = vunpack.c.h.b16 %v1941
    %v2299 = vunpack.c.l.b16 %v1942
    %v2300 = vunpack.c.h.b16 %v1942
    %v2301 = vunpack.c.l.b16 %v1943
    %v2302 = vunpack.c.h.b16 %v1943
    %v2303 = vunpack.c.l.b16 %v1944
    %v2304 = vunpack.c.h.b16 %v1944
    %v2305 = vunpack.c.l.b16 %v1945
    %v2306 = vunpack.c.h.b16 %v1945
    %v2307 = vunpack.c.l.b16 %v1946
    %v2308 = vunpack.c.h.b16 %v1946
    %v2309 = vunpack.c.l.b16 %v1947
    %v2310 = vunpack.c.h.b16 %v1947
    %v2311 = vunpack.c.l.b16 %v1948
    %v2312 = vunpack.c.h.b16 %v1948
    %v2313 = vunpack.c.l.b16 %v1949
    %v2314 = vunpack.c.h.b16 %v1949
    %v2315 = vunpack.c.l.b16 %v1950
    %v2316 = vunpack.c.h.b16 %v1950
    %v2317 = vunpack.c.l.b16 %v1951
    %v2318 = vunpack.c.h.b16 %v1951
    %v2319 = vunpack.c.l.b16 %v1952
    %v2320 = vunpack.c.h.b16 %v1952
    %v2321 = vunpack.c.l.b16 %v1953
    %v2322 = vunpack.c.h.b16 %v1953
    %v2323 = vunpack.c.l.b16 %v1954
    %v2324 = vunpack.c.h.b16 %v1954
    %v2325 = vunpack.c.l.b16 %v1955
    %v2326 = vunpack.c.h.b16 %v1955
    %v2327 = vunpack.c.l.b16 %v1956
    %v2328 = vunpack.c.h.b16 %v1956
    %v2329 = vunpack.c.l.b16 %v1957
    %v2330 = vunpack.c.h.b16 %v1957
    %v2331 = vunpack.c.l.b16 %v1958
    %v2332 = vunpack.c.h.b16 %v1958
    %v2333 = vunpack.c.l.b16 %v1959
    %v2334 = vunpack.c.h.b16 %v1959
    %v2335 = vunpack.c.l.b16 %v1960
    %v2336 = vunpack.c.h.b16 %v1960
    %v2337 = vunpack.c.l.b16 %v1961
    %v2338 = vunpack.c.h.b16 %v1961
    %v2339 = vunpack.c.l.b16 %v1962
    %v2340 = vunpack.c.h.b16 %v1962
    %v2341 = vunpack.c.l.b16 %v1963
    %v2342 = vunpack.c.h.b16 %v1963
    %v2343 = vunpack.c.l.b16 %v1964
    %v2344 = vunpack.c.h.b16 %v1964
    %v2345 = vunpack.c.l.b16 %v1965
    %v2346 = vunpack.c.h.b16 %v1965
    %v2347 = vunpack.c.l.b16 %v1966
    %v2348 = vunpack.c.h.b16 %v1966
    %v2349 = vunpack.c.l.b16 %v1967
    %v2350 = vunpack.c.h.b16 %v1967
    %v2351 = vunpack.c.l.b16 %v1968
    %v2352 = vunpack.c.h.b16 %v1968
    %v2353 = vunpack.c.l.b16 %v1969
    %v2354 = vunpack.c.h.b16 %v1969
    %v2355 = vunpack.c.l.b16 %v1970
    %v2356 = vunpack.c.h.b16 %v1970
    %v2357 = vunpack.c.l.b16 %v1971
    %v2358 = vunpack.c.h.b16 %v1971
    %v2359 = vunpack.c.l.b16 %v1972
    %v2360 = vunpack.c.h.b16 %v1972
    %v2361 = vunpack.c.l.b16 %v1973
    %v2362 = vunpack.c.h.b16 %v1973
    %v2363 = vunpack.c.l.b16 %v1974
    %v2364 = vunpack.c.h.b16 %v1974
    %v2365 = vunpack.c.l.b16 %v1975
    %v2366 = vunpack.c.h.b16 %v1975
    %v2367 = vunpack.c.l.b16 %v1976
    %v2368 = vunpack.c.h.b16 %v1976
    %v2369 = vunpack.c.l.b16 %v1977
    %v2370 = vunpack.c.h.b16 %v1977
    %v2371 = vunpack.c.l.b16 %v1978
    %v2372 = vunpack.c.h.b16 %v1978
    %v2373 = vunpack.c.l.b16 %v1979
    %v2374 = vunpack.c.h.b16 %v1979
    %v2375 = vunpack.c.l.b16 %v1980
    %v2376 = vunpack.c.h.b16 %v1980
    %v2377 = vunpack.c.l.b16 %v1981
    %v2378 = vunpack.c.h.b16 %v1981
    %v2379 = vunpack.c.l.b16 %v1982
    %v2380 = vunpack.c.h.b16 %v1982
    %v2381 = vunpack.c.l.b16 %v1983
    %v2382 = vunpack.c.h.b16 %v1983
    %v2383 = vunpack.c.l.b16 %v1984
    %v2384 = vunpack.c.h.b16 %v1984
    %v2385 = vunpack.c.l.b16 %v1985
    %v2386 = vunpack.c.h.b16 %v1985
    %v2387 = vunpack.c.l.b16 %v1986
    %v2388 = vunpack.c.h.b16 %v1986
    %v2389 = vunpack.c.l.b16 %v1987
    %v2390 = vunpack.c.h.b16 %v1987
    %v2391 = vunpack.c.l.b16 %v1988
    %v2392 = vunpack.c.h.b16 %v1988
    %v2393 = vunpack.c.l.b16 %v1989
    %v2394 = vunpack.c.h.b16 %v1989
    %v2395 = vunpack.c.l.b16 %v1990
    %v2396 = vunpack.c.h.b16 %v1990
    %v2397 = vpack.c.b16 %v2145, %v2141
    %v2398 = vpack.c.b16 %v2146, %v2142
    %v2399 = vpack.c.b16 %v2147, %v2143
    %v2400 = vpack.c.b16 %v2148, %v2144
    %v2401 = vpack.c.b16 %v2153, %v2149
    %v2402 = vpack.c.b16 %v2154, %v2150
    %v2403 = vpack.c.b16 %v2155, %v2151
    %v2404 = vpack.c.b16 %v2156, %v2152
    %v2405 = vpack.c.b16 %v2161, %v2157
    %v2406 = vpack.c.b16 %v2162, %v2158
    %v2407 = vpack.c.b16 %v2163, %v2159
    %v2408 = vpack.c.b16 %v2164, %v2160
    %v2409 = vpack.c.b16 %v2169, %v2165
    %v2410 = vpack.c.b16 %v2170, %v2166
    %v2411 = vpack.c.b16 %v2171, %v2167
    %v2412 = vpack.c.b16 %v2172, %v2168
    %v2413 = vpack.c.b16 %v2177, %v2173
    %v2414 = vpack.c.b16 %v2178, %v2174
    %v2415 = vpack.c.b16 %v2179, %v2175
    %v2416 = vpack.c.b16 %v2180, %v2176
    %v2417 = vpack.c.b16 %v2185, %v2181
    %v2418 = vpack.c.b16 %v2186, %v2182
    %v2419 = vpack.c.b16 %v2187, %v2183
    %v2420 = vpack.c.b16 %v2188, %v2184
    %v2421 = vpack.c.b16 %v2193, %v2189
    %v2422 = vpack.c.b16 %v2194, %v2190
    %v2423 = vpack.c.b16 %v2195, %v2191
    %v2424 = vpack.c.b16 %v2196, %v2192
    %v2425 = vpack.c.b16 %v2201, %v2197
    %v2426 = vpack.c.b16 %v2202, %v2198
    %v2427 = vpack.c.b16 %v2203, %v2199
    %v2428 = vpack.c.b16 %v2204, %v2200
    %v2429 = vpack.c.b16 %v2209, %v2205
    %v2430 = vpack.c.b16 %v2210, %v2206
    %v2431 = vpack.c.b16 %v2211, %v2207
    %v2432 = vpack.c.b16 %v2212, %v2208
    %v2433 = vpack.c.b16 %v2217, %v2213
    %v2434 = vpack.c.b16 %v2218, %v2214
    %v2435 = vpack.c.b16 %v2219, %v2215
    %v2436 = vpack.c.b16 %v2220, %v2216
    %v2437 = vpack.c.b16 %v2225, %v2221
    %v2438 = vpack.c.b16 %v2226, %v2222
    %v2439 = vpack.c.b16 %v2227, %v2223
    %v2440 = vpack.c.b16 %v2228, %v2224
    %v2441 = vpack.c.b16 %v2233, %v2229
    %v2442 = vpack.c.b16 %v2234, %v2230
    %v2443 = vpack.c.b16 %v2235, %v2231
    %v2444 = vpack.c.b16 %v2236, %v2232
    %v2445 = vpack.c.b16 %v2241, %v2237
    %v2446 = vpack.c.b16 %v2242, %v2238
    %v2447 = vpack.c.b16 %v2243, %v2239
    %v2448 = vpack.c.b16 %v2244, %v2240
    %v2449 = vpack.c.b16 %v2249, %v2245
    %v2450 = vpack.c.b16 %v2250, %v2246
    %v2451 = vpack.c.b16 %v2251, %v2247
    %v2452 = vpack.c.b16 %v2252, %v2248
    %v2453 = vpack.c.b16 %v2257, %v2253
    %v2454 = vpack.c.b16 %v2258, %v2254
    %v2455 = vpack.c.b16 %v2259, %v2255
    %v2456 = vpack.c.b16 %v2260, %v2256
    %v2457 = vpack.c.b16 %v2265, %v2261
    %v2458 = vpack.c.b16 %v2266, %v2262
    %v2459 = vpack.c.b16 %v2267, %v2263
    %v2460 = vpack.c.b16 %v2268, %v2264
    %v2461 = vpack.c.b16 %v2273, %v2269
    %v2462 = vpack.c.b16 %v2274, %v2270
    %v2463 = vpack.c.b16 %v2275, %v2271
    %v2464 = vpack.c.b16 %v2276, %v2272
    %v2465 = vpack.c.b16 %v2281, %v2277
    %v2466 = vpack.c.b16 %v2282, %v2278
    %v2467 = vpack.c.b16 %v2283, %v2279
    %v2468 = vpack.c.b16 %v2284, %v2280
    %v2469 = vpack.c.b16 %v2289, %v2285
    %v2470 = vpack.c.b16 %v2290, %v2286
    %v2471 = vpack.c.b16 %v2291, %v2287
    %v2472 = vpack.c.b16 %v2292, %v2288
    %v2473 = vpack.c.b16 %v2297, %v2293
    %v2474 = vpack.c.b16 %v2298, %v2294
    %v2475 = vpack.c.b16 %v2299, %v2295
    %v2476 = vpack.c.b16 %v2300, %v2296
    %v2477 = vpack.c.b16 %v2305, %v2301
    %v2478 = vpack.c.b16 %v2306, %v2302
    %v2479 = vpack.c.b16 %v2307, %v2303
    %v2480 = vpack.c.b16 %v2308, %v2304
    %v2481 = vpack.c.b16 %v2313, %v2309
    %v2482 = vpack.c.b16 %v2314, %v2310
    %v2483 = vpack.c.b16 %v2315, %v2311
    %v2484 = vpack.c.b16 %v2316, %v2312
    %v2485 = vpack.c.b16 %v2321, %v2317
    %v2486 = vpack.c.b16 %v2322, %v2318
    %v2487 = vpack.c.b16 %v2323, %v2319
    %v2488 = vpack.c.b16 %v2324, %v2320
    %v2489 = vpack.c.b16 %v2329, %v2325
    %v2490 = vpack.c.b16 %v2330, %v2326
    %v2491 = vpack.c.b16 %v2331, %v2327
    %v2492 = vpack.c.b16 %v2332, %v2328
    %v2493 = vpack.c.b16 %v2337, %v2333
    %v2494 = vpack.c.b16 %v2338, %v2334
    %v2495 = vpack.c.b16 %v2339, %v2335
    %v2496 = vpack.c.b16 %v2340, %v2336
    %v2497 = vpack.c.b16 %v2345, %v2341
    %v2498 = vpack.c.b16 %v2346, %v2342
    %v2499 = vpack.c.b16 %v2347, %v2343
    %v2500 = vpack.c.b16 %v2348, %v2344
    %v2501 = vpack.c.b16 %v2353, %v2349
    %v2502 = vpack.c.b16 %v2354, %v2350
    %v2503 = vpack.c.b16 %v2355, %v2351
    %v2504 = vpack.c.b16 %v2356, %v2352
    %v2505 = vpack.c.b16 %v2361, %v2357
    %v2506 = vpack.c.b16 %v2362, %v2358
    %v2507 = vpack.c.b16 %v2363, %v2359
    %v2508 = vpack.c.b16 %v2364, %v2360
    %v2509 = vpack.c.b16 %v2369, %v2365
    %v2510 = vpack.c.b16 %v2370, %v2366
    %v2511 = vpack.c.b16 %v2371, %v2367
    %v2512 = vpack.c.b16 %v2372, %v2368
    %v2513 = vpack.c.b16 %v2377, %v2373
    %v2514 = vpack.c.b16 %v2378, %v2374
    %v2515 = vpack.c.b16 %v2379, %v2375
    %v2516 = vpack.c.b16 %v2380, %v2376
    %v2517 = vpack.c.b16 %v2385, %v2381
    %v2518 = vpack.c.b16 %v2386, %v2382
    %v2519 = vpack.c.b16 %v2387, %v2383
    %v2520 = vpack.c.b16 %v2388, %v2384
    %v2521 = vpack.c.b16 %v2393, %v2389
    %v2522 = vpack.c.b16 %v2394, %v2390
    %v2523 = vpack.c.b16 %v2395, %v2391
    %v2524 = vpack.c.b16 %v2396, %v2392
    %2653 = vmatprep.subr.bf16.mxu0 %v2398
    %2654 = vmatpush1.bf16.msra.mxu0 %v2397
    %2655 = vmatprep.subr.bf16.mxu0 %v2402
    %2656 = vmatpush1.bf16.msra.mxu0 %v2401
    %2657 = vmatprep.subr.bf16.mxu0 %v2406
    %2658 = vmatpush1.bf16.msra.mxu0 %v2405
    %2659 = vmatprep.subr.bf16.mxu0 %v2410
    %2660 = vmatpush1.bf16.msra.mxu0 %v2409
    %2661 = vmatprep.subr.bf16.mxu0 %v2414
    %2662 = vmatpush1.bf16.msra.mxu0 %v2413
    %2663 = vmatprep.subr.bf16.mxu0 %v2418
    %2664 = vmatpush1.bf16.msra.mxu0 %v2417
    %2665 = vmatprep.subr.bf16.mxu0 %v2422
    %2666 = vmatpush1.bf16.msra.mxu0 %v2421
    %2667 = vmatprep.subr.bf16.mxu0 %v2426
    %2668 = vmatpush1.bf16.msra.mxu0 %v2425
    %2669 = vmatprep.subr.bf16.mxu0 %v2430
    %2670 = vmatpush1.bf16.msra.mxu0 %v2429
    %2671 = vmatprep.subr.bf16.mxu0 %v2434
    %2672 = vmatpush1.bf16.msra.mxu0 %v2433
    %2673 = vmatprep.subr.bf16.mxu0 %v2438
    %2674 = vmatpush1.bf16.msra.mxu0 %v2437
    %2675 = vmatprep.subr.bf16.mxu0 %v2442
    %2676 = vmatpush1.bf16.msra.mxu0 %v2441
    %2677 = vmatprep.subr.bf16.mxu0 %v2446
    %2678 = vmatpush1.bf16.msra.mxu0 %v2445
    %2679 = vmatprep.subr.bf16.mxu0 %v2450
    %2680 = vmatpush1.bf16.msra.mxu0 %v2449
    %2681 = vmatprep.subr.bf16.mxu0 %v2454
    %2682 = vmatpush1.bf16.msra.mxu0 %v2453
    %2683 = vmatprep.subr.bf16.mxu0 %v2458
    %2684 = vmatpush1.bf16.msra.mxu0 %v2457
    %2685 = vmatprep.mubr.bf16.mxu0 %v1860
    %2686 = vmatmul.mubr.bf16.gmra.mrb[0].mxu0 %v1859
    %v2687 = vpop.f32.mrb[0].mxu0
    %v2688 = vadd.f32 %v1996, %v2687
    %v2689 = vpop.f32.mrb[0].mxu0
    %v2690 = vadd.f32 %v2000, %v2689
    %v2691 = vpop.f32.mrb[0].mxu0
    %v2692 = vpop.f32.mrb[0].mxu0
    %2693 = vdwg.mxu0
    %2694 = vmatprep.subr.bf16.mxu0 %v2462
    %2695 = vmatpush1.bf16.msra.mxu0 %v2461
    %2696 = vmatprep.subr.bf16.mxu0 %v2466
    %2697 = vmatpush1.bf16.msra.mxu0 %v2465
    %2698 = vmatprep.subr.bf16.mxu0 %v2470
    %2699 = vmatpush1.bf16.msra.mxu0 %v2469
    %2700 = vmatprep.subr.bf16.mxu0 %v2474
    %2701 = vmatpush1.bf16.msra.mxu0 %v2473
    %2702 = vmatprep.subr.bf16.mxu0 %v2478
    %2703 = vmatpush1.bf16.msra.mxu0 %v2477
    %2704 = vmatprep.subr.bf16.mxu0 %v2482
    %2705 = vmatpush1.bf16.msra.mxu0 %v2481
    %2706 = vmatprep.subr.bf16.mxu0 %v2486
    %2707 = vmatpush1.bf16.msra.mxu0 %v2485
    %2708 = vmatprep.subr.bf16.mxu0 %v2490
    %2709 = vmatpush1.bf16.msra.mxu0 %v2489
    %2710 = vmatprep.subr.bf16.mxu0 %v2494
    %2711 = vmatpush1.bf16.msra.mxu0 %v2493
    %2712 = vmatprep.subr.bf16.mxu0 %v2498
    %2713 = vmatpush1.bf16.msra.mxu0 %v2497
    %2714 = vmatprep.subr.bf16.mxu0 %v2502
    %2715 = vmatpush1.bf16.msra.mxu0 %v2501
    %2716 = vmatprep.subr.bf16.mxu0 %v2506
    %2717 = vmatpush1.bf16.msra.mxu0 %v2505
    %2718 = vmatprep.subr.bf16.mxu0 %v2510
    %2719 = vmatpush1.bf16.msra.mxu0 %v2509
    %2720 = vmatprep.subr.bf16.mxu0 %v2514
    %2721 = vmatpush1.bf16.msra.mxu0 %v2513
    %2722 = vmatprep.subr.bf16.mxu0 %v2518
    %2723 = vmatpush1.bf16.msra.mxu0 %v2517
    %2724 = vmatprep.subr.bf16.mxu0 %v2522
    %2725 = vmatpush1.bf16.msra.mxu0 %v2521
    %2726 = vmatprep.mubr.bf16.mxu0 %v1862
    %2727 = vmatmul.mubr.bf16.gmra.mrb[0].mxu0 %v1861
    %v2728 = vpop.f32.mrb[0].mxu0
    %v2729 = vadd.f32 %v2688, %v2728
    %v2730 = vpop.f32.mrb[0].mxu0
    %v2731 = vadd.f32 %v2690, %v2730
    %v2732 = vpop.f32.mrb[0].mxu0
    %v2733 = vpop.f32.mrb[0].mxu0
    %2734 = vdwg.mxu0
    %2735 = vmatprep.subr.bf16.mxu0 %v2400
    %2736 = vmatpush1.bf16.msra.mxu0 %v2399
    %2737 = vmatprep.subr.bf16.mxu0 %v2404
    %2738 = vmatpush1.bf16.msra.mxu0 %v2403
    %2739 = vmatprep.subr.bf16.mxu0 %v2408
    %2740 = vmatpush1.bf16.msra.mxu0 %v2407
    %2741 = vmatprep.subr.bf16.mxu0 %v2412
    %2742 = vmatpush1.bf16.msra.mxu0 %v2411
    %2743 = vmatprep.subr.bf16.mxu0 %v2416
    %2744 = vmatpush1.bf16.msra.mxu0 %v2415
    %2745 = vmatprep.subr.bf16.mxu0 %v2420
    %2746 = vmatpush1.bf16.msra.mxu0 %v2419
    %2747 = vmatprep.subr.bf16.mxu0 %v2424
    %2748 = vmatpush1.bf16.msra.mxu0 %v2423
    %2749 = vmatprep.subr.bf16.mxu0 %v2428
    %2750 = vmatpush1.bf16.msra.mxu0 %v2427
    %2751 = vmatprep.subr.bf16.mxu0 %v2432
    %2752 = vmatpush1.bf16.msra.mxu0 %v2431
    %2753 = vmatprep.subr.bf16.mxu0 %v2436
    %2754 = vmatpush1.bf16.msra.mxu0 %v2435
    %2755 = vmatprep.subr.bf16.mxu0 %v2440
    %2756 = vmatpush1.bf16.msra.mxu0 %v2439
    %2757 = vmatprep.subr.bf16.mxu0 %v2444
    %2758 = vmatpush1.bf16.msra.mxu0 %v2443
    %2759 = vmatprep.subr.bf16.mxu0 %v2448
    %2760 = vmatpush1.bf16.msra.mxu0 %v2447
    %2761 = vmatprep.subr.bf16.mxu0 %v2452
    %2762 = vmatpush1.bf16.msra.mxu0 %v2451
    %2763 = vmatprep.subr.bf16.mxu0 %v2456
    %2764 = vmatpush1.bf16.msra.mxu0 %v2455
    %2765 = vmatprep.subr.bf16.mxu0 %v2460
    %2766 = vmatpush1.bf16.msra.mxu0 %v2459
    %2767 = vmatprep.mubr.bf16.mxu0 %v1860
    %2768 = vmatmul.mubr.bf16.gmra.mrb[0].mxu0 %v1859
    %v2769 = vpop.f32.mrb[0].mxu0
    %v2770 = vadd.f32 %v2004, %v2769
    %v2771 = vpop.f32.mrb[0].mxu0
    %v2772 = vadd.f32 %v2008, %v2771
    %v2773 = vpop.f32.mrb[0].mxu0
    %v2774 = vpop.f32.mrb[0].mxu0
    %2775 = vdwg.mxu0
    %2776 = vmatprep.subr.bf16.mxu0 %v2464
    %2777 = vmatpush1.bf16.msra.mxu0 %v2463
    %2778 = vmatprep.subr.bf16.mxu0 %v2468
    %2779 = vmatpush1.bf16.msra.mxu0 %v2467
    %2780 = vmatprep.subr.bf16.mxu0 %v2472
    %2781 = vmatpush1.bf16.msra.mxu0 %v2471
    %2782 = vmatprep.subr.bf16.mxu0 %v2476
    %2783 = vmatpush1.bf16.msra.mxu0 %v2475
    %2784 = vmatprep.subr.bf16.mxu0 %v2480
    %2785 = vmatpush1.bf16.msra.mxu0 %v2479
    %2786 = vmatprep.subr.bf16.mxu0 %v2484
    %2787 = vmatpush1.bf16.msra.mxu0 %v2483
    %2788 = vmatprep.subr.bf16.mxu0 %v2488
    %2789 = vmatpush1.bf16.msra.mxu0 %v2487
    %2790 = vmatprep.subr.bf16.mxu0 %v2492
    %2791 = vmatpush1.bf16.msra.mxu0 %v2491
    %2792 = vmatprep.subr.bf16.mxu0 %v2496
    %2793 = vmatpush1.bf16.msra.mxu0 %v2495
    %2794 = vmatprep.subr.bf16.mxu0 %v2500
    %2795 = vmatpush1.bf16.msra.mxu0 %v2499
    %2796 = vmatprep.subr.bf16.mxu0 %v2504
    %2797 = vmatpush1.bf16.msra.mxu0 %v2503
    %2798 = vmatprep.subr.bf16.mxu0 %v2508
    %2799 = vmatpush1.bf16.msra.mxu0 %v2507
    %2800 = vmatprep.subr.bf16.mxu0 %v2512
    %2801 = vmatpush1.bf16.msra.mxu0 %v2511
    %2802 = vmatprep.subr.bf16.mxu0 %v2516
    %2803 = vmatpush1.bf16.msra.mxu0 %v2515
    %2804 = vmatprep.subr.bf16.mxu0 %v2520
    %2805 = vmatpush1.bf16.msra.mxu0 %v2519
    %2806 = vmatprep.subr.bf16.mxu0 %v2524
    %2807 = vmatpush1.bf16.msra.mxu0 %v2523
    %2808 = vmatprep.mubr.bf16.mxu0 %v1862
    %2809 = vmatmul.mubr.bf16.gmra.mrb[0].mxu0 %v1861
    %v2810 = vpop.f32.mrb[0].mxu0
    %v2811 = vadd.f32 %v2770, %v2810
    %v2812 = vpop.f32.mrb[0].mxu0
    %v2813 = vadd.f32 %v2772, %v2812
    %v2814 = vpop.f32.mrb[0].mxu0
    %v2815 = vpop.f32.mrb[0].mxu0
    %2816 = vdwg.mxu0
    %v2817 = vmax.f32 %v2729, 0.0
    %v2818 = vmax.f32 %v2731, 0.0
    %v2819 = vmax.f32 %v2811, 0.0
    %v2820 = vmax.f32 %v2813, 0.0
    %v2821 = vpack.c.bf16 %v2817, %v2817
    %v2822 = vpack.c.bf16 %v2818, %v2818
    %v2823 = vpack.c.bf16 %v2819, %v2819
    %v2824 = vpack.c.bf16 %v2820, %v2820
    %v2825 = vld [vmem:[#allocation6] sm:$0xf]
    %v2826 = vld [vmem:[#allocation6 + $0x4] sm:$0xf]
    %v2827 = vld [vmem:[#allocation6 + $0x8] sm:$0xf]
    %v2828 = vld [vmem:[#allocation6 + $0xc] sm:$0xf]
    %v2829 = vld [vmem:[#allocation6 + $0x10] sm:$0xf]
    %v2830 = vld [vmem:[#allocation6 + $0x14] sm:$0xf]
    %v2831 = vld [vmem:[#allocation6 + $0x18] sm:$0xf]
    %v2832 = vld [vmem:[#allocation6 + $0x1c] sm:$0xf]
    %v2833 = vld [vmem:[#allocation6 + $0x20] sm:$0xf]
    %v2834 = vld [vmem:[#allocation6 + $0x24] sm:$0xf]
    %v2835 = vld [vmem:[#allocation6 + $0x28] sm:$0xf]
    %v2836 = vld [vmem:[#allocation6 + $0x2c] sm:$0xf]
    %v2837 = vld [vmem:[#allocation6 + $0x30] sm:$0xf]
    %v2838 = vld [vmem:[#allocation6 + $0x34] sm:$0xf]
    %v2839 = vld [vmem:[#allocation6 + $0x38] sm:$0xf]
    %v2840 = vld [vmem:[#allocation6 + $0x3c] sm:$0xf]
    %v2841 = vld [vmem:[#allocation6 + $0x40] sm:$0xf]
    %v2842 = vld [vmem:[#allocation6 + $0x44] sm:$0xf]
    %v2843 = vld [vmem:[#allocation6 + $0x48] sm:$0xf]
    %v2844 = vld [vmem:[#allocation6 + $0x4c] sm:$0xf]
    %v2845 = vld [vmem:[#allocation6 + $0x50] sm:$0xf]
    %v2846 = vld [vmem:[#allocation6 + $0x54] sm:$0xf]
    %v2847 = vld [vmem:[#allocation6 + $0x58] sm:$0xf]
    %v2848 = vld [vmem:[#allocation6 + $0x5c] sm:$0xf]
    %v2849 = vld [vmem:[#allocation6 + $0x60] sm:$0xf]
    %v2850 = vld [vmem:[#allocation6 + $0x64] sm:$0xf]
    %v2851 = vld [vmem:[#allocation6 + $0x68] sm:$0xf]
    %v2852 = vld [vmem:[#allocation6 + $0x6c] sm:$0xf]
    %v2853 = vld [vmem:[#allocation6 + $0x70] sm:$0xf]
    %v2854 = vld [vmem:[#allocation6 + $0x74] sm:$0xf]
    %v2855 = vld [vmem:[#allocation6 + $0x78] sm:$0xf]
    %v2856 = vld [vmem:[#allocation6 + $0x7c] sm:$0xf]
    %v2857 = vld [vmem:[#allocation6 + $0x80] sm:$0xf]
    %v2858 = vld [vmem:[#allocation6 + $0x84] sm:$0xf]
    %v2859 = vld [vmem:[#allocation6 + $0x88] sm:$0xf]
    %v2860 = vld [vmem:[#allocation6 + $0x8c] sm:$0xf]
    %v2861 = vld [vmem:[#allocation6 + $0x90] sm:$0xf]
    %v2862 = vld [vmem:[#allocation6 + $0x94] sm:$0xf]
    %v2863 = vld [vmem:[#allocation6 + $0x98] sm:$0xf]
    %v2864 = vld [vmem:[#allocation6 + $0x9c] sm:$0xf]
    %v2865 = vld [vmem:[#allocation6 + $0xa0] sm:$0xf]
    %v2866 = vld [vmem:[#allocation6 + $0xa4] sm:$0xf]
    %v2867 = vld [vmem:[#allocation6 + $0xa8] sm:$0xf]
    %v2868 = vld [vmem:[#allocation6 + $0xac] sm:$0xf]
    %v2869 = vld [vmem:[#allocation6 + $0xb0] sm:$0xf]
    %v2870 = vld [vmem:[#allocation6 + $0xb4] sm:$0xf]
    %v2871 = vld [vmem:[#allocation6 + $0xb8] sm:$0xf]
    %v2872 = vld [vmem:[#allocation6 + $0xbc] sm:$0xf]
    %v2873 = vld [vmem:[#allocation6 + $0xc0] sm:$0xf]
    %v2874 = vld [vmem:[#allocation6 + $0xc4] sm:$0xf]
    %v2875 = vld [vmem:[#allocation6 + $0xc8] sm:$0xf]
    %v2876 = vld [vmem:[#allocation6 + $0xcc] sm:$0xf]
    %v2877 = vld [vmem:[#allocation6 + $0xd0] sm:$0xf]
    %v2878 = vld [vmem:[#allocation6 + $0xd4] sm:$0xf]
    %v2879 = vld [vmem:[#allocation6 + $0xd8] sm:$0xf]
    %v2880 = vld [vmem:[#allocation6 + $0xdc] sm:$0xf]
    %v2881 = vld [vmem:[#allocation6 + $0xe0] sm:$0xf]
    %v2882 = vld [vmem:[#allocation6 + $0xe4] sm:$0xf]
    %v2883 = vld [vmem:[#allocation6 + $0xe8] sm:$0xf]
    %v2884 = vld [vmem:[#allocation6 + $0xec] sm:$0xf]
    %v2885 = vld [vmem:[#allocation6 + $0xf0] sm:$0xf]
    %v2886 = vld [vmem:[#allocation6 + $0xf4] sm:$0xf]
    %v2887 = vld [vmem:[#allocation6 + $0xf8] sm:$0xf]
    %v2888 = vld [vmem:[#allocation6 + $0xfc] sm:$0xf]
    %v2889 = vld [vmem:[%s7] sm:$0x1]
    %v2891 = vlaneseq
    %v2892 = vshrl.u32 %v2891, 7
    %v2893 = vsub.s32 0, %v2892
    %v2894 = vrot.slane %v2889, %v2893
    %v2960 = vunpack.c.l.b16 %v2825
    %v2961 = vunpack.c.l.b16 %v2826
    %v2962 = vunpack.c.l.b16 %v2827
    %v2963 = vunpack.c.l.b16 %v2828
    %v2964 = vunpack.c.l.b16 %v2829
    %v2965 = vunpack.c.l.b16 %v2830
    %v2966 = vunpack.c.l.b16 %v2831
    %v2967 = vunpack.c.l.b16 %v2832
    %v2968 = vunpack.c.l.b16 %v2833
    %v2969 = vunpack.c.l.b16 %v2834
    %v2970 = vunpack.c.l.b16 %v2835
    %v2971 = vunpack.c.l.b16 %v2836
    %v2972 = vunpack.c.l.b16 %v2837
    %v2973 = vunpack.c.l.b16 %v2838
    %v2974 = vunpack.c.l.b16 %v2839
    %v2975 = vunpack.c.l.b16 %v2840
    %v2976 = vunpack.c.l.b16 %v2841
    %v2977 = vunpack.c.l.b16 %v2842
    %v2978 = vunpack.c.l.b16 %v2843
    %v2979 = vunpack.c.l.b16 %v2844
    %v2980 = vunpack.c.l.b16 %v2845
    %v2981 = vunpack.c.l.b16 %v2846
    %v2982 = vunpack.c.l.b16 %v2847
    %v2983 = vunpack.c.l.b16 %v2848
    %v2984 = vunpack.c.l.b16 %v2849
    %v2985 = vunpack.c.l.b16 %v2850
    %v2986 = vunpack.c.l.b16 %v2851
    %v2987 = vunpack.c.l.b16 %v2852
    %v2988 = vunpack.c.l.b16 %v2853
    %v2989 = vunpack.c.l.b16 %v2854
    %v2990 = vunpack.c.l.b16 %v2855
    %v2991 = vunpack.c.l.b16 %v2856
    %v2992 = vunpack.c.l.b16 %v2857
    %v2993 = vunpack.c.l.b16 %v2858
    %v2994 = vunpack.c.l.b16 %v2859
    %v2995 = vunpack.c.l.b16 %v2860
    %v2996 = vunpack.c.l.b16 %v2861
    %v2997 = vunpack.c.l.b16 %v2862
    %v2998 = vunpack.c.l.b16 %v2863
    %v2999 = vunpack.c.l.b16 %v2864
    %v3000 = vunpack.c.l.b16 %v2865
    %v3001 = vunpack.c.l.b16 %v2866
    %v3002 = vunpack.c.l.b16 %v2867
    %v3003 = vunpack.c.l.b16 %v2868
    %v3004 = vunpack.c.l.b16 %v2869
    %v3005 = vunpack.c.l.b16 %v2870
    %v3006 = vunpack.c.l.b16 %v2871
    %v3007 = vunpack.c.l.b16 %v2872
    %v3008 = vunpack.c.l.b16 %v2873
    %v3009 = vunpack.c.l.b16 %v2874
    %v3010 = vunpack.c.l.b16 %v2875
    %v3011 = vunpack.c.l.b16 %v2876
    %v3012 = vunpack.c.l.b16 %v2877
    %v3013 = vunpack.c.l.b16 %v2878
    %v3014 = vunpack.c.l.b16 %v2879
    %v3015 = vunpack.c.l.b16 %v2880
    %v3016 = vunpack.c.l.b16 %v2881
    %v3017 = vunpack.c.l.b16 %v2882
    %v3018 = vunpack.c.l.b16 %v2883
    %v3019 = vunpack.c.l.b16 %v2884
    %v3020 = vunpack.c.l.b16 %v2885
    %v3021 = vunpack.c.l.b16 %v2886
    %v3022 = vunpack.c.l.b16 %v2887
    %v3023 = vunpack.c.l.b16 %v2888
    %v3024 = vpack.c.b16 %v2961, %v2960
    %v3025 = vpack.c.b16 %v2963, %v2962
    %v3026 = vpack.c.b16 %v2965, %v2964
    %v3027 = vpack.c.b16 %v2967, %v2966
    %v3028 = vpack.c.b16 %v2969, %v2968
    %v3029 = vpack.c.b16 %v2971, %v2970
    %v3030 = vpack.c.b16 %v2973, %v2972
    %v3031 = vpack.c.b16 %v2975, %v2974
    %v3032 = vpack.c.b16 %v2977, %v2976
    %v3033 = vpack.c.b16 %v2979, %v2978
    %v3034 = vpack.c.b16 %v2981, %v2980
    %v3035 = vpack.c.b16 %v2983, %v2982
    %v3036 = vpack.c.b16 %v2985, %v2984
    %v3037 = vpack.c.b16 %v2987, %v2986
    %v3038 = vpack.c.b16 %v2989, %v2988
    %v3039 = vpack.c.b16 %v2991, %v2990
    %v3040 = vpack.c.b16 %v2993, %v2992
    %v3041 = vpack.c.b16 %v2995, %v2994
    %v3042 = vpack.c.b16 %v2997, %v2996
    %v3043 = vpack.c.b16 %v2999, %v2998
    %v3044 = vpack.c.b16 %v3001, %v3000
    %v3045 = vpack.c.b16 %v3003, %v3002
    %v3046 = vpack.c.b16 %v3005, %v3004
    %v3047 = vpack.c.b16 %v3007, %v3006
    %v3048 = vpack.c.b16 %v3009, %v3008
    %v3049 = vpack.c.b16 %v3011, %v3010
    %v3050 = vpack.c.b16 %v3013, %v3012
    %v3051 = vpack.c.b16 %v3015, %v3014
    %v3052 = vpack.c.b16 %v3017, %v3016
    %v3053 = vpack.c.b16 %v3019, %v3018
    %v3054 = vpack.c.b16 %v3021, %v3020
    %v3055 = vpack.c.b16 %v3023, %v3022
    %3088 = vmatprep.subr.bf16.mxu0 0
    %3089 = vmatpush1.bf16.msra.mxu0 %v3024
    %3090 = vmatprep.subr.bf16.mxu0 0
    %3091 = vmatpush1.bf16.msra.mxu0 %v3025
    %3092 = vmatprep.subr.bf16.mxu0 0
    %3093 = vmatpush1.bf16.msra.mxu0 %v3026
    %3094 = vmatprep.subr.bf16.mxu0 0
    %3095 = vmatpush1.bf16.msra.mxu0 %v3027
    %3096 = vmatprep.subr.bf16.mxu0 0
    %3097 = vmatpush1.bf16.msra.mxu0 %v3028
    %3098 = vmatprep.subr.bf16.mxu0 0
    %3099 = vmatpush1.bf16.msra.mxu0 %v3029
    %3100 = vmatprep.subr.bf16.mxu0 0
    %3101 = vmatpush1.bf16.msra.mxu0 %v3030
    %3102 = vmatprep.subr.bf16.mxu0 0
    %3103 = vmatpush1.bf16.msra.mxu0 %v3031
    %3104 = vmatprep.subr.bf16.mxu0 0
    %3105 = vmatpush1.bf16.msra.mxu0 %v3032
    %3106 = vmatprep.subr.bf16.mxu0 0
    %3107 = vmatpush1.bf16.msra.mxu0 %v3033
    %3108 = vmatprep.subr.bf16.mxu0 0
    %3109 = vmatpush1.bf16.msra.mxu0 %v3034
    %3110 = vmatprep.subr.bf16.mxu0 0
    %3111 = vmatpush1.bf16.msra.mxu0 %v3035
    %3112 = vmatprep.subr.bf16.mxu0 0
    %3113 = vmatpush1.bf16.msra.mxu0 %v3036
    %3114 = vmatprep.subr.bf16.mxu0 0
    %3115 = vmatpush1.bf16.msra.mxu0 %v3037
    %3116 = vmatprep.subr.bf16.mxu0 0
    %3117 = vmatpush1.bf16.msra.mxu0 %v3038
    %3118 = vmatprep.subr.bf16.mxu0 0
    %3119 = vmatpush1.bf16.msra.mxu0 %v3039
    %3120 = vmatprep.mubr.bf16.mxu0 %v2822
    %3121 = vmatmul.mubr.bf16.gmra.mrb[0].mxu0 %v2821
    %v3122 = vpop.f32.mrb[0].mxu0
    %v3123 = vadd.f32 %v2894, %v3122
    %v3124 = vpop.f32.mrb[0].mxu0
    %v3125 = vpop.f32.mrb[0].mxu0
    %v3126 = vpop.f32.mrb[0].mxu0
    %3127 = vdwg.mxu0
    %3128 = vmatprep.subr.bf16.mxu0 0
    %3129 = vmatpush1.bf16.msra.mxu0 %v3040
    %3130 = vmatprep.subr.bf16.mxu0 0
    %3131 = vmatpush1.bf16.msra.mxu0 %v3041
    %3132 = vmatprep.subr.bf16.mxu0 0
    %3133 = vmatpush1.bf16.msra.mxu0 %v3042
    %3134 = vmatprep.subr.bf16.mxu0 0
    %3135 = vmatpush1.bf16.msra.mxu0 %v3043
    %3136 = vmatprep.subr.bf16.mxu0 0
    %3137 = vmatpush1.bf16.msra.mxu0 %v3044
    %3138 = vmatprep.subr.bf16.mxu0 0
    %3139 = vmatpush1.bf16.msra.mxu0 %v3045
    %3140 = vmatprep.subr.bf16.mxu0 0
    %3141 = vmatpush1.bf16.msra.mxu0 %v3046
    %3142 = vmatprep.subr.bf16.mxu0 0
    %3143 = vmatpush1.bf16.msra.mxu0 %v3047
    %3144 = vmatprep.subr.bf16.mxu0 0
    %3145 = vmatpush1.bf16.msra.mxu0 %v3048
    %3146 = vmatprep.subr.bf16.mxu0 0
    %3147 = vmatpush1.bf16.msra.mxu0 %v3049
    %3148 = vmatprep.subr.bf16.mxu0 0
    %3149 = vmatpush1.bf16.msra.mxu0 %v3050
    %3150 = vmatprep.subr.bf16.mxu0 0
    %3151 = vmatpush1.bf16.msra.mxu0 %v3051
    %3152 = vmatprep.subr.bf16.mxu0 0
    %3153 = vmatpush1.bf16.msra.mxu0 %v3052
    %3154 = vmatprep.subr.bf16.mxu0 0
    %3155 = vmatpush1.bf16.msra.mxu0 %v3053
    %3156 = vmatprep.subr.bf16.mxu0 0
    %3157 = vmatpush1.bf16.msra.mxu0 %v3054
    %3158 = vmatprep.subr.bf16.mxu0 0
    %3159 = vmatpush1.bf16.msra.mxu0 %v3055
    %3160 = vmatprep.mubr.bf16.mxu0 %v2824
    %3161 = vmatmul.mubr.bf16.gmra.mrb[0].mxu0 %v2823
    %v3162 = vpop.f32.mrb[0].mxu0
    %v3163 = vadd.f32 %v3123, %v3162
    %v3164 = vpop.f32.mrb[0].mxu0
    %v3165 = vpop.f32.mrb[0].mxu0
    %v3166 = vpop.f32.mrb[0].mxu0
    %3167 = vdwg.mxu0
    %3168 = vst [vmem:[%s15] sm:$0xff] %v3163
    %v3169 = vlaneseq
    %v3170 = vand.u32 %v3169, 127
    %vm3171 = vcmp.lt.s32.totalorder %v3170, 2
    %v3172 = vsel %vm3171, %v3163, 0.0
    %v3173 = vsel %vm3171, 0.0, %v3163
    %v3174 = vld [vmem:[%s1] sm:$0xff]
    %v3175 = vmul.f32 %v3173, 0.5
    %v3176 = vmul.f32 %v3175, 1.442695
    %v3177 = vpow.pop %v3176
    %v3178 = vmul.f32 %v3174, %v3177
    %v3179 = vadd.f32 %v3172, %v3178
    %v3180 = vpack.c.bf16 %v3179, %v3179
    %v3181 = vld [vmem:[#allocation7] sm:$0xff]
    %v3182 = vld [vmem:[#allocation7 + $0x8] sm:$0xff]
    %v3183 = vld [vmem:[#allocation7 + $0x10] sm:$0xff]
    %v3184 = vld [vmem:[#allocation7 + $0x18] sm:$0xff]
    %v3185 = vld [vmem:[#allocation7 + $0x20] sm:$0xff]
    %v3186 = vld [vmem:[#allocation7 + $0x28] sm:$0xff]
    %v3187 = vld [vmem:[#allocation7 + $0x30] sm:$0xff]
    %v3188 = vld [vmem:[#allocation7 + $0x38] sm:$0xff]
    %v3189 = vld [vmem:[#allocation7 + $0x40] sm:$0xff]
    %v3190 = vld [vmem:[#allocation7 + $0x48] sm:$0xff]
    %v3191 = vld [vmem:[#allocation7 + $0x50] sm:$0xff]
    %v3192 = vld [vmem:[#allocation7 + $0x58] sm:$0xff]
    %v3193 = vld [vmem:[#allocation7 + $0x60] sm:$0xff]
    %v3194 = vld [vmem:[#allocation7 + $0x68] sm:$0xff]
    %v3195 = vld [vmem:[#allocation7 + $0x70] sm:$0xff]
    %v3196 = vld [vmem:[#allocation7 + $0x78] sm:$0xff]
    %v3197 = vld [vmem:[#allocation7 + $0x80] sm:$0xff]
    %v3198 = vld [vmem:[#allocation7 + $0x88] sm:$0xff]
    %v3199 = vld [vmem:[#allocation7 + $0x90] sm:$0xff]
    %v3200 = vld [vmem:[#allocation7 + $0x98] sm:$0xff]
    %v3201 = vld [vmem:[#allocation7 + $0xa0] sm:$0xff]
    %v3202 = vld [vmem:[#allocation7 + $0xa8] sm:$0xff]
    %v3203 = vld [vmem:[#allocation7 + $0xb0] sm:$0xff]
    %v3204 = vld [vmem:[#allocation7 + $0xb8] sm:$0xff]
    %v3205 = vld [vmem:[#allocation7 + $0xc0] sm:$0xff]
    %v3206 = vld [vmem:[#allocation7 + $0xc8] sm:$0xff]
    %v3207 = vld [vmem:[#allocation7 + $0xd0] sm:$0xff]
    %v3208 = vld [vmem:[#allocation7 + $0xd8] sm:$0xff]
    %v3209 = vld [vmem:[#allocation7 + $0xe0] sm:$0xff]
    %v3210 = vld [vmem:[#allocation7 + $0xe8] sm:$0xff]
    %v3211 = vld [vmem:[#allocation7 + $0xf0] sm:$0xff]
    %v3212 = vld [vmem:[#allocation7 + $0xf8] sm:$0xff]
    %v3213 = vld [vmem:[%s9] sm:$0xf]
    %v3215 = vlaneseq
    %v3216 = vshrl.u32 %v3215, 7
    %v3217 = vsub.s32 0, %v3216
    %v3218 = vrot.slane %v3213, %v3217
    %v3219 = vlaneseq
    %v3220 = vshrl.u32 %v3219, 7
    %v3221 = vsub.s32 1, %v3220
    %v3222 = vrot.slane %v3213, %v3221
    %v3223 = vlaneseq
    %v3224 = vshrl.u32 %v3223, 7
    %v3225 = vsub.s32 2, %v3224
    %v3226 = vrot.slane %v3213, %v3225
    %v3227 = vlaneseq
    %v3228 = vshrl.u32 %v3227, 7
    %v3229 = vsub.s32 3, %v3228
    %v3230 = vrot.slane %v3213, %v3229
    %v3267 = vunpack.c.l.b16 %v3181
    %v3268 = vunpack.c.h.b16 %v3181
    %v3269 = vunpack.c.l.b16 %v3182
    %v3270 = vunpack.c.h.b16 %v3182
    %v3271 = vunpack.c.l.b16 %v3183
    %v3272 = vunpack.c.h.b16 %v3183
    %v3273 = vunpack.c.l.b16 %v3184
    %v3274 = vunpack.c.h.b16 %v3184
    %v3275 = vunpack.c.l.b16 %v3185
    %v3276 = vunpack.c.h.b16 %v3185
    %v3277 = vunpack.c.l.b16 %v3186
    %v3278 = vunpack.c.h.b16 %v3186
    %v3279 = vunpack.c.l.b16 %v3187
    %v3280 = vunpack.c.h.b16 %v3187
    %v3281 = vunpack.c.l.b16 %v3188
    %v3282 = vunpack.c.h.b16 %v3188
    %v3283 = vunpack.c.l.b16 %v3189
    %v3284 = vunpack.c.h.b16 %v3189
    %v3285 = vunpack.c.l.b16 %v3190
    %v3286 = vunpack.c.h.b16 %v3190
    %v3287 = vunpack.c.l.b16 %v3191
    %v3288 = vunpack.c.h.b16 %v3191
    %v3289 = vunpack.c.l.b16 %v3192
    %v3290 = vunpack.c.h.b16 %v3192
    %v3291 = vunpack.c.l.b16 %v3193
    %v3292 = vunpack.c.h.b16 %v3193
    %v3293 = vunpack.c.l.b16 %v3194
    %v3294 = vunpack.c.h.b16 %v3194
    %v3295 = vunpack.c.l.b16 %v3195
    %v3296 = vunpack.c.h.b16 %v3195
    %v3297 = vunpack.c.l.b16 %v3196
    %v3298 = vunpack.c.h.b16 %v3196
    %v3299 = vunpack.c.l.b16 %v3197
    %v3300 = vunpack.c.h.b16 %v3197
    %v3301 = vunpack.c.l.b16 %v3198
    %v3302 = vunpack.c.h.b16 %v3198
    %v3303 = vunpack.c.l.b16 %v3199
    %v3304 = vunpack.c.h.b16 %v3199
    %v3305 = vunpack.c.l.b16 %v3200
    %v3306 = vunpack.c.h.b16 %v3200
    %v3307 = vunpack.c.l.b16 %v3201
    %v3308 = vunpack.c.h.b16 %v3201
    %v3309 = vunpack.c.l.b16 %v3202
    %v3310 = vunpack.c.h.b16 %v3202
    %v3311 = vunpack.c.l.b16 %v3203
    %v3312 = vunpack.c.h.b16 %v3203
    %v3313 = vunpack.c.l.b16 %v3204
    %v3314 = vunpack.c.h.b16 %v3204
    %v3315 = vunpack.c.l.b16 %v3205
    %v3316 = vunpack.c.h.b16 %v3205
    %v3317 = vunpack.c.l.b16 %v3206
    %v3318 = vunpack.c.h.b16 %v3206
    %v3319 = vunpack.c.l.b16 %v3207
    %v3320 = vunpack.c.h.b16 %v3207
    %v3321 = vunpack.c.l.b16 %v3208
    %v3322 = vunpack.c.h.b16 %v3208
    %v3323 = vunpack.c.l.b16 %v3209
    %v3324 = vunpack.c.h.b16 %v3209
    %v3325 = vunpack.c.l.b16 %v3210
    %v3326 = vunpack.c.h.b16 %v3210
    %v3327 = vunpack.c.l.b16 %v3211
    %v3328 = vunpack.c.h.b16 %v3211
    %v3329 = vunpack.c.l.b16 %v3212
    %v3330 = vunpack.c.h.b16 %v3212
    %v3331 = vpack.c.b16 %v3271, %v3267
    %v3332 = vpack.c.b16 %v3272, %v3268
    %v3333 = vpack.c.b16 %v3273, %v3269
    %v3334 = vpack.c.b16 %v3274, %v3270
    %v3335 = vpack.c.b16 %v3279, %v3275
    %v3336 = vpack.c.b16 %v3280, %v3276
    %v3337 = vpack.c.b16 %v3281, %v3277
    %v3338 = vpack.c.b16 %v3282, %v3278
    %v3339 = vpack.c.b16 %v3287, %v3283
    %v3340 = vpack.c.b16 %v3288, %v3284
    %v3341 = vpack.c.b16 %v3289, %v3285
    %v3342 = vpack.c.b16 %v3290, %v3286
    %v3343 = vpack.c.b16 %v3295, %v3291
    %v3344 = vpack.c.b16 %v3296, %v3292
    %v3345 = vpack.c.b16 %v3297, %v3293
    %v3346 = vpack.c.b16 %v3298, %v3294
    %v3347 = vpack.c.b16 %v3303, %v3299
    %v3348 = vpack.c.b16 %v3304, %v3300
    %v3349 = vpack.c.b16 %v3305, %v3301
    %v3350 = vpack.c.b16 %v3306, %v3302
    %v3351 = vpack.c.b16 %v3311, %v3307
    %v3352 = vpack.c.b16 %v3312, %v3308
    %v3353 = vpack.c.b16 %v3313, %v3309
    %v3354 = vpack.c.b16 %v3314, %v3310
    %v3355 = vpack.c.b16 %v3319, %v3315
    %v3356 = vpack.c.b16 %v3320, %v3316
    %v3357 = vpack.c.b16 %v3321, %v3317
    %v3358 = vpack.c.b16 %v3322, %v3318
    %v3359 = vpack.c.b16 %v3327, %v3323
    %v3360 = vpack.c.b16 %v3328, %v3324
    %v3361 = vpack.c.b16 %v3329, %v3325
    %v3362 = vpack.c.b16 %v3330, %v3326
    %3395 = vmatprep.subr.bf16.mxu0 %v3332
    %3396 = vmatpush1.bf16.msra.mxu0 %v3331
    %3397 = vmatprep.subr.bf16.mxu0 %v3336
    %3398 = vmatpush1.bf16.msra.mxu0 %v3335
    %3399 = vmatprep.subr.bf16.mxu0 %v3340
    %3400 = vmatpush1.bf16.msra.mxu0 %v3339
    %3401 = vmatprep.subr.bf16.mxu0 %v3344
    %3402 = vmatpush1.bf16.msra.mxu0 %v3343
    %3403 = vmatprep.subr.bf16.mxu0 %v3348
    %3404 = vmatpush1.bf16.msra.mxu0 %v3347
    %3405 = vmatprep.subr.bf16.mxu0 %v3352
    %3406 = vmatpush1.bf16.msra.mxu0 %v3351
    %3407 = vmatprep.subr.bf16.mxu0 %v3356
    %3408 = vmatpush1.bf16.msra.mxu0 %v3355
    %3409 = vmatprep.subr.bf16.mxu0 %v3360
    %3410 = vmatpush1.bf16.msra.mxu0 %v3359
    %3411 = vmatprep.subr.bf16.mxu0 0
    %3412 = vmatpush1.bf16.msra.mxu0 0
    %3413 = vmatprep.subr.bf16.mxu0 0
    %3414 = vmatpush1.bf16.msra.mxu0 0
    %3415 = vmatprep.subr.bf16.mxu0 0
    %3416 = vmatpush1.bf16.msra.mxu0 0
    %3417 = vmatprep.subr.bf16.mxu0 0
    %3418 = vmatpush1.bf16.msra.mxu0 0
    %3419 = vmatprep.subr.bf16.mxu0 0
    %3420 = vmatpush1.bf16.msra.mxu0 0
    %3421 = vmatprep.subr.bf16.mxu0 0
    %3422 = vmatpush1.bf16.msra.mxu0 0
    %3423 = vmatprep.subr.bf16.mxu0 0
    %3424 = vmatpush1.bf16.msra.mxu0 0
    %3425 = vmatprep.subr.bf16.mxu0 0
    %3426 = vmatpush1.bf16.msra.mxu0 0
    %3427 = vmatprep.mubr.bf16.mxu0 0
    %3428 = vmatmul.mubr.bf16.gmra.mrb[0].mxu0 %v3180
    %v3429 = vpop.f32.mrb[0].mxu0
    %v3430 = vadd.f32 %v3218, %v3429
    %v3431 = vpop.f32.mrb[0].mxu0
    %v3432 = vadd.f32 %v3222, %v3431
    %v3433 = vpop.f32.mrb[0].mxu0
    %v3434 = vpop.f32.mrb[0].mxu0
    %3435 = vdwg.mxu0
    %3436 = vmatprep.subr.bf16.mxu0 %v3334
    %3437 = vmatpush1.bf16.msra.mxu0 %v3333
    %3438 = vmatprep.subr.bf16.mxu0 %v3338
    %3439 = vmatpush1.bf16.msra.mxu0 %v3337
    %3440 = vmatprep.subr.bf16.mxu0 %v3342
    %3441 = vmatpush1.bf16.msra.mxu0 %v3341
    %3442 = vmatprep.subr.bf16.mxu0 %v3346
    %3443 = vmatpush1.bf16.msra.mxu0 %v3345
    %3444 = vmatprep.subr.bf16.mxu0 %v3350
    %3445 = vmatpush1.bf16.msra.mxu0 %v3349
    %3446 = vmatprep.subr.bf16.mxu0 %v3354
    %3447 = vmatpush1.bf16.msra.mxu0 %v3353
    %3448 = vmatprep.subr.bf16.mxu0 %v3358
    %3449 = vmatpush1.bf16.msra.mxu0 %v3357
    %3450 = vmatprep.subr.bf16.mxu0 %v3362
    %3451 = vmatpush1.bf16.msra.mxu0 %v3361
    %3452 = vmatprep.subr.bf16.mxu0 0
    %3453 = vmatpush1.bf16.msra.mxu0 0
    %3454 = vmatprep.subr.bf16.mxu0 0
    %3455 = vmatpush1.bf16.msra.mxu0 0
    %3456 = vmatprep.subr.bf16.mxu0 0
    %3457 = vmatpush1.bf16.msra.mxu0 0
    %3458 = vmatprep.subr.bf16.mxu0 0
    %3459 = vmatpush1.bf16.msra.mxu0 0
    %3460 = vmatprep.subr.bf16.mxu0 0
    %3461 = vmatpush1.bf16.msra.mxu0 0
    %3462 = vmatprep.subr.bf16.mxu0 0
    %3463 = vmatpush1.bf16.msra.mxu0 0
    %3464 = vmatprep.subr.bf16.mxu0 0
    %3465 = vmatpush1.bf16.msra.mxu0 0
    %3466 = vmatprep.subr.bf16.mxu0 0
    %3467 = vmatpush1.bf16.msra.mxu0 0
    %3468 = vmatprep.mubr.bf16.mxu0 0
    %3469 = vmatmul.mubr.bf16.gmra.mrb[0].mxu0 %v3180
    %v3470 = vpop.f32.mrb[0].mxu0
    %v3471 = vadd.f32 %v3226, %v3470
    %v3472 = vpop.f32.mrb[0].mxu0
    %v3473 = vadd.f32 %v3230, %v3472
    %v3474 = vpop.f32.mrb[0].mxu0
    %v3475 = vpop.f32.mrb[0].mxu0
    %3476 = vdwg.mxu0
    %v3477 = vmax.f32 %v3430, 0.0
    %v3478 = vmax.f32 %v3432, 0.0
    %v3479 = vmax.f32 %v3471, 0.0
    %v3480 = vmax.f32 %v3473, 0.0
    %v3481 = vpack.c.bf16 %v3477, %v3477
    %v3482 = vpack.c.bf16 %v3478, %v3478
    %v3483 = vpack.c.bf16 %v3479, %v3479
    %v3484 = vpack.c.bf16 %v3480, %v3480
    %v3485 = vld [vmem:[#allocation9] sm:$0xff]
    %v3486 = vld [vmem:[#allocation9 + $0x8] sm:$0xff]
    %v3487 = vld [vmem:[#allocation9 + $0x10] sm:$0xff]
    %v3488 = vld [vmem:[#allocation9 + $0x18] sm:$0xff]
    %v3489 = vld [vmem:[#allocation9 + $0x20] sm:$0xff]
    %v3490 = vld [vmem:[#allocation9 + $0x28] sm:$0xff]
    %v3491 = vld [vmem:[#allocation9 + $0x30] sm:$0xff]
    %v3492 = vld [vmem:[#allocation9 + $0x38] sm:$0xff]
    %v3493 = vld [vmem:[#allocation9 + $0x40] sm:$0xff]
    %v3494 = vld [vmem:[#allocation9 + $0x48] sm:$0xff]
    %v3495 = vld [vmem:[#allocation9 + $0x50] sm:$0xff]
    %v3496 = vld [vmem:[#allocation9 + $0x58] sm:$0xff]
    %v3497 = vld [vmem:[#allocation9 + $0x60] sm:$0xff]
    %v3498 = vld [vmem:[#allocation9 + $0x68] sm:$0xff]
    %v3499 = vld [vmem:[#allocation9 + $0x70] sm:$0xff]
    %v3500 = vld [vmem:[#allocation9 + $0x78] sm:$0xff]
    %v3501 = vld [vmem:[#allocation9 + $0x80] sm:$0xff]
    %v3502 = vld [vmem:[#allocation9 + $0x88] sm:$0xff]
    %v3503 = vld [vmem:[#allocation9 + $0x90] sm:$0xff]
    %v3504 = vld [vmem:[#allocation9 + $0x98] sm:$0xff]
    %v3505 = vld [vmem:[#allocation9 + $0xa0] sm:$0xff]
    %v3506 = vld [vmem:[#allocation9 + $0xa8] sm:$0xff]
    %v3507 = vld [vmem:[#allocation9 + $0xb0] sm:$0xff]
    %v3508 = vld [vmem:[#allocation9 + $0xb8] sm:$0xff]
    %v3509 = vld [vmem:[#allocation9 + $0xc0] sm:$0xff]
    %v3510 = vld [vmem:[#allocation9 + $0xc8] sm:$0xff]
    %v3511 = vld [vmem:[#allocation9 + $0xd0] sm:$0xff]
    %v3512 = vld [vmem:[#allocation9 + $0xd8] sm:$0xff]
    %v3513 = vld [vmem:[#allocation9 + $0xe0] sm:$0xff]
    %v3514 = vld [vmem:[#allocation9 + $0xe8] sm:$0xff]
    %v3515 = vld [vmem:[#allocation9 + $0xf0] sm:$0xff]
    %v3516 = vld [vmem:[#allocation9 + $0xf8] sm:$0xff]
    %v3517 = vld [vmem:[#allocation9 + $0x100] sm:$0xff]
    %v3518 = vld [vmem:[#allocation9 + $0x108] sm:$0xff]
    %v3519 = vld [vmem:[#allocation9 + $0x110] sm:$0xff]
    %v3520 = vld [vmem:[#allocation9 + $0x118] sm:$0xff]
    %v3521 = vld [vmem:[#allocation9 + $0x120] sm:$0xff]
    %v3522 = vld [vmem:[#allocation9 + $0x128] sm:$0xff]
    %v3523 = vld [vmem:[#allocation9 + $0x130] sm:$0xff]
    %v3524 = vld [vmem:[#allocation9 + $0x138] sm:$0xff]
    %v3525 = vld [vmem:[#allocation9 + $0x140] sm:$0xff]
    %v3526 = vld [vmem:[#allocation9 + $0x148] sm:$0xff]
    %v3527 = vld [vmem:[#allocation9 + $0x150] sm:$0xff]
    %v3528 = vld [vmem:[#allocation9 + $0x158] sm:$0xff]
    %v3529 = vld [vmem:[#allocation9 + $0x160] sm:$0xff]
    %v3530 = vld [vmem:[#allocation9 + $0x168] sm:$0xff]
    %v3531 = vld [vmem:[#allocation9 + $0x170] sm:$0xff]
    %v3532 = vld [vmem:[#allocation9 + $0x178] sm:$0xff]
    %v3533 = vld [vmem:[#allocation9 + $0x180] sm:$0xff]
    %v3534 = vld [vmem:[#allocation9 + $0x188] sm:$0xff]
    %v3535 = vld [vmem:[#allocation9 + $0x190] sm:$0xff]
    %v3536 = vld [vmem:[#allocation9 + $0x198] sm:$0xff]
    %v3537 = vld [vmem:[#allocation9 + $0x1a0] sm:$0xff]
    %v3538 = vld [vmem:[#allocation9 + $0x1a8] sm:$0xff]
    %v3539 = vld [vmem:[#allocation9 + $0x1b0] sm:$0xff]
    %v3540 = vld [vmem:[#allocation9 + $0x1b8] sm:$0xff]
    %v3541 = vld [vmem:[#allocation9 + $0x1c0] sm:$0xff]
    %v3542 = vld [vmem:[#allocation9 + $0x1c8] sm:$0xff]
    %v3543 = vld [vmem:[#allocation9 + $0x1d0] sm:$0xff]
    %v3544 = vld [vmem:[#allocation9 + $0x1d8] sm:$0xff]
    %v3545 = vld [vmem:[#allocation9 + $0x1e0] sm:$0xff]
    %v3546 = vld [vmem:[#allocation9 + $0x1e8] sm:$0xff]
    %v3547 = vld [vmem:[#allocation9 + $0x1f0] sm:$0xff]
    %v3548 = vld [vmem:[#allocation9 + $0x1f8] sm:$0xff]
    %v3549 = vld [vmem:[#allocation9 + $0x200] sm:$0xff]
    %v3550 = vld [vmem:[#allocation9 + $0x208] sm:$0xff]
    %v3551 = vld [vmem:[#allocation9 + $0x210] sm:$0xff]
    %v3552 = vld [vmem:[#allocation9 + $0x218] sm:$0xff]
    %v3553 = vld [vmem:[#allocation9 + $0x220] sm:$0xff]
    %v3554 = vld [vmem:[#allocation9 + $0x228] sm:$0xff]
    %v3555 = vld [vmem:[#allocation9 + $0x230] sm:$0xff]
    %v3556 = vld [vmem:[#allocation9 + $0x238] sm:$0xff]
    %v3557 = vld [vmem:[#allocation9 + $0x240] sm:$0xff]
    %v3558 = vld [vmem:[#allocation9 + $0x248] sm:$0xff]
    %v3559 = vld [vmem:[#allocation9 + $0x250] sm:$0xff]
    %v3560 = vld [vmem:[#allocation9 + $0x258] sm:$0xff]
    %v3561 = vld [vmem:[#allocation9 + $0x260] sm:$0xff]
    %v3562 = vld [vmem:[#allocation9 + $0x268] sm:$0xff]
    %v3563 = vld [vmem:[#allocation9 + $0x270] sm:$0xff]
    %v3564 = vld [vmem:[#allocation9 + $0x278] sm:$0xff]
    %v3565 = vld [vmem:[#allocation9 + $0x280] sm:$0xff]
    %v3566 = vld [vmem:[#allocation9 + $0x288] sm:$0xff]
    %v3567 = vld [vmem:[#allocation9 + $0x290] sm:$0xff]
    %v3568 = vld [vmem:[#allocation9 + $0x298] sm:$0xff]
    %v3569 = vld [vmem:[#allocation9 + $0x2a0] sm:$0xff]
    %v3570 = vld [vmem:[#allocation9 + $0x2a8] sm:$0xff]
    %v3571 = vld [vmem:[#allocation9 + $0x2b0] sm:$0xff]
    %v3572 = vld [vmem:[#allocation9 + $0x2b8] sm:$0xff]
    %v3573 = vld [vmem:[#allocation9 + $0x2c0] sm:$0xff]
    %v3574 = vld [vmem:[#allocation9 + $0x2c8] sm:$0xff]
    %v3575 = vld [vmem:[#allocation9 + $0x2d0] sm:$0xff]
    %v3576 = vld [vmem:[#allocation9 + $0x2d8] sm:$0xff]
    %v3577 = vld [vmem:[#allocation9 + $0x2e0] sm:$0xff]
    %v3578 = vld [vmem:[#allocation9 + $0x2e8] sm:$0xff]
    %v3579 = vld [vmem:[#allocation9 + $0x2f0] sm:$0xff]
    %v3580 = vld [vmem:[#allocation9 + $0x2f8] sm:$0xff]
    %v3581 = vld [vmem:[#allocation9 + $0x300] sm:$0xff]
    %v3582 = vld [vmem:[#allocation9 + $0x308] sm:$0xff]
    %v3583 = vld [vmem:[#allocation9 + $0x310] sm:$0xff]
    %v3584 = vld [vmem:[#allocation9 + $0x318] sm:$0xff]
    %v3585 = vld [vmem:[#allocation9 + $0x320] sm:$0xff]
    %v3586 = vld [vmem:[#allocation9 + $0x328] sm:$0xff]
    %v3587 = vld [vmem:[#allocation9 + $0x330] sm:$0xff]
    %v3588 = vld [vmem:[#allocation9 + $0x338] sm:$0xff]
    %v3589 = vld [vmem:[#allocation9 + $0x340] sm:$0xff]
    %v3590 = vld [vmem:[#allocation9 + $0x348] sm:$0xff]
    %v3591 = vld [vmem:[#allocation9 + $0x350] sm:$0xff]
    %v3592 = vld [vmem:[#allocation9 + $0x358] sm:$0xff]
    %v3593 = vld [vmem:[#allocation9 + $0x360] sm:$0xff]
    %v3594 = vld [vmem:[#allocation9 + $0x368] sm:$0xff]
    %v3595 = vld [vmem:[#allocation9 + $0x370] sm:$0xff]
    %v3596 = vld [vmem:[#allocation9 + $0x378] sm:$0xff]
    %v3597 = vld [vmem:[#allocation9 + $0x380] sm:$0xff]
    %v3598 = vld [vmem:[#allocation9 + $0x388] sm:$0xff]
    %v3599 = vld [vmem:[#allocation9 + $0x390] sm:$0xff]
    %v3600 = vld [vmem:[#allocation9 + $0x398] sm:$0xff]
    %v3601 = vld [vmem:[#allocation9 + $0x3a0] sm:$0xff]
    %v3602 = vld [vmem:[#allocation9 + $0x3a8] sm:$0xff]
    %v3603 = vld [vmem:[#allocation9 + $0x3b0] sm:$0xff]
    %v3604 = vld [vmem:[#allocation9 + $0x3b8] sm:$0xff]
    %v3605 = vld [vmem:[#allocation9 + $0x3c0] sm:$0xff]
    %v3606 = vld [vmem:[#allocation9 + $0x3c8] sm:$0xff]
    %v3607 = vld [vmem:[#allocation9 + $0x3d0] sm:$0xff]
    %v3608 = vld [vmem:[#allocation9 + $0x3d8] sm:$0xff]
    %v3609 = vld [vmem:[#allocation9 + $0x3e0] sm:$0xff]
    %v3610 = vld [vmem:[#allocation9 + $0x3e8] sm:$0xff]
    %v3611 = vld [vmem:[#allocation9 + $0x3f0] sm:$0xff]
    %v3612 = vld [vmem:[#allocation9 + $0x3f8] sm:$0xff]
    %v3613 = vld [vmem:[%s11] sm:$0xf]
    %v3615 = vlaneseq
    %v3616 = vshrl.u32 %v3615, 7
    %v3617 = vsub.s32 0, %v3616
    %v3618 = vrot.slane %v3613, %v3617
    %v3619 = vlaneseq
    %v3620 = vshrl.u32 %v3619, 7
    %v3621 = vsub.s32 1, %v3620
    %v3622 = vrot.slane %v3613, %v3621
    %v3623 = vlaneseq
    %v3624 = vshrl.u32 %v3623, 7
    %v3625 = vsub.s32 2, %v3624
    %v3626 = vrot.slane %v3613, %v3625
    %v3627 = vlaneseq
    %v3628 = vshrl.u32 %v3627, 7
    %v3629 = vsub.s32 3, %v3628
    %v3630 = vrot.slane %v3613, %v3629
    %v3763 = vunpack.c.l.b16 %v3485
    %v3764 = vunpack.c.h.b16 %v3485
    %v3765 = vunpack.c.l.b16 %v3486
    %v3766 = vunpack.c.h.b16 %v3486
    %v3767 = vunpack.c.l.b16 %v3487
    %v3768 = vunpack.c.h.b16 %v3487
    %v3769 = vunpack.c.l.b16 %v3488
    %v3770 = vunpack.c.h.b16 %v3488
    %v3771 = vunpack.c.l.b16 %v3489
    %v3772 = vunpack.c.h.b16 %v3489
    %v3773 = vunpack.c.l.b16 %v3490
    %v3774 = vunpack.c.h.b16 %v3490
    %v3775 = vunpack.c.l.b16 %v3491
    %v3776 = vunpack.c.h.b16 %v3491
    %v3777 = vunpack.c.l.b16 %v3492
    %v3778 = vunpack.c.h.b16 %v3492
    %v3779 = vunpack.c.l.b16 %v3493
    %v3780 = vunpack.c.h.b16 %v3493
    %v3781 = vunpack.c.l.b16 %v3494
    %v3782 = vunpack.c.h.b16 %v3494
    %v3783 = vunpack.c.l.b16 %v3495
    %v3784 = vunpack.c.h.b16 %v3495
    %v3785 = vunpack.c.l.b16 %v3496
    %v3786 = vunpack.c.h.b16 %v3496
    %v3787 = vunpack.c.l.b16 %v3497
    %v3788 = vunpack.c.h.b16 %v3497
    %v3789 = vunpack.c.l.b16 %v3498
    %v3790 = vunpack.c.h.b16 %v3498
    %v3791 = vunpack.c.l.b16 %v3499
    %v3792 = vunpack.c.h.b16 %v3499
    %v3793 = vunpack.c.l.b16 %v3500
    %v3794 = vunpack.c.h.b16 %v3500
    %v3795 = vunpack.c.l.b16 %v3501
    %v3796 = vunpack.c.h.b16 %v3501
    %v3797 = vunpack.c.l.b16 %v3502
    %v3798 = vunpack.c.h.b16 %v3502
    %v3799 = vunpack.c.l.b16 %v3503
    %v3800 = vunpack.c.h.b16 %v3503
    %v3801 = vunpack.c.l.b16 %v3504
    %v3802 = vunpack.c.h.b16 %v3504
    %v3803 = vunpack.c.l.b16 %v3505
    %v3804 = vunpack.c.h.b16 %v3505
    %v3805 = vunpack.c.l.b16 %v3506
    %v3806 = vunpack.c.h.b16 %v3506
    %v3807 = vunpack.c.l.b16 %v3507
    %v3808 = vunpack.c.h.b16 %v3507
    %v3809 = vunpack.c.l.b16 %v3508
    %v3810 = vunpack.c.h.b16 %v3508
    %v3811 = vunpack.c.l.b16 %v3509
    %v3812 = vunpack.c.h.b16 %v3509
    %v3813 = vunpack.c.l.b16 %v3510
    %v3814 = vunpack.c.h.b16 %v3510
    %v3815 = vunpack.c.l.b16 %v3511
    %v3816 = vunpack.c.h.b16 %v3511
    %v3817 = vunpack.c.l.b16 %v3512
    %v3818 = vunpack.c.h.b16 %v3512
    %v3819 = vunpack.c.l.b16 %v3513
    %v3820 = vunpack.c.h.b16 %v3513
    %v3821 = vunpack.c.l.b16 %v3514
    %v3822 = vunpack.c.h.b16 %v3514
    %v3823 = vunpack.c.l.b16 %v3515
    %v3824 = vunpack.c.h.b16 %v3515
    %v3825 = vunpack.c.l.b16 %v3516
    %v3826 = vunpack.c.h.b16 %v3516
    %v3827 = vunpack.c.l.b16 %v3517
    %v3828 = vunpack.c.h.b16 %v3517
    %v3829 = vunpack.c.l.b16 %v3518
    %v3830 = vunpack.c.h.b16 %v3518
    %v3831 = vunpack.c.l.b16 %v3519
    %v3832 = vunpack.c.h.b16 %v3519
    %v3833 = vunpack.c.l.b16 %v3520
    %v3834 = vunpack.c.h.b16 %v3520
    %v3835 = vunpack.c.l.b16 %v3521
    %v3836 = vunpack.c.h.b16 %v3521
    %v3837 = vunpack.c.l.b16 %v3522
    %v3838 = vunpack.c.h.b16 %v3522
    %v3839 = vunpack.c.l.b16 %v3523
    %v3840 = vunpack.c.h.b16 %v3523
    %v3841 = vunpack.c.l.b16 %v3524
    %v3842 = vunpack.c.h.b16 %v3524
    %v3843 = vunpack.c.l.b16 %v3525
    %v3844 = vunpack.c.h.b16 %v3525
    %v3845 = vunpack.c.l.b16 %v3526
    %v3846 = vunpack.c.h.b16 %v3526
    %v3847 = vunpack.c.l.b16 %v3527
    %v3848 = vunpack.c.h.b16 %v3527
    %v3849 = vunpack.c.l.b16 %v3528
    %v3850 = vunpack.c.h.b16 %v3528
    %v3851 = vunpack.c.l.b16 %v3529
    %v3852 = vunpack.c.h.b16 %v3529
    %v3853 = vunpack.c.l.b16 %v3530
    %v3854 = vunpack.c.h.b16 %v3530
    %v3855 = vunpack.c.l.b16 %v3531
    %v3856 = vunpack.c.h.b16 %v3531
    %v3857 = vunpack.c.l.b16 %v3532
    %v3858 = vunpack.c.h.b16 %v3532
    %v3859 = vunpack.c.l.b16 %v3533
    %v3860 = vunpack.c.h.b16 %v3533
    %v3861 = vunpack.c.l.b16 %v3534
    %v3862 = vunpack.c.h.b16 %v3534
    %v3863 = vunpack.c.l.b16 %v3535
    %v3864 = vunpack.c.h.b16 %v3535
    %v3865 = vunpack.c.l.b16 %v3536
    %v3866 = vunpack.c.h.b16 %v3536
    %v3867 = vunpack.c.l.b16 %v3537
    %v3868 = vunpack.c.h.b16 %v3537
    %v3869 = vunpack.c.l.b16 %v3538
    %v3870 = vunpack.c.h.b16 %v3538
    %v3871 = vunpack.c.l.b16 %v3539
    %v3872 = vunpack.c.h.b16 %v3539
    %v3873 = vunpack.c.l.b16 %v3540
    %v3874 = vunpack.c.h.b16 %v3540
    %v3875 = vunpack.c.l.b16 %v3541
    %v3876 = vunpack.c.h.b16 %v3541
    %v3877 = vunpack.c.l.b16 %v3542
    %v3878 = vunpack.c.h.b16 %v3542
    %v3879 = vunpack.c.l.b16 %v3543
    %v3880 = vunpack.c.h.b16 %v3543
    %v3881 = vunpack.c.l.b16 %v3544
    %v3882 = vunpack.c.h.b16 %v3544
    %v3883 = vunpack.c.l.b16 %v3545
    %v3884 = vunpack.c.h.b16 %v3545
    %v3885 = vunpack.c.l.b16 %v3546
    %v3886 = vunpack.c.h.b16 %v3546
    %v3887 = vunpack.c.l.b16 %v3547
    %v3888 = vunpack.c.h.b16 %v3547
    %v3889 = vunpack.c.l.b16 %v3548
    %v3890 = vunpack.c.h.b16 %v3548
    %v3891 = vunpack.c.l.b16 %v3549
    %v3892 = vunpack.c.h.b16 %v3549
    %v3893 = vunpack.c.l.b16 %v3550
    %v3894 = vunpack.c.h.b16 %v3550
    %v3895 = vunpack.c.l.b16 %v3551
    %v3896 = vunpack.c.h.b16 %v3551
    %v3897 = vunpack.c.l.b16 %v3552
    %v3898 = vunpack.c.h.b16 %v3552
    %v3899 = vunpack.c.l.b16 %v3553
    %v3900 = vunpack.c.h.b16 %v3553
    %v3901 = vunpack.c.l.b16 %v3554
    %v3902 = vunpack.c.h.b16 %v3554
    %v3903 = vunpack.c.l.b16 %v3555
    %v3904 = vunpack.c.h.b16 %v3555
    %v3905 = vunpack.c.l.b16 %v3556
    %v3906 = vunpack.c.h.b16 %v3556
    %v3907 = vunpack.c.l.b16 %v3557
    %v3908 = vunpack.c.h.b16 %v3557
    %v3909 = vunpack.c.l.b16 %v3558
    %v3910 = vunpack.c.h.b16 %v3558
    %v3911 = vunpack.c.l.b16 %v3559
    %v3912 = vunpack.c.h.b16 %v3559
    %v3913 = vunpack.c.l.b16 %v3560
    %v3914 = vunpack.c.h.b16 %v3560
    %v3915 = vunpack.c.l.b16 %v3561
    %v3916 = vunpack.c.h.b16 %v3561
    %v3917 = vunpack.c.l.b16 %v3562
    %v3918 = vunpack.c.h.b16 %v3562
    %v3919 = vunpack.c.l.b16 %v3563
    %v3920 = vunpack.c.h.b16 %v3563
    %v3921 = vunpack.c.l.b16 %v3564
    %v3922 = vunpack.c.h.b16 %v3564
    %v3923 = vunpack.c.l.b16 %v3565
    %v3924 = vunpack.c.h.b16 %v3565
    %v3925 = vunpack.c.l.b16 %v3566
    %v3926 = vunpack.c.h.b16 %v3566
    %v3927 = vunpack.c.l.b16 %v3567
    %v3928 = vunpack.c.h.b16 %v3567
    %v3929 = vunpack.c.l.b16 %v3568
    %v3930 = vunpack.c.h.b16 %v3568
    %v3931 = vunpack.c.l.b16 %v3569
    %v3932 = vunpack.c.h.b16 %v3569
    %v3933 = vunpack.c.l.b16 %v3570
    %v3934 = vunpack.c.h.b16 %v3570
    %v3935 = vunpack.c.l.b16 %v3571
    %v3936 = vunpack.c.h.b16 %v3571
    %v3937 = vunpack.c.l.b16 %v3572
    %v3938 = vunpack.c.h.b16 %v3572
    %v3939 = vunpack.c.l.b16 %v3573
    %v3940 = vunpack.c.h.b16 %v3573
    %v3941 = vunpack.c.l.b16 %v3574
    %v3942 = vunpack.c.h.b16 %v3574
    %v3943 = vunpack.c.l.b16 %v3575
    %v3944 = vunpack.c.h.b16 %v3575
    %v3945 = vunpack.c.l.b16 %v3576
    %v3946 = vunpack.c.h.b16 %v3576
    %v3947 = vunpack.c.l.b16 %v3577
    %v3948 = vunpack.c.h.b16 %v3577
    %v3949 = vunpack.c.l.b16 %v3578
    %v3950 = vunpack.c.h.b16 %v3578
    %v3951 = vunpack.c.l.b16 %v3579
    %v3952 = vunpack.c.h.b16 %v3579
    %v3953 = vunpack.c.l.b16 %v3580
    %v3954 = vunpack.c.h.b16 %v3580
    %v3955 = vunpack.c.l.b16 %v3581
    %v3956 = vunpack.c.h.b16 %v3581
    %v3957 = vunpack.c.l.b16 %v3582
    %v3958 = vunpack.c.h.b16 %v3582
    %v3959 = vunpack.c.l.b16 %v3583
    %v3960 = vunpack.c.h.b16 %v3583
    %v3961 = vunpack.c.l.b16 %v3584
    %v3962 = vunpack.c.h.b16 %v3584
    %v3963 = vunpack.c.l.b16 %v3585
    %v3964 = vunpack.c.h.b16 %v3585
    %v3965 = vunpack.c.l.b16 %v3586
    %v3966 = vunpack.c.h.b16 %v3586
    %v3967 = vunpack.c.l.b16 %v3587
    %v3968 = vunpack.c.h.b16 %v3587
    %v3969 = vunpack.c.l.b16 %v3588
    %v3970 = vunpack.c.h.b16 %v3588
    %v3971 = vunpack.c.l.b16 %v3589
    %v3972 = vunpack.c.h.b16 %v3589
    %v3973 = vunpack.c.l.b16 %v3590
    %v3974 = vunpack.c.h.b16 %v3590
    %v3975 = vunpack.c.l.b16 %v3591
    %v3976 = vunpack.c.h.b16 %v3591
    %v3977 = vunpack.c.l.b16 %v3592
    %v3978 = vunpack.c.h.b16 %v3592
    %v3979 = vunpack.c.l.b16 %v3593
    %v3980 = vunpack.c.h.b16 %v3593
    %v3981 = vunpack.c.l.b16 %v3594
    %v3982 = vunpack.c.h.b16 %v3594
    %v3983 = vunpack.c.l.b16 %v3595
    %v3984 = vunpack.c.h.b16 %v3595
    %v3985 = vunpack.c.l.b16 %v3596
    %v3986 = vunpack.c.h.b16 %v3596
    %v3987 = vunpack.c.l.b16 %v3597
    %v3988 = vunpack.c.h.b16 %v3597
    %v3989 = vunpack.c.l.b16 %v3598
    %v3990 = vunpack.c.h.b16 %v3598
    %v3991 = vunpack.c.l.b16 %v3599
    %v3992 = vunpack.c.h.b16 %v3599
    %v3993 = vunpack.c.l.b16 %v3600
    %v3994 = vunpack.c.h.b16 %v3600
    %v3995 = vunpack.c.l.b16 %v3601
    %v3996 = vunpack.c.h.b16 %v3601
    %v3997 = vunpack.c.l.b16 %v3602
    %v3998 = vunpack.c.h.b16 %v3602
    %v3999 = vunpack.c.l.b16 %v3603
    %v4000 = vunpack.c.h.b16 %v3603
    %v4001 = vunpack.c.l.b16 %v3604
    %v4002 = vunpack.c.h.b16 %v3604
    %v4003 = vunpack.c.l.b16 %v3605
    %v4004 = vunpack.c.h.b16 %v3605
    %v4005 = vunpack.c.l.b16 %v3606
    %v4006 = vunpack.c.h.b16 %v3606
    %v4007 = vunpack.c.l.b16 %v3607
    %v4008 = vunpack.c.h.b16 %v3607
    %v4009 = vunpack.c.l.b16 %v3608
    %v4010 = vunpack.c.h.b16 %v3608
    %v4011 = vunpack.c.l.b16 %v3609
    %v4012 = vunpack.c.h.b16 %v3609
    %v4013 = vunpack.c.l.b16 %v3610
    %v4014 = vunpack.c.h.b16 %v3610
    %v4015 = vunpack.c.l.b16 %v3611
    %v4016 = vunpack.c.h.b16 %v3611
    %v4017 = vunpack.c.l.b16 %v3612
    %v4018 = vunpack.c.h.b16 %v3612
    %v4019 = vpack.c.b16 %v3767, %v3763
    %v4020 = vpack.c.b16 %v3768, %v3764
    %v4021 = vpack.c.b16 %v3769, %v3765
    %v4022 = vpack.c.b16 %v3770, %v3766
    %v4023 = vpack.c.b16 %v3775, %v3771
    %v4024 = vpack.c.b16 %v3776, %v3772
    %v4025 = vpack.c.b16 %v3777, %v3773
    %v4026 = vpack.c.b16 %v3778, %v3774
    %v4027 = vpack.c.b16 %v3783, %v3779
    %v4028 = vpack.c.b16 %v3784, %v3780
    %v4029 = vpack.c.b16 %v3785, %v3781
    %v4030 = vpack.c.b16 %v3786, %v3782
    %v4031 = vpack.c.b16 %v3791, %v3787
    %v4032 = vpack.c.b16 %v3792, %v3788
    %v4033 = vpack.c.b16 %v3793, %v3789
    %v4034 = vpack.c.b16 %v3794, %v3790
    %v4035 = vpack.c.b16 %v3799, %v3795
    %v4036 = vpack.c.b16 %v3800, %v3796
    %v4037 = vpack.c.b16 %v3801, %v3797
    %v4038 = vpack.c.b16 %v3802, %v3798
    %v4039 = vpack.c.b16 %v3807, %v3803
    %v4040 = vpack.c.b16 %v3808, %v3804
    %v4041 = vpack.c.b16 %v3809, %v3805
    %v4042 = vpack.c.b16 %v3810, %v3806
    %v4043 = vpack.c.b16 %v3815, %v3811
    %v4044 = vpack.c.b16 %v3816, %v3812
    %v4045 = vpack.c.b16 %v3817, %v3813
    %v4046 = vpack.c.b16 %v3818, %v3814
    %v4047 = vpack.c.b16 %v3823, %v3819
    %v4048 = vpack.c.b16 %v3824, %v3820
    %v4049 = vpack.c.b16 %v3825, %v3821
    %v4050 = vpack.c.b16 %v3826, %v3822
    %v4051 = vpack.c.b16 %v3831, %v3827
    %v4052 = vpack.c.b16 %v3832, %v3828
    %v4053 = vpack.c.b16 %v3833, %v3829
    %v4054 = vpack.c.b16 %v3834, %v3830
    %v4055 = vpack.c.b16 %v3839, %v3835
    %v4056 = vpack.c.b16 %v3840, %v3836
    %v4057 = vpack.c.b16 %v3841, %v3837
    %v4058 = vpack.c.b16 %v3842, %v3838
    %v4059 = vpack.c.b16 %v3847, %v3843
    %v4060 = vpack.c.b16 %v3848, %v3844
    %v4061 = vpack.c.b16 %v3849, %v3845
    %v4062 = vpack.c.b16 %v3850, %v3846
    %v4063 = vpack.c.b16 %v3855, %v3851
    %v4064 = vpack.c.b16 %v3856, %v3852
    %v4065 = vpack.c.b16 %v3857, %v3853
    %v4066 = vpack.c.b16 %v3858, %v3854
    %v4067 = vpack.c.b16 %v3863, %v3859
    %v4068 = vpack.c.b16 %v3864, %v3860
    %v4069 = vpack.c.b16 %v3865, %v3861
    %v4070 = vpack.c.b16 %v3866, %v3862
    %v4071 = vpack.c.b16 %v3871, %v3867
    %v4072 = vpack.c.b16 %v3872, %v3868
    %v4073 = vpack.c.b16 %v3873, %v3869
    %v4074 = vpack.c.b16 %v3874, %v3870
    %v4075 = vpack.c.b16 %v3879, %v3875
    %v4076 = vpack.c.b16 %v3880, %v3876
    %v4077 = vpack.c.b16 %v3881, %v3877
    %v4078 = vpack.c.b16 %v3882, %v3878
    %v4079 = vpack.c.b16 %v3887, %v3883
    %v4080 = vpack.c.b16 %v3888, %v3884
    %v4081 = vpack.c.b16 %v3889, %v3885
    %v4082 = vpack.c.b16 %v3890, %v3886
    %v4083 = vpack.c.b16 %v3895, %v3891
    %v4084 = vpack.c.b16 %v3896, %v3892
    %v4085 = vpack.c.b16 %v3897, %v3893
    %v4086 = vpack.c.b16 %v3898, %v3894
    %v4087 = vpack.c.b16 %v3903, %v3899
    %v4088 = vpack.c.b16 %v3904, %v3900
    %v4089 = vpack.c.b16 %v3905, %v3901
    %v4090 = vpack.c.b16 %v3906, %v3902
    %v4091 = vpack.c.b16 %v3911, %v3907
    %v4092 = vpack.c.b16 %v3912, %v3908
    %v4093 = vpack.c.b16 %v3913, %v3909
    %v4094 = vpack.c.b16 %v3914, %v3910
    %v4095 = vpack.c.b16 %v3919, %v3915
    %v4096 = vpack.c.b16 %v3920, %v3916
    %v4097 = vpack.c.b16 %v3921, %v3917
    %v4098 = vpack.c.b16 %v3922, %v3918
    %v4099 = vpack.c.b16 %v3927, %v3923
    %v4100 = vpack.c.b16 %v3928, %v3924
    %v4101 = vpack.c.b16 %v3929, %v3925
    %v4102 = vpack.c.b16 %v3930, %v3926
    %v4103 = vpack.c.b16 %v3935, %v3931
    %v4104 = vpack.c.b16 %v3936, %v3932
    %v4105 = vpack.c.b16 %v3937, %v3933
    %v4106 = vpack.c.b16 %v3938, %v3934
    %v4107 = vpack.c.b16 %v3943, %v3939
    %v4108 = vpack.c.b16 %v3944, %v3940
    %v4109 = vpack.c.b16 %v3945, %v3941
    %v4110 = vpack.c.b16 %v3946, %v3942
    %v4111 = vpack.c.b16 %v3951, %v3947
    %v4112 = vpack.c.b16 %v3952, %v3948
    %v4113 = vpack.c.b16 %v3953, %v3949
    %v4114 = vpack.c.b16 %v3954, %v3950
    %v4115 = vpack.c.b16 %v3959, %v3955
    %v4116 = vpack.c.b16 %v3960, %v3956
    %v4117 = vpack.c.b16 %v3961, %v3957
    %v4118 = vpack.c.b16 %v3962, %v3958
    %v4119 = vpack.c.b16 %v3967, %v3963
    %v4120 = vpack.c.b16 %v3968, %v3964
    %v4121 = vpack.c.b16 %v3969, %v3965
    %v4122 = vpack.c.b16 %v3970, %v3966
    %v4123 = vpack.c.b16 %v3975, %v3971
    %v4124 = vpack.c.b16 %v3976, %v3972
    %v4125 = vpack.c.b16 %v3977, %v3973
    %v4126 = vpack.c.b16 %v3978, %v3974
    %v4127 = vpack.c.b16 %v3983, %v3979
    %v4128 = vpack.c.b16 %v3984, %v3980
    %v4129 = vpack.c.b16 %v3985, %v3981
    %v4130 = vpack.c.b16 %v3986, %v3982
    %v4131 = vpack.c.b16 %v3991, %v3987
    %v4132 = vpack.c.b16 %v3992, %v3988
    %v4133 = vpack.c.b16 %v3993, %v3989
    %v4134 = vpack.c.b16 %v3994, %v3990
    %v4135 = vpack.c.b16 %v3999, %v3995
    %v4136 = vpack.c.b16 %v4000, %v3996
    %v4137 = vpack.c.b16 %v4001, %v3997
    %v4138 = vpack.c.b16 %v4002, %v3998
    %v4139 = vpack.c.b16 %v4007, %v4003
    %v4140 = vpack.c.b16 %v4008, %v4004
    %v4141 = vpack.c.b16 %v4009, %v4005
    %v4142 = vpack.c.b16 %v4010, %v4006
    %v4143 = vpack.c.b16 %v4015, %v4011
    %v4144 = vpack.c.b16 %v4016, %v4012
    %v4145 = vpack.c.b16 %v4017, %v4013
    %v4146 = vpack.c.b16 %v4018, %v4014
    %4275 = vmatprep.subr.bf16.mxu0 %v4020
    %4276 = vmatpush1.bf16.msra.mxu0 %v4019
    %4277 = vmatprep.subr.bf16.mxu0 %v4024
    %4278 = vmatpush1.bf16.msra.mxu0 %v4023
    %4279 = vmatprep.subr.bf16.mxu0 %v4028
    %4280 = vmatpush1.bf16.msra.mxu0 %v4027
    %4281 = vmatprep.subr.bf16.mxu0 %v4032
    %4282 = vmatpush1.bf16.msra.mxu0 %v4031
    %4283 = vmatprep.subr.bf16.mxu0 %v4036
    %4284 = vmatpush1.bf16.msra.mxu0 %v4035
    %4285 = vmatprep.subr.bf16.mxu0 %v4040
    %4286 = vmatpush1.bf16.msra.mxu0 %v4039
    %4287 = vmatprep.subr.bf16.mxu0 %v4044
    %4288 = vmatpush1.bf16.msra.mxu0 %v4043
    %4289 = vmatprep.subr.bf16.mxu0 %v4048
    %4290 = vmatpush1.bf16.msra.mxu0 %v4047
    %4291 = vmatprep.subr.bf16.mxu0 %v4052
    %4292 = vmatpush1.bf16.msra.mxu0 %v4051
    %4293 = vmatprep.subr.bf16.mxu0 %v4056
    %4294 = vmatpush1.bf16.msra.mxu0 %v4055
    %4295 = vmatprep.subr.bf16.mxu0 %v4060
    %4296 = vmatpush1.bf16.msra.mxu0 %v4059
    %4297 = vmatprep.subr.bf16.mxu0 %v4064
    %4298 = vmatpush1.bf16.msra.mxu0 %v4063
    %4299 = vmatprep.subr.bf16.mxu0 %v4068
    %4300 = vmatpush1.bf16.msra.mxu0 %v4067
    %4301 = vmatprep.subr.bf16.mxu0 %v4072
    %4302 = vmatpush1.bf16.msra.mxu0 %v4071
    %4303 = vmatprep.subr.bf16.mxu0 %v4076
    %4304 = vmatpush1.bf16.msra.mxu0 %v4075
    %4305 = vmatprep.subr.bf16.mxu0 %v4080
    %4306 = vmatpush1.bf16.msra.mxu0 %v4079
    %4307 = vmatprep.mubr.bf16.mxu0 %v3482
    %4308 = vmatmul.mubr.bf16.gmra.mrb[0].mxu0 %v3481
    %v4309 = vpop.f32.mrb[0].mxu0
    %v4310 = vadd.f32 %v3618, %v4309
    %v4311 = vpop.f32.mrb[0].mxu0
    %v4312 = vadd.f32 %v3622, %v4311
    %v4313 = vpop.f32.mrb[0].mxu0
    %v4314 = vpop.f32.mrb[0].mxu0
    %4315 = vdwg.mxu0
    %4316 = vmatprep.subr.bf16.mxu0 %v4084
    %4317 = vmatpush1.bf16.msra.mxu0 %v4083
    %4318 = vmatprep.subr.bf16.mxu0 %v4088
    %4319 = vmatpush1.bf16.msra.mxu0 %v4087
    %4320 = vmatprep.subr.bf16.mxu0 %v4092
    %4321 = vmatpush1.bf16.msra.mxu0 %v4091
    %4322 = vmatprep.subr.bf16.mxu0 %v4096
    %4323 = vmatpush1.bf16.msra.mxu0 %v4095
    %4324 = vmatprep.subr.bf16.mxu0 %v4100
    %4325 = vmatpush1.bf16.msra.mxu0 %v4099
    %4326 = vmatprep.subr.bf16.mxu0 %v4104
    %4327 = vmatpush1.bf16.msra.mxu0 %v4103
    %4328 = vmatprep.subr.bf16.mxu0 %v4108
    %4329 = vmatpush1.bf16.msra.mxu0 %v4107
    %4330 = vmatprep.subr.bf16.mxu0 %v4112
    %4331 = vmatpush1.bf16.msra.mxu0 %v4111
    %4332 = vmatprep.subr.bf16.mxu0 %v4116
    %4333 = vmatpush1.bf16.msra.mxu0 %v4115
    %4334 = vmatprep.subr.bf16.mxu0 %v4120
    %4335 = vmatpush1.bf16.msra.mxu0 %v4119
    %4336 = vmatprep.subr.bf16.mxu0 %v4124
    %4337 = vmatpush1.bf16.msra.mxu0 %v4123
    %4338 = vmatprep.subr.bf16.mxu0 %v4128
    %4339 = vmatpush1.bf16.msra.mxu0 %v4127
    %4340 = vmatprep.subr.bf16.mxu0 %v4132
    %4341 = vmatpush1.bf16.msra.mxu0 %v4131
    %4342 = vmatprep.subr.bf16.mxu0 %v4136
    %4343 = vmatpush1.bf16.msra.mxu0 %v4135
    %4344 = vmatprep.subr.bf16.mxu0 %v4140
    %4345 = vmatpush1.bf16.msra.mxu0 %v4139
    %4346 = vmatprep.subr.bf16.mxu0 %v4144
    %4347 = vmatpush1.bf16.msra.mxu0 %v4143
    %4348 = vmatprep.mubr.bf16.mxu0 %v3484
    %4349 = vmatmul.mubr.bf16.gmra.mrb[0].mxu0 %v3483
    %v4350 = vpop.f32.mrb[0].mxu0
    %v4351 = vadd.f32 %v4310, %v4350
    %v4352 = vpop.f32.mrb[0].mxu0
    %v4353 = vadd.f32 %v4312, %v4352
    %v4354 = vpop.f32.mrb[0].mxu0
    %v4355 = vpop.f32.mrb[0].mxu0
    %4356 = vdwg.mxu0
    %4357 = vmatprep.subr.bf16.mxu0 %v4022
    %4358 = vmatpush1.bf16.msra.mxu0 %v4021
    %4359 = vmatprep.subr.bf16.mxu0 %v4026
    %4360 = vmatpush1.bf16.msra.mxu0 %v4025
    %4361 = vmatprep.subr.bf16.mxu0 %v4030
    %4362 = vmatpush1.bf16.msra.mxu0 %v4029
    %4363 = vmatprep.subr.bf16.mxu0 %v4034
    %4364 = vmatpush1.bf16.msra.mxu0 %v4033
    %4365 = vmatprep.subr.bf16.mxu0 %v4038
    %4366 = vmatpush1.bf16.msra.mxu0 %v4037
    %4367 = vmatprep.subr.bf16.mxu0 %v4042
    %4368 = vmatpush1.bf16.msra.mxu0 %v4041
    %4369 = vmatprep.subr.bf16.mxu0 %v4046
    %4370 = vmatpush1.bf16.msra.mxu0 %v4045
    %4371 = vmatprep.subr.bf16.mxu0 %v4050
    %4372 = vmatpush1.bf16.msra.mxu0 %v4049
    %4373 = vmatprep.subr.bf16.mxu0 %v4054
    %4374 = vmatpush1.bf16.msra.mxu0 %v4053
    %4375 = vmatprep.subr.bf16.mxu0 %v4058
    %4376 = vmatpush1.bf16.msra.mxu0 %v4057
    %4377 = vmatprep.subr.bf16.mxu0 %v4062
    %4378 = vmatpush1.bf16.msra.mxu0 %v4061
    %4379 = vmatprep.subr.bf16.mxu0 %v4066
    %4380 = vmatpush1.bf16.msra.mxu0 %v4065
    %4381 = vmatprep.subr.bf16.mxu0 %v4070
    %4382 = vmatpush1.bf16.msra.mxu0 %v4069
    %4383 = vmatprep.subr.bf16.mxu0 %v4074
    %4384 = vmatpush1.bf16.msra.mxu0 %v4073
    %4385 = vmatprep.subr.bf16.mxu0 %v4078
    %4386 = vmatpush1.bf16.msra.mxu0 %v4077
    %4387 = vmatprep.subr.bf16.mxu0 %v4082
    %4388 = vmatpush1.bf16.msra.mxu0 %v4081
    %4389 = vmatprep.mubr.bf16.mxu0 %v3482
    %4390 = vmatmul.mubr.bf16.gmra.mrb[0].mxu0 %v3481
    %v4391 = vpop.f32.mrb[0].mxu0
    %v4392 = vadd.f32 %v3626, %v4391
    %v4393 = vpop.f32.mrb[0].mxu0
    %v4394 = vadd.f32 %v3630, %v4393
    %v4395 = vpop.f32.mrb[0].mxu0
    %v4396 = vpop.f32.mrb[0].mxu0
    %4397 = vdwg.mxu0
    %4398 = vmatprep.subr.bf16.mxu0 %v4086
    %4399 = vmatpush1.bf16.msra.mxu0 %v4085
    %4400 = vmatprep.subr.bf16.mxu0 %v4090
    %4401 = vmatpush1.bf16.msra.mxu0 %v4089
    %4402 = vmatprep.subr.bf16.mxu0 %v4094
    %4403 = vmatpush1.bf16.msra.mxu0 %v4093
    %4404 = vmatprep.subr.bf16.mxu0 %v4098
    %4405 = vmatpush1.bf16.msra.mxu0 %v4097
    %4406 = vmatprep.subr.bf16.mxu0 %v4102
    %4407 = vmatpush1.bf16.msra.mxu0 %v4101
    %4408 = vmatprep.subr.bf16.mxu0 %v4106
    %4409 = vmatpush1.bf16.msra.mxu0 %v4105
    %4410 = vmatprep.subr.bf16.mxu0 %v4110
    %4411 = vmatpush1.bf16.msra.mxu0 %v4109
    %4412 = vmatprep.subr.bf16.mxu0 %v4114
    %4413 = vmatpush1.bf16.msra.mxu0 %v4113
    %4414 = vmatprep.subr.bf16.mxu0 %v4118
    %4415 = vmatpush1.bf16.msra.mxu0 %v4117
    %4416 = vmatprep.subr.bf16.mxu0 %v4122
    %4417 = vmatpush1.bf16.msra.mxu0 %v4121
    %4418 = vmatprep.subr.bf16.mxu0 %v4126
    %4419 = vmatpush1.bf16.msra.mxu0 %v4125
    %4420 = vmatprep.subr.bf16.mxu0 %v4130
    %4421 = vmatpush1.bf16.msra.mxu0 %v4129
    %4422 = vmatprep.subr.bf16.mxu0 %v4134
    %4423 = vmatpush1.bf16.msra.mxu0 %v4133
    %4424 = vmatprep.subr.bf16.mxu0 %v4138
    %4425 = vmatpush1.bf16.msra.mxu0 %v4137
    %4426 = vmatprep.subr.bf16.mxu0 %v4142
    %4427 = vmatpush1.bf16.msra.mxu0 %v4141
    %4428 = vmatprep.subr.bf16.mxu0 %v4146
    %4429 = vmatpush1.bf16.msra.mxu0 %v4145
    %4430 = vmatprep.mubr.bf16.mxu0 %v3484
    %4431 = vmatmul.mubr.bf16.gmra.mrb[0].mxu0 %v3483
    %v4432 = vpop.f32.mrb[0].mxu0
    %v4433 = vadd.f32 %v4392, %v4432
    %v4434 = vpop.f32.mrb[0].mxu0
    %v4435 = vadd.f32 %v4394, %v4434
    %v4436 = vpop.f32.mrb[0].mxu0
    %v4437 = vpop.f32.mrb[0].mxu0
    %4438 = vdwg.mxu0
    %v4439 = vmax.f32 %v4351, 0.0
    %v4440 = vmax.f32 %v4353, 0.0
    %v4441 = vmax.f32 %v4433, 0.0
    %v4442 = vmax.f32 %v4435, 0.0
    %v4443 = vpack.c.bf16 %v4439, %v4439
    %v4444 = vpack.c.bf16 %v4440, %v4440
    %v4445 = vpack.c.bf16 %v4441, %v4441
    %v4446 = vpack.c.bf16 %v4442, %v4442
    %v4447 = vld [vmem:[#allocation10] sm:$0xff]
    %v4448 = vld [vmem:[#allocation10 + $0x8] sm:$0xff]
    %v4449 = vld [vmem:[#allocation10 + $0x10] sm:$0xff]
    %v4450 = vld [vmem:[#allocation10 + $0x18] sm:$0xf]
    %v4451 = vld [vmem:[#allocation10 + $0x1c] sm:$0xff]
    %v4452 = vld [vmem:[#allocation10 + $0x24] sm:$0xff]
    %v4453 = vld [vmem:[#allocation10 + $0x2c] sm:$0xff]
    %v4454 = vld [vmem:[#allocation10 + $0x34] sm:$0xf]
    %v4455 = vld [vmem:[#allocation10 + $0x38] sm:$0xff]
    %v4456 = vld [vmem:[#allocation10 + $0x40] sm:$0xff]
    %v4457 = vld [vmem:[#allocation10 + $0x48] sm:$0xff]
    %v4458 = vld [vmem:[#allocation10 + $0x50] sm:$0xf]
    %v4459 = vld [vmem:[#allocation10 + $0x54] sm:$0xff]
    %v4460 = vld [vmem:[#allocation10 + $0x5c] sm:$0xff]
    %v4461 = vld [vmem:[#allocation10 + $0x64] sm:$0xff]
    %v4462 = vld [vmem:[#allocation10 + $0x6c] sm:$0xf]
    %v4463 = vld [vmem:[#allocation10 + $0x70] sm:$0xff]
    %v4464 = vld [vmem:[#allocation10 + $0x78] sm:$0xff]
    %v4465 = vld [vmem:[#allocation10 + $0x80] sm:$0xff]
    %v4466 = vld [vmem:[#allocation10 + $0x88] sm:$0xf]
    %v4467 = vld [vmem:[#allocation10 + $0x8c] sm:$0xff]
    %v4468 = vld [vmem:[#allocation10 + $0x94] sm:$0xff]
    %v4469 = vld [vmem:[#allocation10 + $0x9c] sm:$0xff]
    %v4470 = vld [vmem:[#allocation10 + $0xa4] sm:$0xf]
    %v4471 = vld [vmem:[#allocation10 + $0xa8] sm:$0xff]
    %v4472 = vld [vmem:[#allocation10 + $0xb0] sm:$0xff]
    %v4473 = vld [vmem:[#allocation10 + $0xb8] sm:$0xff]
    %v4474 = vld [vmem:[#allocation10 + $0xc0] sm:$0xf]
    %v4475 = vld [vmem:[#allocation10 + $0xc4] sm:$0xff]
    %v4476 = vld [vmem:[#allocation10 + $0xcc] sm:$0xff]
    %v4477 = vld [vmem:[#allocation10 + $0xd4] sm:$0xff]
    %v4478 = vld [vmem:[#allocation10 + $0xdc] sm:$0xf]
    %v4479 = vld [vmem:[#allocation10 + $0xe0] sm:$0xff]
    %v4480 = vld [vmem:[#allocation10 + $0xe8] sm:$0xff]
    %v4481 = vld [vmem:[#allocation10 + $0xf0] sm:$0xff]
    %v4482 = vld [vmem:[#allocation10 + $0xf8] sm:$0xf]
    %v4483 = vld [vmem:[#allocation10 + $0xfc] sm:$0xff]
    %v4484 = vld [vmem:[#allocation10 + $0x104] sm:$0xff]
    %v4485 = vld [vmem:[#allocation10 + $0x10c] sm:$0xff]
    %v4486 = vld [vmem:[#allocation10 + $0x114] sm:$0xf]
    %v4487 = vld [vmem:[#allocation10 + $0x118] sm:$0xff]
    %v4488 = vld [vmem:[#allocation10 + $0x120] sm:$0xff]
    %v4489 = vld [vmem:[#allocation10 + $0x128] sm:$0xff]
    %v4490 = vld [vmem:[#allocation10 + $0x130] sm:$0xf]
    %v4491 = vld [vmem:[#allocation10 + $0x134] sm:$0xff]
    %v4492 = vld [vmem:[#allocation10 + $0x13c] sm:$0xff]
    %v4493 = vld [vmem:[#allocation10 + $0x144] sm:$0xff]
    %v4494 = vld [vmem:[#allocation10 + $0x14c] sm:$0xf]
    %v4495 = vld [vmem:[#allocation10 + $0x150] sm:$0xff]
    %v4496 = vld [vmem:[#allocation10 + $0x158] sm:$0xff]
    %v4497 = vld [vmem:[#allocation10 + $0x160] sm:$0xff]
    %v4498 = vld [vmem:[#allocation10 + $0x168] sm:$0xf]
    %v4499 = vld [vmem:[#allocation10 + $0x16c] sm:$0xff]
    %v4500 = vld [vmem:[#allocation10 + $0x174] sm:$0xff]
    %v4501 = vld [vmem:[#allocation10 + $0x17c] sm:$0xff]
    %v4502 = vld [vmem:[#allocation10 + $0x184] sm:$0xf]
    %v4503 = vld [vmem:[#allocation10 + $0x188] sm:$0xff]
    %v4504 = vld [vmem:[#allocation10 + $0x190] sm:$0xff]
    %v4505 = vld [vmem:[#allocation10 + $0x198] sm:$0xff]
    %v4506 = vld [vmem:[#allocation10 + $0x1a0] sm:$0xf]
    %v4507 = vld [vmem:[#allocation10 + $0x1a4] sm:$0xff]
    %v4508 = vld [vmem:[#allocation10 + $0x1ac] sm:$0xff]
    %v4509 = vld [vmem:[#allocation10 + $0x1b4] sm:$0xff]
    %v4510 = vld [vmem:[#allocation10 + $0x1bc] sm:$0xf]
    %v4511 = vld [vmem:[#allocation10 + $0x1c0] sm:$0xff]
    %v4512 = vld [vmem:[#allocation10 + $0x1c8] sm:$0xff]
    %v4513 = vld [vmem:[#allocation10 + $0x1d0] sm:$0xff]
    %v4514 = vld [vmem:[#allocation10 + $0x1d8] sm:$0xf]
    %v4515 = vld [vmem:[#allocation10 + $0x1dc] sm:$0xff]
    %v4516 = vld [vmem:[#allocation10 + $0x1e4] sm:$0xff]
    %v4517 = vld [vmem:[#allocation10 + $0x1ec] sm:$0xff]
    %v4518 = vld [vmem:[#allocation10 + $0x1f4] sm:$0xf]
    %v4519 = vld [vmem:[#allocation10 + $0x1f8] sm:$0xff]
    %v4520 = vld [vmem:[#allocation10 + $0x200] sm:$0xff]
    %v4521 = vld [vmem:[#allocation10 + $0x208] sm:$0xff]
    %v4522 = vld [vmem:[#allocation10 + $0x210] sm:$0xf]
    %v4523 = vld [vmem:[#allocation10 + $0x214] sm:$0xff]
    %v4524 = vld [vmem:[#allocation10 + $0x21c] sm:$0xff]
    %v4525 = vld [vmem:[#allocation10 + $0x224] sm:$0xff]
    %v4526 = vld [vmem:[#allocation10 + $0x22c] sm:$0xf]
    %v4527 = vld [vmem:[#allocation10 + $0x230] sm:$0xff]
    %v4528 = vld [vmem:[#allocation10 + $0x238] sm:$0xff]
    %v4529 = vld [vmem:[#allocation10 + $0x240] sm:$0xff]
    %v4530 = vld [vmem:[#allocation10 + $0x248] sm:$0xf]
    %v4531 = vld [vmem:[#allocation10 + $0x24c] sm:$0xff]
    %v4532 = vld [vmem:[#allocation10 + $0x254] sm:$0xff]
    %v4533 = vld [vmem:[#allocation10 + $0x25c] sm:$0xff]
    %v4534 = vld [vmem:[#allocation10 + $0x264] sm:$0xf]
    %v4535 = vld [vmem:[#allocation10 + $0x268] sm:$0xff]
    %v4536 = vld [vmem:[#allocation10 + $0x270] sm:$0xff]
    %v4537 = vld [vmem:[#allocation10 + $0x278] sm:$0xff]
    %v4538 = vld [vmem:[#allocation10 + $0x280] sm:$0xf]
    %v4539 = vld [vmem:[#allocation10 + $0x284] sm:$0xff]
    %v4540 = vld [vmem:[#allocation10 + $0x28c] sm:$0xff]
    %v4541 = vld [vmem:[#allocation10 + $0x294] sm:$0xff]
    %v4542 = vld [vmem:[#allocation10 + $0x29c] sm:$0xf]
    %v4543 = vld [vmem:[#allocation10 + $0x2a0] sm:$0xff]
    %v4544 = vld [vmem:[#allocation10 + $0x2a8] sm:$0xff]
    %v4545 = vld [vmem:[#allocation10 + $0x2b0] sm:$0xff]
    %v4546 = vld [vmem:[#allocation10 + $0x2b8] sm:$0xf]
    %v4547 = vld [vmem:[#allocation10 + $0x2bc] sm:$0xff]
    %v4548 = vld [vmem:[#allocation10 + $0x2c4] sm:$0xff]
    %v4549 = vld [vmem:[#allocation10 + $0x2cc] sm:$0xff]
    %v4550 = vld [vmem:[#allocation10 + $0x2d4] sm:$0xf]
    %v4551 = vld [vmem:[#allocation10 + $0x2d8] sm:$0xff]
    %v4552 = vld [vmem:[#allocation10 + $0x2e0] sm:$0xff]
    %v4553 = vld [vmem:[#allocation10 + $0x2e8] sm:$0xff]
    %v4554 = vld [vmem:[#allocation10 + $0x2f0] sm:$0xf]
    %v4555 = vld [vmem:[#allocation10 + $0x2f4] sm:$0xff]
    %v4556 = vld [vmem:[#allocation10 + $0x2fc] sm:$0xff]
    %v4557 = vld [vmem:[#allocation10 + $0x304] sm:$0xff]
    %v4558 = vld [vmem:[#allocation10 + $0x30c] sm:$0xf]
    %v4559 = vld [vmem:[#allocation10 + $0x310] sm:$0xff]
    %v4560 = vld [vmem:[#allocation10 + $0x318] sm:$0xff]
    %v4561 = vld [vmem:[#allocation10 + $0x320] sm:$0xff]
    %v4562 = vld [vmem:[#allocation10 + $0x328] sm:$0xf]
    %v4563 = vld [vmem:[#allocation10 + $0x32c] sm:$0xff]
    %v4564 = vld [vmem:[#allocation10 + $0x334] sm:$0xff]
    %v4565 = vld [vmem:[#allocation10 + $0x33c] sm:$0xff]
    %v4566 = vld [vmem:[#allocation10 + $0x344] sm:$0xf]
    %v4567 = vld [vmem:[#allocation10 + $0x348] sm:$0xff]
    %v4568 = vld [vmem:[#allocation10 + $0x350] sm:$0xff]
    %v4569 = vld [vmem:[#allocation10 + $0x358] sm:$0xff]
    %v4570 = vld [vmem:[#allocation10 + $0x360] sm:$0xf]
    %v4571 = vld [vmem:[#allocation10 + $0x364] sm:$0xff]
    %v4572 = vld [vmem:[#allocation10 + $0x36c] sm:$0xff]
    %v4573 = vld [vmem:[#allocation10 + $0x374] sm:$0xff]
    %v4574 = vld [vmem:[#allocation10 + $0x37c] sm:$0xf]
    %v4575 = vld [vmem:[#allocation10 + $0x380] sm:$0xff]
    %v4576 = vld [vmem:[#allocation10 + $0x388] sm:$0xff]
    %v4577 = vld [vmem:[#allocation10 + $0x390] sm:$0xff]
    %v4578 = vld [vmem:[#allocation10 + $0x398] sm:$0xf]
    %v4579 = vld [vmem:[#allocation10 + $0x39c] sm:$0xff]
    %v4580 = vld [vmem:[#allocation10 + $0x3a4] sm:$0xff]
    %v4581 = vld [vmem:[#allocation10 + $0x3ac] sm:$0xff]
    %v4582 = vld [vmem:[#allocation10 + $0x3b4] sm:$0xf]
    %v4583 = vld [vmem:[#allocation10 + $0x3b8] sm:$0xff]
    %v4584 = vld [vmem:[#allocation10 + $0x3c0] sm:$0xff]
    %v4585 = vld [vmem:[#allocation10 + $0x3c8] sm:$0xff]
    %v4586 = vld [vmem:[#allocation10 + $0x3d0] sm:$0xf]
    %v4587 = vld [vmem:[#allocation10 + $0x3d4] sm:$0xff]
    %v4588 = vld [vmem:[#allocation10 + $0x3dc] sm:$0xff]
    %v4589 = vld [vmem:[#allocation10 + $0x3e4] sm:$0xff]
    %v4590 = vld [vmem:[#allocation10 + $0x3ec] sm:$0xf]
    %v4591 = vld [vmem:[#allocation10 + $0x3f0] sm:$0xff]
    %v4592 = vld [vmem:[#allocation10 + $0x3f8] sm:$0xff]
    %v4593 = vld [vmem:[#allocation10 + $0x400] sm:$0xff]
    %v4594 = vld [vmem:[#allocation10 + $0x408] sm:$0xf]
    %v4595 = vld [vmem:[#allocation10 + $0x40c] sm:$0xff]
    %v4596 = vld [vmem:[#allocation10 + $0x414] sm:$0xff]
    %v4597 = vld [vmem:[#allocation10 + $0x41c] sm:$0xff]
    %v4598 = vld [vmem:[#allocation10 + $0x424] sm:$0xf]
    %v4599 = vld [vmem:[#allocation10 + $0x428] sm:$0xff]
    %v4600 = vld [vmem:[#allocation10 + $0x430] sm:$0xff]
    %v4601 = vld [vmem:[#allocation10 + $0x438] sm:$0xff]
    %v4602 = vld [vmem:[#allocation10 + $0x440] sm:$0xf]
    %v4603 = vld [vmem:[#allocation10 + $0x444] sm:$0xff]
    %v4604 = vld [vmem:[#allocation10 + $0x44c] sm:$0xff]
    %v4605 = vld [vmem:[#allocation10 + $0x454] sm:$0xff]
    %v4606 = vld [vmem:[#allocation10 + $0x45c] sm:$0xf]
    %v4607 = vld [vmem:[#allocation10 + $0x460] sm:$0xff]
    %v4608 = vld [vmem:[#allocation10 + $0x468] sm:$0xff]
    %v4609 = vld [vmem:[#allocation10 + $0x470] sm:$0xff]
    %v4610 = vld [vmem:[#allocation10 + $0x478] sm:$0xf]
    %v4611 = vld [vmem:[#allocation10 + $0x47c] sm:$0xff]
    %v4612 = vld [vmem:[#allocation10 + $0x484] sm:$0xff]
    %v4613 = vld [vmem:[#allocation10 + $0x48c] sm:$0xff]
    %v4614 = vld [vmem:[#allocation10 + $0x494] sm:$0xf]
    %v4615 = vld [vmem:[#allocation10 + $0x498] sm:$0xff]
    %v4616 = vld [vmem:[#allocation10 + $0x4a0] sm:$0xff]
    %v4617 = vld [vmem:[#allocation10 + $0x4a8] sm:$0xff]
    %v4618 = vld [vmem:[#allocation10 + $0x4b0] sm:$0xf]
    %v4619 = vld [vmem:[#allocation10 + $0x4b4] sm:$0xff]
    %v4620 = vld [vmem:[#allocation10 + $0x4bc] sm:$0xff]
    %v4621 = vld [vmem:[#allocation10 + $0x4c4] sm:$0xff]
    %v4622 = vld [vmem:[#allocation10 + $0x4cc] sm:$0xf]
    %v4623 = vld [vmem:[#allocation10 + $0x4d0] sm:$0xff]
    %v4624 = vld [vmem:[#allocation10 + $0x4d8] sm:$0xff]
    %v4625 = vld [vmem:[#allocation10 + $0x4e0] sm:$0xff]
    %v4626 = vld [vmem:[#allocation10 + $0x4e8] sm:$0xf]
    %v4627 = vld [vmem:[#allocation10 + $0x4ec] sm:$0xff]
    %v4628 = vld [vmem:[#allocation10 + $0x4f4] sm:$0xff]
    %v4629 = vld [vmem:[#allocation10 + $0x4fc] sm:$0xff]
    %v4630 = vld [vmem:[#allocation10 + $0x504] sm:$0xf]
    %v4631 = vld [vmem:[#allocation10 + $0x508] sm:$0xff]
    %v4632 = vld [vmem:[#allocation10 + $0x510] sm:$0xff]
    %v4633 = vld [vmem:[#allocation10 + $0x518] sm:$0xff]
    %v4634 = vld [vmem:[#allocation10 + $0x520] sm:$0xf]
    %v4635 = vld [vmem:[#allocation10 + $0x524] sm:$0xff]
    %v4636 = vld [vmem:[#allocation10 + $0x52c] sm:$0xff]
    %v4637 = vld [vmem:[#allocation10 + $0x534] sm:$0xff]
    %v4638 = vld [vmem:[#allocation10 + $0x53c] sm:$0xf]
    %v4639 = vld [vmem:[#allocation10 + $0x540] sm:$0xff]
    %v4640 = vld [vmem:[#allocation10 + $0x548] sm:$0xff]
    %v4641 = vld [vmem:[#allocation10 + $0x550] sm:$0xff]
    %v4642 = vld [vmem:[#allocation10 + $0x558] sm:$0xf]
    %v4643 = vld [vmem:[#allocation10 + $0x55c] sm:$0xff]
    %v4644 = vld [vmem:[#allocation10 + $0x564] sm:$0xff]
    %v4645 = vld [vmem:[#allocation10 + $0x56c] sm:$0xff]
    %v4646 = vld [vmem:[#allocation10 + $0x574] sm:$0xf]
    %v4647 = vld [vmem:[#allocation10 + $0x578] sm:$0xff]
    %v4648 = vld [vmem:[#allocation10 + $0x580] sm:$0xff]
    %v4649 = vld [vmem:[#allocation10 + $0x588] sm:$0xff]
    %v4650 = vld [vmem:[#allocation10 + $0x590] sm:$0xf]
    %v4651 = vld [vmem:[#allocation10 + $0x594] sm:$0xff]
    %v4652 = vld [vmem:[#allocation10 + $0x59c] sm:$0xff]
    %v4653 = vld [vmem:[#allocation10 + $0x5a4] sm:$0xff]
    %v4654 = vld [vmem:[#allocation10 + $0x5ac] sm:$0xf]
    %v4655 = vld [vmem:[#allocation10 + $0x5b0] sm:$0xff]
    %v4656 = vld [vmem:[#allocation10 + $0x5b8] sm:$0xff]
    %v4657 = vld [vmem:[#allocation10 + $0x5c0] sm:$0xff]
    %v4658 = vld [vmem:[#allocation10 + $0x5c8] sm:$0xf]
    %v4659 = vld [vmem:[#allocation10 + $0x5cc] sm:$0xff]
    %v4660 = vld [vmem:[#allocation10 + $0x5d4] sm:$0xff]
    %v4661 = vld [vmem:[#allocation10 + $0x5dc] sm:$0xff]
    %v4662 = vld [vmem:[#allocation10 + $0x5e4] sm:$0xf]
    %v4663 = vld [vmem:[#allocation10 + $0x5e8] sm:$0xff]
    %v4664 = vld [vmem:[#allocation10 + $0x5f0] sm:$0xff]
    %v4665 = vld [vmem:[#allocation10 + $0x5f8] sm:$0xff]
    %v4666 = vld [vmem:[#allocation10 + $0x600] sm:$0xf]
    %v4667 = vld [vmem:[#allocation10 + $0x604] sm:$0xff]
    %v4668 = vld [vmem:[#allocation10 + $0x60c] sm:$0xff]
    %v4669 = vld [vmem:[#allocation10 + $0x614] sm:$0xff]
    %v4670 = vld [vmem:[#allocation10 + $0x61c] sm:$0xf]
    %v4671 = vld [vmem:[#allocation10 + $0x620] sm:$0xff]
    %v4672 = vld [vmem:[#allocation10 + $0x628] sm:$0xff]
    %v4673 = vld [vmem:[#allocation10 + $0x630] sm:$0xff]
    %v4674 = vld [vmem:[#allocation10 + $0x638] sm:$0xf]
    %v4675 = vld [vmem:[#allocation10 + $0x63c] sm:$0xff]
    %v4676 = vld [vmem:[#allocation10 + $0x644] sm:$0xff]
    %v4677 = vld [vmem:[#allocation10 + $0x64c] sm:$0xff]
    %v4678 = vld [vmem:[#allocation10 + $0x654] sm:$0xf]
    %v4679 = vld [vmem:[#allocation10 + $0x658] sm:$0xff]
    %v4680 = vld [vmem:[#allocation10 + $0x660] sm:$0xff]
    %v4681 = vld [vmem:[#allocation10 + $0x668] sm:$0xff]
    %v4682 = vld [vmem:[#allocation10 + $0x670] sm:$0xf]
    %v4683 = vld [vmem:[#allocation10 + $0x674] sm:$0xff]
    %v4684 = vld [vmem:[#allocation10 + $0x67c] sm:$0xff]
    %v4685 = vld [vmem:[#allocation10 + $0x684] sm:$0xff]
    %v4686 = vld [vmem:[#allocation10 + $0x68c] sm:$0xf]
    %v4687 = vld [vmem:[#allocation10 + $0x690] sm:$0xff]
    %v4688 = vld [vmem:[#allocation10 + $0x698] sm:$0xff]
    %v4689 = vld [vmem:[#allocation10 + $0x6a0] sm:$0xff]
    %v4690 = vld [vmem:[#allocation10 + $0x6a8] sm:$0xf]
    %v4691 = vld [vmem:[#allocation10 + $0x6ac] sm:$0xff]
    %v4692 = vld [vmem:[#allocation10 + $0x6b4] sm:$0xff]
    %v4693 = vld [vmem:[#allocation10 + $0x6bc] sm:$0xff]
    %v4694 = vld [vmem:[#allocation10 + $0x6c4] sm:$0xf]
    %v4695 = vld [vmem:[#allocation10 + $0x6c8] sm:$0xff]
    %v4696 = vld [vmem:[#allocation10 + $0x6d0] sm:$0xff]
    %v4697 = vld [vmem:[#allocation10 + $0x6d8] sm:$0xff]
    %v4698 = vld [vmem:[#allocation10 + $0x6e0] sm:$0xf]
    %v4699 = vld [vmem:[#allocation10 + $0x6e4] sm:$0xff]
    %v4700 = vld [vmem:[#allocation10 + $0x6ec] sm:$0xff]
    %v4701 = vld [vmem:[#allocation10 + $0x6f4] sm:$0xff]
    %v4702 = vld [vmem:[#allocation10 + $0x6fc] sm:$0xf]
    %v4703 = vld [vmem:[%s13] sm:$0xff]
    %v4705 = vlaneseq
    %v4706 = vshrl.u32 %v4705, 7
    %v4707 = vsub.s32 0, %v4706
    %v4708 = vrot.slane %v4703, %v4707
    %v4709 = vlaneseq
    %v4710 = vshrl.u32 %v4709, 7
    %v4711 = vsub.s32 1, %v4710
    %v4712 = vrot.slane %v4703, %v4711
    %v4713 = vlaneseq
    %v4714 = vshrl.u32 %v4713, 7
    %v4715 = vsub.s32 2, %v4714
    %v4716 = vrot.slane %v4703, %v4715
    %v4717 = vlaneseq
    %v4718 = vshrl.u32 %v4717, 7
    %v4719 = vsub.s32 3, %v4718
    %v4720 = vrot.slane %v4703, %v4719
    %v4721 = vlaneseq
    %v4722 = vshrl.u32 %v4721, 7
    %v4723 = vsub.s32 4, %v4722
    %v4724 = vrot.slane %v4703, %v4723
    %v4725 = vlaneseq
    %v4726 = vshrl.u32 %v4725, 7
    %v4727 = vsub.s32 5, %v4726
    %v4728 = vrot.slane %v4703, %v4727
    %v4729 = vlaneseq
    %v4730 = vshrl.u32 %v4729, 7
    %v4731 = vsub.s32 6, %v4730
    %v4732 = vrot.slane %v4703, %v4731
    %v4996 = vunpack.c.l.b16 %v4447
    %v4997 = vunpack.c.h.b16 %v4447
    %v4998 = vunpack.c.l.b16 %v4448
    %v4999 = vunpack.c.h.b16 %v4448
    %v5000 = vunpack.c.l.b16 %v4449
    %v5001 = vunpack.c.h.b16 %v4449
    %v5002 = vunpack.c.l.b16 %v4450
    %v5003 = vunpack.c.l.b16 %v4451
    %v5004 = vunpack.c.h.b16 %v4451
    %v5005 = vunpack.c.l.b16 %v4452
    %v5006 = vunpack.c.h.b16 %v4452
    %v5007 = vunpack.c.l.b16 %v4453
    %v5008 = vunpack.c.h.b16 %v4453
    %v5009 = vunpack.c.l.b16 %v4454
    %v5010 = vunpack.c.l.b16 %v4455
    %v5011 = vunpack.c.h.b16 %v4455
    %v5012 = vunpack.c.l.b16 %v4456
    %v5013 = vunpack.c.h.b16 %v4456
    %v5014 = vunpack.c.l.b16 %v4457
    %v5015 = vunpack.c.h.b16 %v4457
    %v5016 = vunpack.c.l.b16 %v4458
    %v5017 = vunpack.c.l.b16 %v4459
    %v5018 = vunpack.c.h.b16 %v4459
    %v5019 = vunpack.c.l.b16 %v4460
    %v5020 = vunpack.c.h.b16 %v4460
    %v5021 = vunpack.c.l.b16 %v4461
    %v5022 = vunpack.c.h.b16 %v4461
    %v5023 = vunpack.c.l.b16 %v4462
    %v5024 = vunpack.c.l.b16 %v4463
    %v5025 = vunpack.c.h.b16 %v4463
    %v5026 = vunpack.c.l.b16 %v4464
    %v5027 = vunpack.c.h.b16 %v4464
    %v5028 = vunpack.c.l.b16 %v4465
    %v5029 = vunpack.c.h.b16 %v4465
    %v5030 = vunpack.c.l.b16 %v4466
    %v5031 = vunpack.c.l.b16 %v4467
    %v5032 = vunpack.c.h.b16 %v4467
    %v5033 = vunpack.c.l.b16 %v4468
    %v5034 = vunpack.c.h.b16 %v4468
    %v5035 = vunpack.c.l.b16 %v4469
    %v5036 = vunpack.c.h.b16 %v4469
    %v5037 = vunpack.c.l.b16 %v4470
    %v5038 = vunpack.c.l.b16 %v4471
    %v5039 = vunpack.c.h.b16 %v4471
    %v5040 = vunpack.c.l.b16 %v4472
    %v5041 = vunpack.c.h.b16 %v4472
    %v5042 = vunpack.c.l.b16 %v4473
    %v5043 = vunpack.c.h.b16 %v4473
    %v5044 = vunpack.c.l.b16 %v4474
    %v5045 = vunpack.c.l.b16 %v4475
    %v5046 = vunpack.c.h.b16 %v4475
    %v5047 = vunpack.c.l.b16 %v4476
    %v5048 = vunpack.c.h.b16 %v4476
    %v5049 = vunpack.c.l.b16 %v4477
    %v5050 = vunpack.c.h.b16 %v4477
    %v5051 = vunpack.c.l.b16 %v4478
    %v5052 = vunpack.c.l.b16 %v4479
    %v5053 = vunpack.c.h.b16 %v4479
    %v5054 = vunpack.c.l.b16 %v4480
    %v5055 = vunpack.c.h.b16 %v4480
    %v5056 = vunpack.c.l.b16 %v4481
    %v5057 = vunpack.c.h.b16 %v4481
    %v5058 = vunpack.c.l.b16 %v4482
    %v5059 = vunpack.c.l.b16 %v4483
    %v5060 = vunpack.c.h.b16 %v4483
    %v5061 = vunpack.c.l.b16 %v4484
    %v5062 = vunpack.c.h.b16 %v4484
    %v5063 = vunpack.c.l.b16 %v4485
    %v5064 = vunpack.c.h.b16 %v4485
    %v5065 = vunpack.c.l.b16 %v4486
    %v5066 = vunpack.c.l.b16 %v4487
    %v5067 = vunpack.c.h.b16 %v4487
    %v5068 = vunpack.c.l.b16 %v4488
    %v5069 = vunpack.c.h.b16 %v4488
    %v5070 = vunpack.c.l.b16 %v4489
    %v5071 = vunpack.c.h.b16 %v4489
    %v5072 = vunpack.c.l.b16 %v4490
    %v5073 = vunpack.c.l.b16 %v4491
    %v5074 = vunpack.c.h.b16 %v4491
    %v5075 = vunpack.c.l.b16 %v4492
    %v5076 = vunpack.c.h.b16 %v4492
    %v5077 = vunpack.c.l.b16 %v4493
    %v5078 = vunpack.c.h.b16 %v4493
    %v5079 = vunpack.c.l.b16 %v4494
    %v5080 = vunpack.c.l.b16 %v4495
    %v5081 = vunpack.c.h.b16 %v4495
    %v5082 = vunpack.c.l.b16 %v4496
    %v5083 = vunpack.c.h.b16 %v4496
    %v5084 = vunpack.c.l.b16 %v4497
    %v5085 = vunpack.c.h.b16 %v4497
    %v5086 = vunpack.c.l.b16 %v4498
    %v5087 = vunpack.c.l.b16 %v4499
    %v5088 = vunpack.c.h.b16 %v4499
    %v5089 = vunpack.c.l.b16 %v4500
    %v5090 = vunpack.c.h.b16 %v4500
    %v5091 = vunpack.c.l.b16 %v4501
    %v5092 = vunpack.c.h.b16 %v4501
    %v5093 = vunpack.c.l.b16 %v4502
    %v5094 = vunpack.c.l.b16 %v4503
    %v5095 = vunpack.c.h.b16 %v4503
    %v5096 = vunpack.c.l.b16 %v4504
    %v5097 = vunpack.c.h.b16 %v4504
    %v5098 = vunpack.c.l.b16 %v4505
    %v5099 = vunpack.c.h.b16 %v4505
    %v5100 = vunpack.c.l.b16 %v4506
    %v5101 = vunpack.c.l.b16 %v4507
    %v5102 = vunpack.c.h.b16 %v4507
    %v5103 = vunpack.c.l.b16 %v4508
    %v5104 = vunpack.c.h.b16 %v4508
    %v5105 = vunpack.c.l.b16 %v4509
    %v5106 = vunpack.c.h.b16 %v4509
    %v5107 = vunpack.c.l.b16 %v4510
    %v5108 = vunpack.c.l.b16 %v4511
    %v5109 = vunpack.c.h.b16 %v4511
    %v5110 = vunpack.c.l.b16 %v4512
    %v5111 = vunpack.c.h.b16 %v4512
    %v5112 = vunpack.c.l.b16 %v4513
    %v5113 = vunpack.c.h.b16 %v4513
    %v5114 = vunpack.c.l.b16 %v4514
    %v5115 = vunpack.c.l.b16 %v4515
    %v5116 = vunpack.c.h.b16 %v4515
    %v5117 = vunpack.c.l.b16 %v4516
    %v5118 = vunpack.c.h.b16 %v4516
    %v5119 = vunpack.c.l.b16 %v4517
    %v5120 = vunpack.c.h.b16 %v4517
    %v5121 = vunpack.c.l.b16 %v4518
    %v5122 = vunpack.c.l.b16 %v4519
    %v5123 = vunpack.c.h.b16 %v4519
    %v5124 = vunpack.c.l.b16 %v4520
    %v5125 = vunpack.c.h.b16 %v4520
    %v5126 = vunpack.c.l.b16 %v4521
    %v5127 = vunpack.c.h.b16 %v4521
    %v5128 = vunpack.c.l.b16 %v4522
    %v5129 = vunpack.c.l.b16 %v4523
    %v5130 = vunpack.c.h.b16 %v4523
    %v5131 = vunpack.c.l.b16 %v4524
    %v5132 = vunpack.c.h.b16 %v4524
    %v5133 = vunpack.c.l.b16 %v4525
    %v5134 = vunpack.c.h.b16 %v4525
    %v5135 = vunpack.c.l.b16 %v4526
    %v5136 = vunpack.c.l.b16 %v4527
    %v5137 = vunpack.c.h.b16 %v4527
    %v5138 = vunpack.c.l.b16 %v4528
    %v5139 = vunpack.c.h.b16 %v4528
    %v5140 = vunpack.c.l.b16 %v4529
    %v5141 = vunpack.c.h.b16 %v4529
    %v5142 = vunpack.c.l.b16 %v4530
    %v5143 = vunpack.c.l.b16 %v4531
    %v5144 = vunpack.c.h.b16 %v4531
    %v5145 = vunpack.c.l.b16 %v4532
    %v5146 = vunpack.c.h.b16 %v4532
    %v5147 = vunpack.c.l.b16 %v4533
    %v5148 = vunpack.c.h.b16 %v4533
    %v5149 = vunpack.c.l.b16 %v4534
    %v5150 = vunpack.c.l.b16 %v4535
    %v5151 = vunpack.c.h.b16 %v4535
    %v5152 = vunpack.c.l.b16 %v4536
    %v5153 = vunpack.c.h.b16 %v4536
    %v5154 = vunpack.c.l.b16 %v4537
    %v5155 = vunpack.c.h.b16 %v4537
    %v5156 = vunpack.c.l.b16 %v4538
    %v5157 = vunpack.c.l.b16 %v4539
    %v5158 = vunpack.c.h.b16 %v4539
    %v5159 = vunpack.c.l.b16 %v4540
    %v5160 = vunpack.c.h.b16 %v4540
    %v5161 = vunpack.c.l.b16 %v4541
    %v5162 = vunpack.c.h.b16 %v4541
    %v5163 = vunpack.c.l.b16 %v4542
    %v5164 = vunpack.c.l.b16 %v4543
    %v5165 = vunpack.c.h.b16 %v4543
    %v5166 = vunpack.c.l.b16 %v4544
    %v5167 = vunpack.c.h.b16 %v4544
    %v5168 = vunpack.c.l.b16 %v4545
    %v5169 = vunpack.c.h.b16 %v4545
    %v5170 = vunpack.c.l.b16 %v4546
    %v5171 = vunpack.c.l.b16 %v4547
    %v5172 = vunpack.c.h.b16 %v4547
    %v5173 = vunpack.c.l.b16 %v4548
    %v5174 = vunpack.c.h.b16 %v4548
    %v5175 = vunpack.c.l.b16 %v4549
    %v5176 = vunpack.c.h.b16 %v4549
    %v5177 = vunpack.c.l.b16 %v4550
    %v5178 = vunpack.c.l.b16 %v4551
    %v5179 = vunpack.c.h.b16 %v4551
    %v5180 = vunpack.c.l.b16 %v4552
    %v5181 = vunpack.c.h.b16 %v4552
    %v5182 = vunpack.c.l.b16 %v4553
    %v5183 = vunpack.c.h.b16 %v4553
    %v5184 = vunpack.c.l.b16 %v4554
    %v5185 = vunpack.c.l.b16 %v4555
    %v5186 = vunpack.c.h.b16 %v4555
    %v5187 = vunpack.c.l.b16 %v4556
    %v5188 = vunpack.c.h.b16 %v4556
    %v5189 = vunpack.c.l.b16 %v4557
    %v5190 = vunpack.c.h.b16 %v4557
    %v5191 = vunpack.c.l.b16 %v4558
    %v5192 = vunpack.c.l.b16 %v4559
    %v5193 = vunpack.c.h.b16 %v4559
    %v5194 = vunpack.c.l.b16 %v4560
    %v5195 = vunpack.c.h.b16 %v4560
    %v5196 = vunpack.c.l.b16 %v4561
    %v5197 = vunpack.c.h.b16 %v4561
    %v5198 = vunpack.c.l.b16 %v4562
    %v5199 = vunpack.c.l.b16 %v4563
    %v5200 = vunpack.c.h.b16 %v4563
    %v5201 = vunpack.c.l.b16 %v4564
    %v5202 = vunpack.c.h.b16 %v4564
    %v5203 = vunpack.c.l.b16 %v4565
    %v5204 = vunpack.c.h.b16 %v4565
    %v5205 = vunpack.c.l.b16 %v4566
    %v5206 = vunpack.c.l.b16 %v4567
    %v5207 = vunpack.c.h.b16 %v4567
    %v5208 = vunpack.c.l.b16 %v4568
    %v5209 = vunpack.c.h.b16 %v4568
    %v5210 = vunpack.c.l.b16 %v4569
    %v5211 = vunpack.c.h.b16 %v4569
    %v5212 = vunpack.c.l.b16 %v4570
    %v5213 = vunpack.c.l.b16 %v4571
    %v5214 = vunpack.c.h.b16 %v4571
    %v5215 = vunpack.c.l.b16 %v4572
    %v5216 = vunpack.c.h.b16 %v4572
    %v5217 = vunpack.c.l.b16 %v4573
    %v5218 = vunpack.c.h.b16 %v4573
    %v5219 = vunpack.c.l.b16 %v4574
    %v5220 = vunpack.c.l.b16 %v4575
    %v5221 = vunpack.c.h.b16 %v4575
    %v5222 = vunpack.c.l.b16 %v4576
    %v5223 = vunpack.c.h.b16 %v4576
    %v5224 = vunpack.c.l.b16 %v4577
    %v5225 = vunpack.c.h.b16 %v4577
    %v5226 = vunpack.c.l.b16 %v4578
    %v5227 = vunpack.c.l.b16 %v4579
    %v5228 = vunpack.c.h.b16 %v4579
    %v5229 = vunpack.c.l.b16 %v4580
    %v5230 = vunpack.c.h.b16 %v4580
    %v5231 = vunpack.c.l.b16 %v4581
    %v5232 = vunpack.c.h.b16 %v4581
    %v5233 = vunpack.c.l.b16 %v4582
    %v5234 = vunpack.c.l.b16 %v4583
    %v5235 = vunpack.c.h.b16 %v4583
    %v5236 = vunpack.c.l.b16 %v4584
    %v5237 = vunpack.c.h.b16 %v4584
    %v5238 = vunpack.c.l.b16 %v4585
    %v5239 = vunpack.c.h.b16 %v4585
    %v5240 = vunpack.c.l.b16 %v4586
    %v5241 = vunpack.c.l.b16 %v4587
    %v5242 = vunpack.c.h.b16 %v4587
    %v5243 = vunpack.c.l.b16 %v4588
    %v5244 = vunpack.c.h.b16 %v4588
    %v5245 = vunpack.c.l.b16 %v4589
    %v5246 = vunpack.c.h.b16 %v4589
    %v5247 = vunpack.c.l.b16 %v4590
    %v5248 = vunpack.c.l.b16 %v4591
    %v5249 = vunpack.c.h.b16 %v4591
    %v5250 = vunpack.c.l.b16 %v4592
    %v5251 = vunpack.c.h.b16 %v4592
    %v5252 = vunpack.c.l.b16 %v4593
    %v5253 = vunpack.c.h.b16 %v4593
    %v5254 = vunpack.c.l.b16 %v4594
    %v5255 = vunpack.c.l.b16 %v4595
    %v5256 = vunpack.c.h.b16 %v4595
    %v5257 = vunpack.c.l.b16 %v4596
    %v5258 = vunpack.c.h.b16 %v4596
    %v5259 = vunpack.c.l.b16 %v4597
    %v5260 = vunpack.c.h.b16 %v4597
    %v5261 = vunpack.c.l.b16 %v4598
    %v5262 = vunpack.c.l.b16 %v4599
    %v5263 = vunpack.c.h.b16 %v4599
    %v5264 = vunpack.c.l.b16 %v4600
    %v5265 = vunpack.c.h.b16 %v4600
    %v5266 = vunpack.c.l.b16 %v4601
    %v5267 = vunpack.c.h.b16 %v4601
    %v5268 = vunpack.c.l.b16 %v4602
    %v5269 = vunpack.c.l.b16 %v4603
    %v5270 = vunpack.c.h.b16 %v4603
    %v5271 = vunpack.c.l.b16 %v4604
    %v5272 = vunpack.c.h.b16 %v4604
    %v5273 = vunpack.c.l.b16 %v4605
    %v5274 = vunpack.c.h.b16 %v4605
    %v5275 = vunpack.c.l.b16 %v4606
    %v5276 = vunpack.c.l.b16 %v4607
    %v5277 = vunpack.c.h.b16 %v4607
    %v5278 = vunpack.c.l.b16 %v4608
    %v5279 = vunpack.c.h.b16 %v4608
    %v5280 = vunpack.c.l.b16 %v4609
    %v5281 = vunpack.c.h.b16 %v4609
    %v5282 = vunpack.c.l.b16 %v4610
    %v5283 = vunpack.c.l.b16 %v4611
    %v5284 = vunpack.c.h.b16 %v4611
    %v5285 = vunpack.c.l.b16 %v4612
    %v5286 = vunpack.c.h.b16 %v4612
    %v5287 = vunpack.c.l.b16 %v4613
    %v5288 = vunpack.c.h.b16 %v4613
    %v5289 = vunpack.c.l.b16 %v4614
    %v5290 = vunpack.c.l.b16 %v4615
    %v5291 = vunpack.c.h.b16 %v4615
    %v5292 = vunpack.c.l.b16 %v4616
    %v5293 = vunpack.c.h.b16 %v4616
    %v5294 = vunpack.c.l.b16 %v4617
    %v5295 = vunpack.c.h.b16 %v4617
    %v5296 = vunpack.c.l.b16 %v4618
    %v5297 = vunpack.c.l.b16 %v4619
    %v5298 = vunpack.c.h.b16 %v4619
    %v5299 = vunpack.c.l.b16 %v4620
    %v5300 = vunpack.c.h.b16 %v4620
    %v5301 = vunpack.c.l.b16 %v4621
    %v5302 = vunpack.c.h.b16 %v4621
    %v5303 = vunpack.c.l.b16 %v4622
    %v5304 = vunpack.c.l.b16 %v4623
    %v5305 = vunpack.c.h.b16 %v4623
    %v5306 = vunpack.c.l.b16 %v4624
    %v5307 = vunpack.c.h.b16 %v4624
    %v5308 = vunpack.c.l.b16 %v4625
    %v5309 = vunpack.c.h.b16 %v4625
    %v5310 = vunpack.c.l.b16 %v4626
    %v5311 = vunpack.c.l.b16 %v4627
    %v5312 = vunpack.c.h.b16 %v4627
    %v5313 = vunpack.c.l.b16 %v4628
    %v5314 = vunpack.c.h.b16 %v4628
    %v5315 = vunpack.c.l.b16 %v4629
    %v5316 = vunpack.c.h.b16 %v4629
    %v5317 = vunpack.c.l.b16 %v4630
    %v5318 = vunpack.c.l.b16 %v4631
    %v5319 = vunpack.c.h.b16 %v4631
    %v5320 = vunpack.c.l.b16 %v4632
    %v5321 = vunpack.c.h.b16 %v4632
    %v5322 = vunpack.c.l.b16 %v4633
    %v5323 = vunpack.c.h.b16 %v4633
    %v5324 = vunpack.c.l.b16 %v4634
    %v5325 = vunpack.c.l.b16 %v4635
    %v5326 = vunpack.c.h.b16 %v4635
    %v5327 = vunpack.c.l.b16 %v4636
    %v5328 = vunpack.c.h.b16 %v4636
    %v5329 = vunpack.c.l.b16 %v4637
    %v5330 = vunpack.c.h.b16 %v4637
    %v5331 = vunpack.c.l.b16 %v4638
    %v5332 = vunpack.c.l.b16 %v4639
    %v5333 = vunpack.c.h.b16 %v4639
    %v5334 = vunpack.c.l.b16 %v4640
    %v5335 = vunpack.c.h.b16 %v4640
    %v5336 = vunpack.c.l.b16 %v4641
    %v5337 = vunpack.c.h.b16 %v4641
    %v5338 = vunpack.c.l.b16 %v4642
    %v5339 = vunpack.c.l.b16 %v4643
    %v5340 = vunpack.c.h.b16 %v4643
    %v5341 = vunpack.c.l.b16 %v4644
    %v5342 = vunpack.c.h.b16 %v4644
    %v5343 = vunpack.c.l.b16 %v4645
    %v5344 = vunpack.c.h.b16 %v4645
    %v5345 = vunpack.c.l.b16 %v4646
    %v5346 = vunpack.c.l.b16 %v4647
    %v5347 = vunpack.c.h.b16 %v4647
    %v5348 = vunpack.c.l.b16 %v4648
    %v5349 = vunpack.c.h.b16 %v4648
    %v5350 = vunpack.c.l.b16 %v4649
    %v5351 = vunpack.c.h.b16 %v4649
    %v5352 = vunpack.c.l.b16 %v4650
    %v5353 = vunpack.c.l.b16 %v4651
    %v5354 = vunpack.c.h.b16 %v4651
    %v5355 = vunpack.c.l.b16 %v4652
    %v5356 = vunpack.c.h.b16 %v4652
    %v5357 = vunpack.c.l.b16 %v4653
    %v5358 = vunpack.c.h.b16 %v4653
    %v5359 = vunpack.c.l.b16 %v4654
    %v5360 = vunpack.c.l.b16 %v4655
    %v5361 = vunpack.c.h.b16 %v4655
    %v5362 = vunpack.c.l.b16 %v4656
    %v5363 = vunpack.c.h.b16 %v4656
    %v5364 = vunpack.c.l.b16 %v4657
    %v5365 = vunpack.c.h.b16 %v4657
    %v5366 = vunpack.c.l.b16 %v4658
    %v5367 = vunpack.c.l.b16 %v4659
    %v5368 = vunpack.c.h.b16 %v4659
    %v5369 = vunpack.c.l.b16 %v4660
    %v5370 = vunpack.c.h.b16 %v4660
    %v5371 = vunpack.c.l.b16 %v4661
    %v5372 = vunpack.c.h.b16 %v4661
    %v5373 = vunpack.c.l.b16 %v4662
    %v5374 = vunpack.c.l.b16 %v4663
    %v5375 = vunpack.c.h.b16 %v4663
    %v5376 = vunpack.c.l.b16 %v4664
    %v5377 = vunpack.c.h.b16 %v4664
    %v5378 = vunpack.c.l.b16 %v4665
    %v5379 = vunpack.c.h.b16 %v4665
    %v5380 = vunpack.c.l.b16 %v4666
    %v5381 = vunpack.c.l.b16 %v4667
    %v5382 = vunpack.c.h.b16 %v4667
    %v5383 = vunpack.c.l.b16 %v4668
    %v5384 = vunpack.c.h.b16 %v4668
    %v5385 = vunpack.c.l.b16 %v4669
    %v5386 = vunpack.c.h.b16 %v4669
    %v5387 = vunpack.c.l.b16 %v4670
    %v5388 = vunpack.c.l.b16 %v4671
    %v5389 = vunpack.c.h.b16 %v4671
    %v5390 = vunpack.c.l.b16 %v4672
    %v5391 = vunpack.c.h.b16 %v4672
    %v5392 = vunpack.c.l.b16 %v4673
    %v5393 = vunpack.c.h.b16 %v4673
    %v5394 = vunpack.c.l.b16 %v4674
    %v5395 = vunpack.c.l.b16 %v4675
    %v5396 = vunpack.c.h.b16 %v4675
    %v5397 = vunpack.c.l.b16 %v4676
    %v5398 = vunpack.c.h.b16 %v4676
    %v5399 = vunpack.c.l.b16 %v4677
    %v5400 = vunpack.c.h.b16 %v4677
    %v5401 = vunpack.c.l.b16 %v4678
    %v5402 = vunpack.c.l.b16 %v4679
    %v5403 = vunpack.c.h.b16 %v4679
    %v5404 = vunpack.c.l.b16 %v4680
    %v5405 = vunpack.c.h.b16 %v4680
    %v5406 = vunpack.c.l.b16 %v4681
    %v5407 = vunpack.c.h.b16 %v4681
    %v5408 = vunpack.c.l.b16 %v4682
    %v5409 = vunpack.c.l.b16 %v4683
    %v5410 = vunpack.c.h.b16 %v4683
    %v5411 = vunpack.c.l.b16 %v4684
    %v5412 = vunpack.c.h.b16 %v4684
    %v5413 = vunpack.c.l.b16 %v4685
    %v5414 = vunpack.c.h.b16 %v4685
    %v5415 = vunpack.c.l.b16 %v4686
    %v5416 = vunpack.c.l.b16 %v4687
    %v5417 = vunpack.c.h.b16 %v4687
    %v5418 = vunpack.c.l.b16 %v4688
    %v5419 = vunpack.c.h.b16 %v4688
    %v5420 = vunpack.c.l.b16 %v4689
    %v5421 = vunpack.c.h.b16 %v4689
    %v5422 = vunpack.c.l.b16 %v4690
    %v5423 = vunpack.c.l.b16 %v4691
    %v5424 = vunpack.c.h.b16 %v4691
    %v5425 = vunpack.c.l.b16 %v4692
    %v5426 = vunpack.c.h.b16 %v4692
    %v5427 = vunpack.c.l.b16 %v4693
    %v5428 = vunpack.c.h.b16 %v4693
    %v5429 = vunpack.c.l.b16 %v4694
    %v5430 = vunpack.c.l.b16 %v4695
    %v5431 = vunpack.c.h.b16 %v4695
    %v5432 = vunpack.c.l.b16 %v4696
    %v5433 = vunpack.c.h.b16 %v4696
    %v5434 = vunpack.c.l.b16 %v4697
    %v5435 = vunpack.c.h.b16 %v4697
    %v5436 = vunpack.c.l.b16 %v4698
    %v5437 = vunpack.c.l.b16 %v4699
    %v5438 = vunpack.c.h.b16 %v4699
    %v5439 = vunpack.c.l.b16 %v4700
    %v5440 = vunpack.c.h.b16 %v4700
    %v5441 = vunpack.c.l.b16 %v4701
    %v5442 = vunpack.c.h.b16 %v4701
    %v5443 = vunpack.c.l.b16 %v4702
    %v5444 = vpack.c.b16 %v5003, %v4996
    %v5445 = vpack.c.b16 %v5004, %v4997
    %v5446 = vpack.c.b16 %v5005, %v4998
    %v5447 = vpack.c.b16 %v5006, %v4999
    %v5448 = vpack.c.b16 %v5007, %v5000
    %v5449 = vpack.c.b16 %v5008, %v5001
    %v5450 = vpack.c.b16 %v5009, %v5002
    %v5451 = vpack.c.b16 %v5017, %v5010
    %v5452 = vpack.c.b16 %v5018, %v5011
    %v5453 = vpack.c.b16 %v5019, %v5012
    %v5454 = vpack.c.b16 %v5020, %v5013
    %v5455 = vpack.c.b16 %v5021, %v5014
    %v5456 = vpack.c.b16 %v5022, %v5015
    %v5457 = vpack.c.b16 %v5023, %v5016
    %v5458 = vpack.c.b16 %v5031, %v5024
    %v5459 = vpack.c.b16 %v5032, %v5025
    %v5460 = vpack.c.b16 %v5033, %v5026
    %v5461 = vpack.c.b16 %v5034, %v5027
    %v5462 = vpack.c.b16 %v5035, %v5028
    %v5463 = vpack.c.b16 %v5036, %v5029
    %v5464 = vpack.c.b16 %v5037, %v5030
    %v5465 = vpack.c.b16 %v5045, %v5038
    %v5466 = vpack.c.b16 %v5046, %v5039
    %v5467 = vpack.c.b16 %v5047, %v5040
    %v5468 = vpack.c.b16 %v5048, %v5041
    %v5469 = vpack.c.b16 %v5049, %v5042
    %v5470 = vpack.c.b16 %v5050, %v5043
    %v5471 = vpack.c.b16 %v5051, %v5044
    %v5472 = vpack.c.b16 %v5059, %v5052
    %v5473 = vpack.c.b16 %v5060, %v5053
    %v5474 = vpack.c.b16 %v5061, %v5054
    %v5475 = vpack.c.b16 %v5062, %v5055
    %v5476 = vpack.c.b16 %v5063, %v5056
    %v5477 = vpack.c.b16 %v5064, %v5057
    %v5478 = vpack.c.b16 %v5065, %v5058
    %v5479 = vpack.c.b16 %v5073, %v5066
    %v5480 = vpack.c.b16 %v5074, %v5067
    %v5481 = vpack.c.b16 %v5075, %v5068
    %v5482 = vpack.c.b16 %v5076, %v5069
    %v5483 = vpack.c.b16 %v5077, %v5070
    %v5484 = vpack.c.b16 %v5078, %v5071
    %v5485 = vpack.c.b16 %v5079, %v5072
    %v5486 = vpack.c.b16 %v5087, %v5080
    %v5487 = vpack.c.b16 %v5088, %v5081
    %v5488 = vpack.c.b16 %v5089, %v5082
    %v5489 = vpack.c.b16 %v5090, %v5083
    %v5490 = vpack.c.b16 %v5091, %v5084
    %v5491 = vpack.c.b16 %v5092, %v5085
    %v5492 = vpack.c.b16 %v5093, %v5086
    %v5493 = vpack.c.b16 %v5101, %v5094
    %v5494 = vpack.c.b16 %v5102, %v5095
    %v5495 = vpack.c.b16 %v5103, %v5096
    %v5496 = vpack.c.b16 %v5104, %v5097
    %v5497 = vpack.c.b16 %v5105, %v5098
    %v5498 = vpack.c.b16 %v5106, %v5099
    %v5499 = vpack.c.b16 %v5107, %v5100
    %v5500 = vpack.c.b16 %v5115, %v5108
    %v5501 = vpack.c.b16 %v5116, %v5109
    %v5502 = vpack.c.b16 %v5117, %v5110
    %v5503 = vpack.c.b16 %v5118, %v5111
    %v5504 = vpack.c.b16 %v5119, %v5112
    %v5505 = vpack.c.b16 %v5120, %v5113
    %v5506 = vpack.c.b16 %v5121, %v5114
    %v5507 = vpack.c.b16 %v5129, %v5122
    %v5508 = vpack.c.b16 %v5130, %v5123
    %v5509 = vpack.c.b16 %v5131, %v5124
    %v5510 = vpack.c.b16 %v5132, %v5125
    %v5511 = vpack.c.b16 %v5133, %v5126
    %v5512 = vpack.c.b16 %v5134, %v5127
    %v5513 = vpack.c.b16 %v5135, %v5128
    %v5514 = vpack.c.b16 %v5143, %v5136
    %v5515 = vpack.c.b16 %v5144, %v5137
    %v5516 = vpack.c.b16 %v5145, %v5138
    %v5517 = vpack.c.b16 %v5146, %v5139
    %v5518 = vpack.c.b16 %v5147, %v5140
    %v5519 = vpack.c.b16 %v5148, %v5141
    %v5520 = vpack.c.b16 %v5149, %v5142
    %v5521 = vpack.c.b16 %v5157, %v5150
    %v5522 = vpack.c.b16 %v5158, %v5151
    %v5523 = vpack.c.b16 %v5159, %v5152
    %v5524 = vpack.c.b16 %v5160, %v5153
    %v5525 = vpack.c.b16 %v5161, %v5154
    %v5526 = vpack.c.b16 %v5162, %v5155
    %v5527 = vpack.c.b16 %v5163, %v5156
    %v5528 = vpack.c.b16 %v5171, %v5164
    %v5529 = vpack.c.b16 %v5172, %v5165
    %v5530 = vpack.c.b16 %v5173, %v5166
    %v5531 = vpack.c.b16 %v5174, %v5167
    %v5532 = vpack.c.b16 %v5175, %v5168
    %v5533 = vpack.c.b16 %v5176, %v5169
    %v5534 = vpack.c.b16 %v5177, %v5170
    %v5535 = vpack.c.b16 %v5185, %v5178
    %v5536 = vpack.c.b16 %v5186, %v5179
    %v5537 = vpack.c.b16 %v5187, %v5180
    %v5538 = vpack.c.b16 %v5188, %v5181
    %v5539 = vpack.c.b16 %v5189, %v5182
    %v5540 = vpack.c.b16 %v5190, %v5183
    %v5541 = vpack.c.b16 %v5191, %v5184
    %v5542 = vpack.c.b16 %v5199, %v5192
    %v5543 = vpack.c.b16 %v5200, %v5193
    %v5544 = vpack.c.b16 %v5201, %v5194
    %v5545 = vpack.c.b16 %v5202, %v5195
    %v5546 = vpack.c.b16 %v5203, %v5196
    %v5547 = vpack.c.b16 %v5204, %v5197
    %v5548 = vpack.c.b16 %v5205, %v5198
    %v5549 = vpack.c.b16 %v5213, %v5206
    %v5550 = vpack.c.b16 %v5214, %v5207
    %v5551 = vpack.c.b16 %v5215, %v5208
    %v5552 = vpack.c.b16 %v5216, %v5209
    %v5553 = vpack.c.b16 %v5217, %v5210
    %v5554 = vpack.c.b16 %v5218, %v5211
    %v5555 = vpack.c.b16 %v5219, %v5212
    %v5556 = vpack.c.b16 %v5227, %v5220
    %v5557 = vpack.c.b16 %v5228, %v5221
    %v5558 = vpack.c.b16 %v5229, %v5222
    %v5559 = vpack.c.b16 %v5230, %v5223
    %v5560 = vpack.c.b16 %v5231, %v5224
    %v5561 = vpack.c.b16 %v5232, %v5225
    %v5562 = vpack.c.b16 %v5233, %v5226
    %v5563 = vpack.c.b16 %v5241, %v5234
    %v5564 = vpack.c.b16 %v5242, %v5235
    %v5565 = vpack.c.b16 %v5243, %v5236
    %v5566 = vpack.c.b16 %v5244, %v5237
    %v5567 = vpack.c.b16 %v5245, %v5238
    %v5568 = vpack.c.b16 %v5246, %v5239
    %v5569 = vpack.c.b16 %v5247, %v5240
    %v5570 = vpack.c.b16 %v5255, %v5248
    %v5571 = vpack.c.b16 %v5256, %v5249
    %v5572 = vpack.c.b16 %v5257, %v5250
    %v5573 = vpack.c.b16 %v5258, %v5251
    %v5574 = vpack.c.b16 %v5259, %v5252
    %v5575 = vpack.c.b16 %v5260, %v5253
    %v5576 = vpack.c.b16 %v5261, %v5254
    %v5577 = vpack.c.b16 %v5269, %v5262
    %v5578 = vpack.c.b16 %v5270, %v5263
    %v5579 = vpack.c.b16 %v5271, %v5264
    %v5580 = vpack.c.b16 %v5272, %v5265
    %v5581 = vpack.c.b16 %v5273, %v5266
    %v5582 = vpack.c.b16 %v5274, %v5267
    %v5583 = vpack.c.b16 %v5275, %v5268
    %v5584 = vpack.c.b16 %v5283, %v5276
    %v5585 = vpack.c.b16 %v5284, %v5277
    %v5586 = vpack.c.b16 %v5285, %v5278
    %v5587 = vpack.c.b16 %v5286, %v5279
    %v5588 = vpack.c.b16 %v5287, %v5280
    %v5589 = vpack.c.b16 %v5288, %v5281
    %v5590 = vpack.c.b16 %v5289, %v5282
    %v5591 = vpack.c.b16 %v5297, %v5290
    %v5592 = vpack.c.b16 %v5298, %v5291
    %v5593 = vpack.c.b16 %v5299, %v5292
    %v5594 = vpack.c.b16 %v5300, %v5293
    %v5595 = vpack.c.b16 %v5301, %v5294
    %v5596 = vpack.c.b16 %v5302, %v5295
    %v5597 = vpack.c.b16 %v5303, %v5296
    %v5598 = vpack.c.b16 %v5311, %v5304
    %v5599 = vpack.c.b16 %v5312, %v5305
    %v5600 = vpack.c.b16 %v5313, %v5306
    %v5601 = vpack.c.b16 %v5314, %v5307
    %v5602 = vpack.c.b16 %v5315, %v5308
    %v5603 = vpack.c.b16 %v5316, %v5309
    %v5604 = vpack.c.b16 %v5317, %v5310
    %v5605 = vpack.c.b16 %v5325, %v5318
    %v5606 = vpack.c.b16 %v5326, %v5319
    %v5607 = vpack.c.b16 %v5327, %v5320
    %v5608 = vpack.c.b16 %v5328, %v5321
    %v5609 = vpack.c.b16 %v5329, %v5322
    %v5610 = vpack.c.b16 %v5330, %v5323
    %v5611 = vpack.c.b16 %v5331, %v5324
    %v5612 = vpack.c.b16 %v5339, %v5332
    %v5613 = vpack.c.b16 %v5340, %v5333
    %v5614 = vpack.c.b16 %v5341, %v5334
    %v5615 = vpack.c.b16 %v5342, %v5335
    %v5616 = vpack.c.b16 %v5343, %v5336
    %v5617 = vpack.c.b16 %v5344, %v5337
    %v5618 = vpack.c.b16 %v5345, %v5338
    %v5619 = vpack.c.b16 %v5353, %v5346
    %v5620 = vpack.c.b16 %v5354, %v5347
    %v5621 = vpack.c.b16 %v5355, %v5348
    %v5622 = vpack.c.b16 %v5356, %v5349
    %v5623 = vpack.c.b16 %v5357, %v5350
    %v5624 = vpack.c.b16 %v5358, %v5351
    %v5625 = vpack.c.b16 %v5359, %v5352
    %v5626 = vpack.c.b16 %v5367, %v5360
    %v5627 = vpack.c.b16 %v5368, %v5361
    %v5628 = vpack.c.b16 %v5369, %v5362
    %v5629 = vpack.c.b16 %v5370, %v5363
    %v5630 = vpack.c.b16 %v5371, %v5364
    %v5631 = vpack.c.b16 %v5372, %v5365
    %v5632 = vpack.c.b16 %v5373, %v5366
    %v5633 = vpack.c.b16 %v5381, %v5374
    %v5634 = vpack.c.b16 %v5382, %v5375
    %v5635 = vpack.c.b16 %v5383, %v5376
    %v5636 = vpack.c.b16 %v5384, %v5377
    %v5637 = vpack.c.b16 %v5385, %v5378
    %v5638 = vpack.c.b16 %v5386, %v5379
    %v5639 = vpack.c.b16 %v5387, %v5380
    %v5640 = vpack.c.b16 %v5395, %v5388
    %v5641 = vpack.c.b16 %v5396, %v5389
    %v5642 = vpack.c.b16 %v5397, %v5390
    %v5643 = vpack.c.b16 %v5398, %v5391
    %v5644 = vpack.c.b16 %v5399, %v5392
    %v5645 = vpack.c.b16 %v5400, %v5393
    %v5646 = vpack.c.b16 %v5401, %v5394
    %v5647 = vpack.c.b16 %v5409, %v5402
    %v5648 = vpack.c.b16 %v5410, %v5403
    %v5649 = vpack.c.b16 %v5411, %v5404
    %v5650 = vpack.c.b16 %v5412, %v5405
    %v5651 = vpack.c.b16 %v5413, %v5406
    %v5652 = vpack.c.b16 %v5414, %v5407
    %v5653 = vpack.c.b16 %v5415, %v5408
    %v5654 = vpack.c.b16 %v5423, %v5416
    %v5655 = vpack.c.b16 %v5424, %v5417
    %v5656 = vpack.c.b16 %v5425, %v5418
    %v5657 = vpack.c.b16 %v5426, %v5419
    %v5658 = vpack.c.b16 %v5427, %v5420
    %v5659 = vpack.c.b16 %v5428, %v5421
    %v5660 = vpack.c.b16 %v5429, %v5422
    %v5661 = vpack.c.b16 %v5437, %v5430
    %v5662 = vpack.c.b16 %v5438, %v5431
    %v5663 = vpack.c.b16 %v5439, %v5432
    %v5664 = vpack.c.b16 %v5440, %v5433
    %v5665 = vpack.c.b16 %v5441, %v5434
    %v5666 = vpack.c.b16 %v5442, %v5435
    %v5667 = vpack.c.b16 %v5443, %v5436
    %5892 = vmatprep.subr.bf16.mxu0 %v5445
    %5893 = vmatpush1.bf16.msra.mxu0 %v5444
    %5894 = vmatprep.subr.bf16.mxu0 %v5452
    %5895 = vmatpush1.bf16.msra.mxu0 %v5451
    %5896 = vmatprep.subr.bf16.mxu0 %v5459
    %5897 = vmatpush1.bf16.msra.mxu0 %v5458
    %5898 = vmatprep.subr.bf16.mxu0 %v5466
    %5899 = vmatpush1.bf16.msra.mxu0 %v5465
    %5900 = vmatprep.subr.bf16.mxu0 %v5473
    %5901 = vmatpush1.bf16.msra.mxu0 %v5472
    %5902 = vmatprep.subr.bf16.mxu0 %v5480
    %5903 = vmatpush1.bf16.msra.mxu0 %v5479
    %5904 = vmatprep.subr.bf16.mxu0 %v5487
    %5905 = vmatpush1.bf16.msra.mxu0 %v5486
    %5906 = vmatprep.subr.bf16.mxu0 %v5494
    %5907 = vmatpush1.bf16.msra.mxu0 %v5493
    %5908 = vmatprep.subr.bf16.mxu0 %v5501
    %5909 = vmatpush1.bf16.msra.mxu0 %v5500
    %5910 = vmatprep.subr.bf16.mxu0 %v5508
    %5911 = vmatpush1.bf16.msra.mxu0 %v5507
    %5912 = vmatprep.subr.bf16.mxu0 %v5515
    %5913 = vmatpush1.bf16.msra.mxu0 %v5514
    %5914 = vmatprep.subr.bf16.mxu0 %v5522
    %5915 = vmatpush1.bf16.msra.mxu0 %v5521
    %5916 = vmatprep.subr.bf16.mxu0 %v5529
    %5917 = vmatpush1.bf16.msra.mxu0 %v5528
    %5918 = vmatprep.subr.bf16.mxu0 %v5536
    %5919 = vmatpush1.bf16.msra.mxu0 %v5535
    %5920 = vmatprep.subr.bf16.mxu0 %v5543
    %5921 = vmatpush1.bf16.msra.mxu0 %v5542
    %5922 = vmatprep.subr.bf16.mxu0 %v5550
    %5923 = vmatpush1.bf16.msra.mxu0 %v5549
    %5924 = vmatprep.mubr.bf16.mxu0 %v4444
    %5925 = vmatmul.mubr.bf16.gmra.mrb[0].mxu0 %v4443
    %v5926 = vpop.f32.mrb[0].mxu0
    %v5927 = vadd.f32 %v4708, %v5926
    %v5928 = vpop.f32.mrb[0].mxu0
    %v5929 = vadd.f32 %v4712, %v5928
    %v5930 = vpop.f32.mrb[0].mxu0
    %v5931 = vpop.f32.mrb[0].mxu0
    %5932 = vdwg.mxu0
    %5933 = vmatprep.subr.bf16.mxu0 %v5557
    %5934 = vmatpush1.bf16.msra.mxu0 %v5556
    %5935 = vmatprep.subr.bf16.mxu0 %v5564
    %5936 = vmatpush1.bf16.msra.mxu0 %v5563
    %5937 = vmatprep.subr.bf16.mxu0 %v5571
    %5938 = vmatpush1.bf16.msra.mxu0 %v5570
    %5939 = vmatprep.subr.bf16.mxu0 %v5578
    %5940 = vmatpush1.bf16.msra.mxu0 %v5577
    %5941 = vmatprep.subr.bf16.mxu0 %v5585
    %5942 = vmatpush1.bf16.msra.mxu0 %v5584
    %5943 = vmatprep.subr.bf16.mxu0 %v5592
    %5944 = vmatpush1.bf16.msra.mxu0 %v5591
    %5945 = vmatprep.subr.bf16.mxu0 %v5599
    %5946 = vmatpush1.bf16.msra.mxu0 %v5598
    %5947 = vmatprep.subr.bf16.mxu0 %v5606
    %5948 = vmatpush1.bf16.msra.mxu0 %v5605
    %5949 = vmatprep.subr.bf16.mxu0 %v5613
    %5950 = vmatpush1.bf16.msra.mxu0 %v5612
    %5951 = vmatprep.subr.bf16.mxu0 %v5620
    %5952 = vmatpush1.bf16.msra.mxu0 %v5619
    %5953 = vmatprep.subr.bf16.mxu0 %v5627
    %5954 = vmatpush1.bf16.msra.mxu0 %v5626
    %5955 = vmatprep.subr.bf16.mxu0 %v5634
    %5956 = vmatpush1.bf16.msra.mxu0 %v5633
    %5957 = vmatprep.subr.bf16.mxu0 %v5641
    %5958 = vmatpush1.bf16.msra.mxu0 %v5640
    %5959 = vmatprep.subr.bf16.mxu0 %v5648
    %5960 = vmatpush1.bf16.msra.mxu0 %v5647
    %5961 = vmatprep.subr.bf16.mxu0 %v5655
    %5962 = vmatpush1.bf16.msra.mxu0 %v5654
    %5963 = vmatprep.subr.bf16.mxu0 %v5662
    %5964 = vmatpush1.bf16.msra.mxu0 %v5661
    %5965 = vmatprep.mubr.bf16.mxu0 %v4446
    %5966 = vmatmul.mubr.bf16.gmra.mrb[0].mxu0 %v4445
    %v5967 = vpop.f32.mrb[0].mxu0
    %v5968 = vadd.f32 %v5927, %v5967
    %v5969 = vpop.f32.mrb[0].mxu0
    %v5970 = vadd.f32 %v5929, %v5969
    %v5971 = vpop.f32.mrb[0].mxu0
    %v5972 = vpop.f32.mrb[0].mxu0
    %5973 = vdwg.mxu0
    %5974 = vmatprep.subr.bf16.mxu0 %v5447
    %5975 = vmatpush1.bf16.msra.mxu0 %v5446
    %5976 = vmatprep.subr.bf16.mxu0 %v5454
    %5977 = vmatpush1.bf16.msra.mxu0 %v5453
    %5978 = vmatprep.subr.bf16.mxu0 %v5461
    %5979 = vmatpush1.bf16.msra.mxu0 %v5460
    %5980 = vmatprep.subr.bf16.mxu0 %v5468
    %5981 = vmatpush1.bf16.msra.mxu0 %v5467
    %5982 = vmatprep.subr.bf16.mxu0 %v5475
    %5983 = vmatpush1.bf16.msra.mxu0 %v5474
    %5984 = vmatprep.subr.bf16.mxu0 %v5482
    %5985 = vmatpush1.bf16.msra.mxu0 %v5481
    %5986 = vmatprep.subr.bf16.mxu0 %v5489
    %5987 = vmatpush1.bf16.msra.mxu0 %v5488
    %5988 = vmatprep.subr.bf16.mxu0 %v5496
    %5989 = vmatpush1.bf16.msra.mxu0 %v5495
    %5990 = vmatprep.subr.bf16.mxu0 %v5503
    %5991 = vmatpush1.bf16.msra.mxu0 %v5502
    %5992 = vmatprep.subr.bf16.mxu0 %v5510
    %5993 = vmatpush1.bf16.msra.mxu0 %v5509
    %5994 = vmatprep.subr.bf16.mxu0 %v5517
    %5995 = vmatpush1.bf16.msra.mxu0 %v5516
    %5996 = vmatprep.subr.bf16.mxu0 %v5524
    %5997 = vmatpush1.bf16.msra.mxu0 %v5523
    %5998 = vmatprep.subr.bf16.mxu0 %v5531
    %5999 = vmatpush1.bf16.msra.mxu0 %v5530
    %6000 = vmatprep.subr.bf16.mxu0 %v5538
    %6001 = vmatpush1.bf16.msra.mxu0 %v5537
    %6002 = vmatprep.subr.bf16.mxu0 %v5545
    %6003 = vmatpush1.bf16.msra.mxu0 %v5544
    %6004 = vmatprep.subr.bf16.mxu0 %v5552
    %6005 = vmatpush1.bf16.msra.mxu0 %v5551
    %6006 = vmatprep.mubr.bf16.mxu0 %v4444
    %6007 = vmatmul.mubr.bf16.gmra.mrb[0].mxu0 %v4443
    %v6008 = vpop.f32.mrb[0].mxu0
    %v6009 = vadd.f32 %v4716, %v6008
    %v6010 = vpop.f32.mrb[0].mxu0
    %v6011 = vadd.f32 %v4720, %v6010
    %v6012 = vpop.f32.mrb[0].mxu0
    %v6013 = vpop.f32.mrb[0].mxu0
    %6014 = vdwg.mxu0
    %6015 = vmatprep.subr.bf16.mxu0 %v5559
    %6016 = vmatpush1.bf16.msra.mxu0 %v5558
    %6017 = vmatprep.subr.bf16.mxu0 %v5566
    %6018 = vmatpush1.bf16.msra.mxu0 %v5565
    %6019 = vmatprep.subr.bf16.mxu0 %v5573
    %6020 = vmatpush1.bf16.msra.mxu0 %v5572
    %6021 = vmatprep.subr.bf16.mxu0 %v5580
    %6022 = vmatpush1.bf16.msra.mxu0 %v5579
    %6023 = vmatprep.subr.bf16.mxu0 %v5587
    %6024 = vmatpush1.bf16.msra.mxu0 %v5586
    %6025 = vmatprep.subr.bf16.mxu0 %v5594
    %6026 = vmatpush1.bf16.msra.mxu0 %v5593
    %6027 = vmatprep.subr.bf16.mxu0 %v5601
    %6028 = vmatpush1.bf16.msra.mxu0 %v5600
    %6029 = vmatprep.subr.bf16.mxu0 %v5608
    %6030 = vmatpush1.bf16.msra.mxu0 %v5607
    %6031 = vmatprep.subr.bf16.mxu0 %v5615
    %6032 = vmatpush1.bf16.msra.mxu0 %v5614
    %6033 = vmatprep.subr.bf16.mxu0 %v5622
    %6034 = vmatpush1.bf16.msra.mxu0 %v5621
    %6035 = vmatprep.subr.bf16.mxu0 %v5629
    %6036 = vmatpush1.bf16.msra.mxu0 %v5628
    %6037 = vmatprep.subr.bf16.mxu0 %v5636
    %6038 = vmatpush1.bf16.msra.mxu0 %v5635
    %6039 = vmatprep.subr.bf16.mxu0 %v5643
    %6040 = vmatpush1.bf16.msra.mxu0 %v5642
    %6041 = vmatprep.subr.bf16.mxu0 %v5650
    %6042 = vmatpush1.bf16.msra.mxu0 %v5649
    %6043 = vmatprep.subr.bf16.mxu0 %v5657
    %6044 = vmatpush1.bf16.msra.mxu0 %v5656
    %6045 = vmatprep.subr.bf16.mxu0 %v5664
    %6046 = vmatpush1.bf16.msra.mxu0 %v5663
    %6047 = vmatprep.mubr.bf16.mxu0 %v4446
    %6048 = vmatmul.mubr.bf16.gmra.mrb[0].mxu0 %v4445
    %v6049 = vpop.f32.mrb[0].mxu0
    %v6050 = vadd.f32 %v6009, %v6049
    %v6051 = vpop.f32.mrb[0].mxu0
    %v6052 = vadd.f32 %v6011, %v6051
    %v6053 = vpop.f32.mrb[0].mxu0
    %v6054 = vpop.f32.mrb[0].mxu0
    %6055 = vdwg.mxu0
    %6056 = vmatprep.subr.bf16.mxu0 %v5449
    %6057 = vmatpush1.bf16.msra.mxu0 %v5448
    %6058 = vmatprep.subr.bf16.mxu0 %v5456
    %6059 = vmatpush1.bf16.msra.mxu0 %v5455
    %6060 = vmatprep.subr.bf16.mxu0 %v5463
    %6061 = vmatpush1.bf16.msra.mxu0 %v5462
    %6062 = vmatprep.subr.bf16.mxu0 %v5470
    %6063 = vmatpush1.bf16.msra.mxu0 %v5469
    %6064 = vmatprep.subr.bf16.mxu0 %v5477
    %6065 = vmatpush1.bf16.msra.mxu0 %v5476
    %6066 = vmatprep.subr.bf16.mxu0 %v5484
    %6067 = vmatpush1.bf16.msra.mxu0 %v5483
    %6068 = vmatprep.subr.bf16.mxu0 %v5491
    %6069 = vmatpush1.bf16.msra.mxu0 %v5490
    %6070 = vmatprep.subr.bf16.mxu0 %v5498
    %6071 = vmatpush1.bf16.msra.mxu0 %v5497
    %6072 = vmatprep.subr.bf16.mxu0 %v5505
    %6073 = vmatpush1.bf16.msra.mxu0 %v5504
    %6074 = vmatprep.subr.bf16.mxu0 %v5512
    %6075 = vmatpush1.bf16.msra.mxu0 %v5511
    %6076 = vmatprep.subr.bf16.mxu0 %v5519
    %6077 = vmatpush1.bf16.msra.mxu0 %v5518
    %6078 = vmatprep.subr.bf16.mxu0 %v5526
    %6079 = vmatpush1.bf16.msra.mxu0 %v5525
    %6080 = vmatprep.subr.bf16.mxu0 %v5533
    %6081 = vmatpush1.bf16.msra.mxu0 %v5532
    %6082 = vmatprep.subr.bf16.mxu0 %v5540
    %6083 = vmatpush1.bf16.msra.mxu0 %v5539
    %6084 = vmatprep.subr.bf16.mxu0 %v5547
    %6085 = vmatpush1.bf16.msra.mxu0 %v5546
    %6086 = vmatprep.subr.bf16.mxu0 %v5554
    %6087 = vmatpush1.bf16.msra.mxu0 %v5553
    %6088 = vmatprep.mubr.bf16.mxu0 %v4444
    %6089 = vmatmul.mubr.bf16.gmra.mrb[0].mxu0 %v4443
    %v6090 = vpop.f32.mrb[0].mxu0
    %v6091 = vadd.f32 %v4724, %v6090
    %v6092 = vpop.f32.mrb[0].mxu0
    %v6093 = vadd.f32 %v4728, %v6092
    %v6094 = vpop.f32.mrb[0].mxu0
    %v6095 = vpop.f32.mrb[0].mxu0
    %6096 = vdwg.mxu0
    %6097 = vmatprep.subr.bf16.mxu0 %v5561
    %6098 = vmatpush1.bf16.msra.mxu0 %v5560
    %6099 = vmatprep.subr.bf16.mxu0 %v5568
    %6100 = vmatpush1.bf16.msra.mxu0 %v5567
    %6101 = vmatprep.subr.bf16.mxu0 %v5575
    %6102 = vmatpush1.bf16.msra.mxu0 %v5574
    %6103 = vmatprep.subr.bf16.mxu0 %v5582
    %6104 = vmatpush1.bf16.msra.mxu0 %v5581
    %6105 = vmatprep.subr.bf16.mxu0 %v5589
    %6106 = vmatpush1.bf16.msra.mxu0 %v5588
    %6107 = vmatprep.subr.bf16.mxu0 %v5596
    %6108 = vmatpush1.bf16.msra.mxu0 %v5595
    %6109 = vmatprep.subr.bf16.mxu0 %v5603
    %6110 = vmatpush1.bf16.msra.mxu0 %v5602
    %6111 = vmatprep.subr.bf16.mxu0 %v5610
    %6112 = vmatpush1.bf16.msra.mxu0 %v5609
    %6113 = vmatprep.subr.bf16.mxu0 %v5617
    %6114 = vmatpush1.bf16.msra.mxu0 %v5616
    %6115 = vmatprep.subr.bf16.mxu0 %v5624
    %6116 = vmatpush1.bf16.msra.mxu0 %v5623
    %6117 = vmatprep.subr.bf16.mxu0 %v5631
    %6118 = vmatpush1.bf16.msra.mxu0 %v5630
    %6119 = vmatprep.subr.bf16.mxu0 %v5638
    %6120 = vmatpush1.bf16.msra.mxu0 %v5637
    %6121 = vmatprep.subr.bf16.mxu0 %v5645
    %6122 = vmatpush1.bf16.msra.mxu0 %v5644
    %6123 = vmatprep.subr.bf16.mxu0 %v5652
    %6124 = vmatpush1.bf16.msra.mxu0 %v5651
    %6125 = vmatprep.subr.bf16.mxu0 %v5659
    %6126 = vmatpush1.bf16.msra.mxu0 %v5658
    %6127 = vmatprep.subr.bf16.mxu0 %v5666
    %6128 = vmatpush1.bf16.msra.mxu0 %v5665
    %6129 = vmatprep.mubr.bf16.mxu0 %v4446
    %6130 = vmatmul.mubr.bf16.gmra.mrb[0].mxu0 %v4445
    %v6131 = vpop.f32.mrb[0].mxu0
    %v6132 = vadd.f32 %v6091, %v6131
    %v6133 = vpop.f32.mrb[0].mxu0
    %v6134 = vadd.f32 %v6093, %v6133
    %v6135 = vpop.f32.mrb[0].mxu0
    %v6136 = vpop.f32.mrb[0].mxu0
    %6137 = vdwg.mxu0
    %6138 = vmatprep.subr.bf16.mxu0 0
    %6139 = vmatpush1.bf16.msra.mxu0 %v5450
    %6140 = vmatprep.subr.bf16.mxu0 0
    %6141 = vmatpush1.bf16.msra.mxu0 %v5457
    %6142 = vmatprep.subr.bf16.mxu0 0
    %6143 = vmatpush1.bf16.msra.mxu0 %v5464
    %6144 = vmatprep.subr.bf16.mxu0 0
    %6145 = vmatpush1.bf16.msra.mxu0 %v5471
    %6146 = vmatprep.subr.bf16.mxu0 0
    %6147 = vmatpush1.bf16.msra.mxu0 %v5478
    %6148 = vmatprep.subr.bf16.mxu0 0
    %6149 = vmatpush1.bf16.msra.mxu0 %v5485
    %6150 = vmatprep.subr.bf16.mxu0 0
    %6151 = vmatpush1.bf16.msra.mxu0 %v5492
    %6152 = vmatprep.subr.bf16.mxu0 0
    %6153 = vmatpush1.bf16.msra.mxu0 %v5499
    %6154 = vmatprep.subr.bf16.mxu0 0
    %6155 = vmatpush1.bf16.msra.mxu0 %v5506
    %6156 = vmatprep.subr.bf16.mxu0 0
    %6157 = vmatpush1.bf16.msra.mxu0 %v5513
    %6158 = vmatprep.subr.bf16.mxu0 0
    %6159 = vmatpush1.bf16.msra.mxu0 %v5520
    %6160 = vmatprep.subr.bf16.mxu0 0
    %6161 = vmatpush1.bf16.msra.mxu0 %v5527
    %6162 = vmatprep.subr.bf16.mxu0 0
    %6163 = vmatpush1.bf16.msra.mxu0 %v5534
    %6164 = vmatprep.subr.bf16.mxu0 0
    %6165 = vmatpush1.bf16.msra.mxu0 %v5541
    %6166 = vmatprep.subr.bf16.mxu0 0
    %6167 = vmatpush1.bf16.msra.mxu0 %v5548
    %6168 = vmatprep.subr.bf16.mxu0 0
    %6169 = vmatpush1.bf16.msra.mxu0 %v5555
    %6170 = vmatprep.mubr.bf16.mxu0 %v4444
    %6171 = vmatmul.mubr.bf16.gmra.mrb[0].mxu0 %v4443
    %v6172 = vpop.f32.mrb[0].mxu0
    %v6173 = vadd.f32 %v4732, %v6172
    %v6174 = vpop.f32.mrb[0].mxu0
    %v6175 = vpop.f32.mrb[0].mxu0
    %v6176 = vpop.f32.mrb[0].mxu0
    %6177 = vdwg.mxu0
    %6178 = vmatprep.subr.bf16.mxu0 0
    %6179 = vmatpush1.bf16.msra.mxu0 %v5562
    %6180 = vmatprep.subr.bf16.mxu0 0
    %6181 = vmatpush1.bf16.msra.mxu0 %v5569
    %6182 = vmatprep.subr.bf16.mxu0 0
    %6183 = vmatpush1.bf16.msra.mxu0 %v5576
    %6184 = vmatprep.subr.bf16.mxu0 0
    %6185 = vmatpush1.bf16.msra.mxu0 %v5583
    %6186 = vmatprep.subr.bf16.mxu0 0
    %6187 = vmatpush1.bf16.msra.mxu0 %v5590
    %6188 = vmatprep.subr.bf16.mxu0 0
    %6189 = vmatpush1.bf16.msra.mxu0 %v5597
    %6190 = vmatprep.subr.bf16.mxu0 0
    %6191 = vmatpush1.bf16.msra.mxu0 %v5604
    %6192 = vmatprep.subr.bf16.mxu0 0
    %6193 = vmatpush1.bf16.msra.mxu0 %v5611
    %6194 = vmatprep.subr.bf16.mxu0 0
    %6195 = vmatpush1.bf16.msra.mxu0 %v5618
    %6196 = vmatprep.subr.bf16.mxu0 0
    %6197 = vmatpush1.bf16.msra.mxu0 %v5625
    %6198 = vmatprep.subr.bf16.mxu0 0
    %6199 = vmatpush1.bf16.msra.mxu0 %v5632
    %6200 = vmatprep.subr.bf16.mxu0 0
    %6201 = vmatpush1.bf16.msra.mxu0 %v5639
    %6202 = vmatprep.subr.bf16.mxu0 0
    %6203 = vmatpush1.bf16.msra.mxu0 %v5646
    %6204 = vmatprep.subr.bf16.mxu0 0
    %6205 = vmatpush1.bf16.msra.mxu0 %v5653
    %6206 = vmatprep.subr.bf16.mxu0 0
    %6207 = vmatpush1.bf16.msra.mxu0 %v5660
    %6208 = vmatprep.subr.bf16.mxu0 0
    %6209 = vmatpush1.bf16.msra.mxu0 %v5667
    %6210 = vmatprep.mubr.bf16.mxu0 %v4446
    %6211 = vmatmul.mubr.bf16.gmra.mrb[0].mxu0 %v4445
    %v6212 = vpop.f32.mrb[0].mxu0
    %v6213 = vadd.f32 %v6173, %v6212
    %v6214 = vpop.f32.mrb[0].mxu0
    %v6215 = vpop.f32.mrb[0].mxu0
    %v6216 = vpop.f32.mrb[0].mxu0
    %6217 = vdwg.mxu0
    %v6218 = vxor.u32 %v5968, 2147483648
    %v6219 = vxor.u32 %v5970, 2147483648
    %v6220 = vxor.u32 %v6050, 2147483648
    %v6221 = vxor.u32 %v6052, 2147483648
    %v6222 = vxor.u32 %v6132, 2147483648
    %v6223 = vxor.u32 %v6134, 2147483648
    %v6224 = vxor.u32 %v6213, 2147483648
    %v6225 = vmul.f32 %v6218, 1.442695
    %v6226 = vpow.pop %v6225
    %v6227 = vmul.f32 %v6219, 1.442695
    %v6228 = vpow.pop %v6227
    %v6229 = vmul.f32 %v6220, 1.442695
    %v6230 = vpow.pop %v6229
    %v6231 = vmul.f32 %v6221, 1.442695
    %v6232 = vpow.pop %v6231
    %v6233 = vmul.f32 %v6222, 1.442695
    %v6234 = vpow.pop %v6233
    %v6235 = vmul.f32 %v6223, 1.442695
    %v6236 = vpow.pop %v6235
    %v6237 = vmul.f32 %v6224, 1.442695
    %v6238 = vpow.pop %v6237
    %v6239 = vadd.f32 %v6226, 1.0
    %v6240 = vadd.f32 %v6228, 1.0
    %v6241 = vadd.f32 %v6230, 1.0
    %v6242 = vadd.f32 %v6232, 1.0
    %v6243 = vadd.f32 %v6234, 1.0
    %v6244 = vadd.f32 %v6236, 1.0
    %v6245 = vadd.f32 %v6238, 1.0
    %v6246 = vrcp.pop %v6239
    %v6247 = vmul.f32 1.0, %v6246
    %v6248 = vrcp.pop %v6240
    %v6249 = vmul.f32 1.0, %v6248
    %v6250 = vrcp.pop %v6241
    %v6251 = vmul.f32 1.0, %v6250
    %v6252 = vrcp.pop %v6242
    %v6253 = vmul.f32 1.0, %v6252
    %v6254 = vrcp.pop %v6243
    %v6255 = vmul.f32 1.0, %v6254
    %v6256 = vrcp.pop %v6244
    %v6257 = vmul.f32 1.0, %v6256
    %v6258 = vrcp.pop %v6245
    %v6259 = vmul.f32 1.0, %v6258
    %v6260 = vpack.c.bf16 %v6247, %v6247
    %v6261 = vpack.c.bf16 %v6249, %v6249
    %v6262 = vpack.c.bf16 %v6251, %v6251
    %v6263 = vpack.c.bf16 %v6253, %v6253
    %v6264 = vpack.c.bf16 %v6255, %v6255
    %v6265 = vpack.c.bf16 %v6257, %v6257
    %v6266 = vpack.c.bf16 %v6259, %v6259
    %v6274 = vunpack.c.l.b16 %v6260
    %v6275 = vunpack.c.l.b16 %v6261
    %v6276 = vunpack.c.l.b16 %v6262
    %v6277 = vunpack.c.l.b16 %v6263
    %v6278 = vunpack.c.l.b16 %v6264
    %v6279 = vunpack.c.l.b16 %v6265
    %v6280 = vunpack.c.l.b16 %v6266
    %v6281 = vpack.c.b16 %v6275, %v6274
    %v6282 = vpack.c.b16 %v6277, %v6276
    %v6283 = vpack.c.b16 %v6279, %v6278
    %v6284 = vpack.c.b16 %v6280, %v6280
    %6289 = vst [vmem:[%s14] sm:$0xff] %v6281
    %6290 = vst [vmem:[%s14 + $0x8] sm:$0xff] %v6282
    %6291 = vst [vmem:[%s14 + $0x10] sm:$0xff] %v6283
    %6292 = vst [vmem:[%s14 + $0x18] sm:$0xf] %v6284
    // Predicated region
    $region82: #{vae_forward.1} parent=1 // pred_check
      _
    $region83: #{vae_forward.1} parent=1 // pred_check_branch
      %6294 = sbr.rel (0) target = $region85
    $region84: #{vae_forward.1} parent=1 // pred_region
      _
    $region85: #{vae_forward.1} parent=1 // pred_fallthru
      _
    // Predicated region
    $region86: #{vae_forward.1} parent=1 // pred_check
      _
    $region87: #{vae_forward.1} parent=1 // pred_check_branch
      %6296 = sbr.rel (0) target = $region89
    $region88: #{vae_forward.1} parent=1 // pred_region
      _
    $region89: #{vae_forward.1} parent=1 // pred_fallthru
      _
    // Predicated region
    $region90: #{vae_forward.1} parent=1 // pred_check
      _
    $region91: #{vae_forward.1} parent=1 // pred_check_branch
      %6298 = sbr.rel (0) target = $region93
    $region92: #{vae_forward.1} parent=1 // pred_region
      _
    $region93: #{vae_forward.1} parent=1 // pred_fallthru
      _
    // Predicated region
    $region94: #{vae_forward.1} parent=1 // pred_check
      _
    $region95: #{vae_forward.1} parent=1 // pred_check_branch
      %6300 = sbr.rel (0) target = $region97
    $region96: #{vae_forward.1} parent=1 // pred_region
      _
    $region97: #{vae_forward.1} parent=1 // pred_fallthru
      _
    %6301 = vsyncpa [#allocation3], 1
    %6302 = vsyncpa [#allocation5], 1
    %6303 = vsyncpa [#allocation8], 1
    %6304 = vsyncpa [#allocation11], 1

</llo_original>
